<compile_context>
chip_gen: v6e
topology: v6e:2x2x1
jax: 0.10.0
libtpu: 0.0.40
codegen_flags: <defaults>
</compile_context>

<pallas_src>
import functools

import jax
import jax.numpy as jnp
from jax.experimental import pallas as pl
from jax.experimental.pallas import tpu as pltpu


def _pick_row_chunk(H, W, max_rows):
    """Largest divisor TH of H with TH*W <= max_rows (bounded accumulators)."""
    best = 1
    for d in range(1, H + 1):
        if H % d == 0 and d * W <= max_rows:
            best = d
    return best


# ---------------------------------------------------------------------------
# Fused Bottleneck kernel: one batch image per grid step.
#
# Scratch hp_ref holds the conv1 output as a flattened, ROW-padded image:
#   flat index = PAD0 + (image_row + 1) * W + col        (PAD0 = 8 rows slack)
# Rows 0 and H+1 of the padded image (and the slack) stay zero.  A 3x3 tap
# (ky, kx) for an output row-chunk is then just the contiguous slice starting
# at  PAD0 + (r0 + ky) * W + (kx - 1);  the column shift wraps into the
# neighbouring image row exactly at the positions that the conv's zero column
# padding must kill, so a per-column mask fixes both at once.
# ---------------------------------------------------------------------------
def _bottleneck_kernel(
    x_ref, w1_ref, w2_ref, w3_ref, b1_ref, b2_ref, b3_ref,   # inputs
    o_ref,                                                    # output
    hp_ref,                                                   # VMEM scratch
    *, H, W, Cin, P, E, TH, compute_dtype,
):
    PAD0 = 8                      # front slack (sublane-aligned), stays zero
    nchunks = H // TH
    L = TH * W                    # pixels per row chunk

    # Zero the scratch so the row padding / slack regions read as zeros.
    hp_ref[...] = jnp.zeros_like(hp_ref)

    w1 = w1_ref[...]
    w3 = w3_ref[...]
    b1 = b1_ref[...]
    b2 = b2_ref[...]
    b3 = b3_ref[...]

    # ---- stage 1: conv1 (1x1) + folded bn1 + relu, row-chunked -------------
    for rc in range(nchunks):
        r0 = rc * TH
        xc = x_ref[0, r0:r0 + TH, :, :].reshape(L, Cin).astype(compute_dtype)
        h1 = jnp.dot(xc, w1, preferred_element_type=jnp.float32)
        h1 = jnp.maximum(h1 + b1, 0.0)
        start = PAD0 + (r0 + 1) * W            # aligned: W % 8 == 0
        hp_ref[start:start + L, :] = h1

    # Column index of each flattened pixel (hoisted out of the chunk loop).
    col = jax.lax.broadcasted_iota(jnp.int32, (L, 1), 0) % W

    # ---- stage 2: conv2 (3x3, pad=1) + folded bn2 + relu
    #      stage 3: conv3 (1x1) + folded bn3 + residual + relu
    #      fused per row chunk; nothing leaves VMEM until the final store ----
    for rc in range(nchunks):
        r0 = rc * TH
        acc = jnp.zeros((L, P), jnp.float32)
        for ky in range(3):
            for kx in range(3):
                dx = kx - 1
                base = PAD0 + (r0 + ky) * W + dx
                tap = hp_ref[base:base + L, :]
                if dx == -1:                       # left zero-pad column
                    tap = jnp.where(col > 0, tap, 0.0)
                elif dx == 1:                      # right zero-pad column
                    tap = jnp.where(col < W - 1, tap, 0.0)
                acc = acc + jnp.dot(
                    tap.astype(compute_dtype),
                    w2_ref[ky * 3 + kx],
                    preferred_element_type=jnp.float32,
                )
        h2 = jnp.maximum(acc + b2, 0.0).astype(compute_dtype)

        y = jnp.dot(h2, w3, preferred_element_type=jnp.float32) + b3
        res = x_ref[0, r0:r0 + TH, :, :].reshape(L, Cin).astype(jnp.float32)
        out = jnp.maximum(y + res, 0.0)
        o_ref[0, r0:r0 + TH, :, :] = out.reshape(TH, W, E).astype(o_ref.dtype)


# ---------------------------------------------------------------------------
# Wrapper: layout glue + BN folding + pallas_call
# ---------------------------------------------------------------------------
def bottleneck_forward(x_nchw, params, stride=1, *,
                       compute_dtype=jnp.float32, max_chunk_rows=512):
    # TODO(synk): stride>1 / downsample module not implemented.
    assert stride == 1, "only stride=1 implemented"

    # NCHW <-> NHWC transposes are boundary glue only; drop them if the
    # surrounding graph already runs channels-last.
    x = jnp.transpose(x_nchw, (0, 2, 3, 1))
    N, H, W, Cin = x.shape
    P = params["w1"].shape[1]
    E = 4 * P
    assert Cin == E, "downsample=None requires inplanes == planes*4"
    assert W % 8 == 0, "W must be a multiple of 8 (sublane alignment)"

    TH = _pick_row_chunk(H, W, max_chunk_rows)

    # Fold BN scale into the conv weight columns (per output channel); the
    # kernel epilogues are then a plain bias add.  Cast weights to the matmul
    # compute dtype (bf16 on v6e/v7x: 2x MXU throughput, half the weight DMA).
    w1 = (params["w1"] * params["s1"]).astype(compute_dtype)
    w2 = (params["w2"] * params["s2"][None]).astype(compute_dtype)
    w3 = (params["w3"] * params["s3"]).astype(compute_dtype)
    b1 = params["b1"].astype(jnp.float32)
    b2 = params["b2"].astype(jnp.float32)
    b3 = params["b3"].astype(jnp.float32)

    # Row-padded, flattened conv1 activation (+ 8 rows slack front and back).
    R = 8 + (H + 2) * W + 8

    kernel = functools.partial(
        _bottleneck_kernel, H=H, W=W, Cin=Cin, P=P, E=E, TH=TH,
        compute_dtype=compute_dtype)

    out = pl.pallas_call(
        kernel,
        out_shape=jax.ShapeDtypeStruct((N, H, W, E), x.dtype),
        grid=(N,),
        in_specs=[
            pl.BlockSpec((1, H, W, Cin), lambda n: (n, 0, 0, 0)),
            pl.BlockSpec((Cin, P), lambda n: (0, 0)),
            pl.BlockSpec((9, P, P), lambda n: (0, 0, 0)),
            pl.BlockSpec((P, E), lambda n: (0, 0)),
            pl.BlockSpec((1, P), lambda n: (0, 0)),
            pl.BlockSpec((1, P), lambda n: (0, 0)),
            pl.BlockSpec((1, E), lambda n: (0, 0)),
        ],
        out_specs=pl.BlockSpec((1, H, W, E), lambda n: (n, 0, 0, 0)),
        scratch_shapes=[pltpu.VMEM((R, P), jnp.float32)],
        compiler_params=pltpu.CompilerParams(
            dimension_semantics=("parallel",),      # shard batch across TCs
            vmem_limit_bytes=48 * 1024 * 1024,      # raise scoped VMEM limit
        ),
    )(x, w1, w2, w3, b1, b2, b3)

    return jnp.transpose(out, (0, 3, 1, 2))


# ---------------------------------------------------------------------------
# Pure-JAX reference (for correctness check)
# ---------------------------------------------------------------------------
def bottleneck_reference(x_nchw, params):
    x = jnp.transpose(x_nchw, (0, 2, 3, 1))
    N, H, W, Cin = x.shape
    P = params["w1"].shape[1]
    hi = jax.lax.Precision.HIGHEST

    def pw(h, w, s, b, res=None):
        o = jnp.einsum("nhwc,cd->nhwd", h, w, precision=hi) * s[0] + b[0]
        if res is not None:
            o = o + res
        return jnp.maximum(o, 0.0)

    h = pw(x, params["w1"], params["s1"], params["b1"])
    hp = jnp.pad(h, ((0, 0), (1, 1), (1, 1), (0, 0)))
    acc = jnp.zeros((N, H, W, P), jnp.float32)
    for ky in range(3):
        for kx in range(3):
            acc = acc + jnp.einsum(
                "nhwc,cd->nhwd",
                hp[:, ky:ky + H, kx:kx + W, :],
                params["w2"][ky * 3 + kx],
                precision=hi,
            )
    h = jnp.maximum(acc * params["s2"][0] + params["b2"][0], 0.0)
    out = pw(h, params["w3"], params["s3"], params["b3"], res=x)
    return jnp.transpose(out, (0, 3, 1, 2))


# ---------------------------------------------------------------------------
# Deterministic parameters (inference-mode BN folded to scale/bias)
# ---------------------------------------------------------------------------
def make_params(key, inplanes, planes):
    ks = jax.random.split(key, 16)

    def bn_fold(kg, kb, km, kv, c, eps=1e-5):
        gamma = jax.random.uniform(kg, (c,), jnp.float32, 0.5, 1.5)
        beta = 0.1 * jax.random.normal(kb, (c,), jnp.float32)
        mean = 0.1 * jax.random.normal(km, (c,), jnp.float32)
        var = jax.random.uniform(kv, (c,), jnp.float32, 0.5, 1.5)
        scale = gamma / jnp.sqrt(var + eps)
        bias = beta - mean * scale
        return scale.reshape(1, c), bias.reshape(1, c)

    P, E = planes, planes * 4
    w1 = 0.2 * jax.random.normal(ks[0], (inplanes, P), jnp.float32)   # (Cin, Cout)
    w2 = 0.2 * jax.random.normal(ks[1], (9, P, P), jnp.float32)       # 9 taps
    w3 = 0.2 * jax.random.normal(ks[2], (P, E), jnp.float32)
    s1, b1 = bn_fold(ks[3], ks[4], ks[5], ks[6], P)
    s2, b2 = bn_fold(ks[7], ks[8], ks[9], ks[10], P)
    s3, b3 = bn_fold(ks[11], ks[12], ks[13], ks[14], E)
    return dict(w1=w1, w2=w2, w3=w3, s1=s1, b1=b1, s2=s2, b2=b2, s3=s3, b3=b3)


if __name__ == "__main__":
    # Bottleneck(inplanes=128, planes=32): downsample=None requires
    # inplanes == planes*4.  Channels chosen lane-dense (Cin = E = 128).
    # Input x: NCHW (2, 128, 16, 16).
    inplanes, planes = 128, 32
    N, H, W = 2, 16, 16
    key = jax.random.PRNGKey(0)
    kx_, kp_ = jax.random.split(key)
    x = jax.random.normal(kx_, (N, inplanes, H, W), jnp.float32)
    params = make_params(kp_, inplanes, planes)

    ref = bottleneck_reference(x, params)

    # f32 MXU path; max_chunk_rows=128 forces 2 row chunks per image so the
    # chunked-accumulator / halo path is exercised.
    fwd = jax.jit(lambda a: bottleneck_forward(
        a, params, compute_dtype=jnp.float32, max_chunk_rows=128))
    out = jax.block_until_ready(fwd(x))
    assert out.shape == (N, planes * 4, H, W)
    assert jnp.allclose(out, ref, atol=5e-2, rtol=5e-2), float(
        jnp.max(jnp.abs(out - ref)))

    # bf16 MXU path (v6e/v7x throughput path); looser tolerance.
    fwd_bf16 = jax.jit(lambda a: bottleneck_forward(
        a, params, compute_dtype=jnp.bfloat16, max_chunk_rows=128))
    out_bf16 = jax.block_until_ready(fwd_bf16(x))
    assert out_bf16.shape == (N, planes * 4, H, W)
    assert jnp.allclose(out_bf16, ref, atol=5e-1, rtol=1e-1), float(
        jnp.max(jnp.abs(out_bf16 - ref)))

    print("KERNEL_OK")
</pallas_src>

<mosaic_0001>
module attributes {stable_mosaic.version = 11 : i64} {
  func.func @_bottleneck_kernel(%arg0: i32, %arg1: memref<1x16x16x128xf32, #tpu.memory_space<vmem>>, %arg2: memref<128x32xf32, #tpu.memory_space<vmem>>, %arg3: memref<9x32x32xf32, #tpu.memory_space<vmem>>, %arg4: memref<32x128xf32, #tpu.memory_space<vmem>>, %arg5: memref<1x32xf32, #tpu.memory_space<vmem>>, %arg6: memref<1x32xf32, #tpu.memory_space<vmem>>, %arg7: memref<1x128xf32, #tpu.memory_space<vmem>>, %arg8: memref<1x16x16x128xf32, #tpu.memory_space<vmem>>, %arg9: memref<304x32xf32, #tpu.memory_space<vmem>>) attributes {dimension_semantics = [#tpu.dimension_semantics<parallel>], iteration_bounds = array<i64: 2>, scalar_prefetch = 0 : i64, scratch_operands = 1 : i64, tpu.core_type = #tpu.core_type<tc>, window_params = [{transform_indices = @transform_0, window_bounds = array<i64: 1, 16, 16, 128>}, {pipeline_mode = #tpu.pipeline_mode<synchronous>, transform_indices = @transform_1, window_bounds = array<i64: 128, 32>}, {pipeline_mode = #tpu.pipeline_mode<synchronous>, transform_indices = @transform_2, window_bounds = array<i64: 9, 32, 32>}, {pipeline_mode = #tpu.pipeline_mode<synchronous>, transform_indices = @transform_3, window_bounds = array<i64: 32, 128>}, {pipeline_mode = #tpu.pipeline_mode<synchronous>, transform_indices = @transform_4, window_bounds = array<i64: 1, 32>}, {pipeline_mode = #tpu.pipeline_mode<synchronous>, transform_indices = @transform_5, window_bounds = array<i64: 1, 32>}, {pipeline_mode = #tpu.pipeline_mode<synchronous>, transform_indices = @transform_6, window_bounds = array<i64: 1, 128>}, {transform_indices = @transform_7, window_bounds = array<i64: 1, 16, 16, 128>}]} {
    %cst = arith.constant 0.000000e+00 : f32
    %0 = vector.broadcast %cst : f32 to vector<304x32xf32>
    %c0 = arith.constant 0 : index
    %c0_0 = arith.constant 0 : index
    %1 = vector.load %arg9[%c0, %c0_0] : memref<304x32xf32, #tpu.memory_space<vmem>>, vector<304x32xf32>
    tpu.vector_store %arg9[%c0, %c0_0], %0 {strides = array<i32>} : memref<304x32xf32, #tpu.memory_space<vmem>>, vector<304x32xf32>,
    %c0_1 = arith.constant 0 : index
    %c0_2 = arith.constant 0 : index
    %2 = vector.load %arg2[%c0_1, %c0_2] : memref<128x32xf32, #tpu.memory_space<vmem>>, vector<128x32xf32>
    %c0_3 = arith.constant 0 : index
    %c0_4 = arith.constant 0 : index
    %3 = vector.load %arg4[%c0_3, %c0_4] : memref<32x128xf32, #tpu.memory_space<vmem>>, vector<32x128xf32>
    %c0_5 = arith.constant 0 : index
    %c0_6 = arith.constant 0 : index
    %4 = vector.load %arg5[%c0_5, %c0_6] : memref<1x32xf32, #tpu.memory_space<vmem>>, vector<1x32xf32>
    %c0_7 = arith.constant 0 : index
    %c0_8 = arith.constant 0 : index
    %5 = vector.load %arg6[%c0_7, %c0_8] : memref<1x32xf32, #tpu.memory_space<vmem>>, vector<1x32xf32>
    %c0_9 = arith.constant 0 : index
    %c0_10 = arith.constant 0 : index
    %6 = vector.load %arg7[%c0_9, %c0_10] : memref<1x128xf32, #tpu.memory_space<vmem>>, vector<1x128xf32>
    %c0_11 = arith.constant 0 : index
    %c0_12 = arith.constant 0 : index
    %c0_13 = arith.constant 0 : index
    %c0_14 = arith.constant 0 : index
    %7 = vector.load %arg1[%c0_11, %c0_12, %c0_13, %c0_14] : memref<1x16x16x128xf32, #tpu.memory_space<vmem>>, vector<1x8x16x128xf32>
    %8 = vector.shape_cast %7 : vector<1x8x16x128xf32> to vector<8x16x128xf32>
    %9 = vector.shape_cast %8 : vector<8x16x128xf32> to vector<128x128xf32>
    %cst_15 = arith.constant dense<0.000000e+00> : vector<128x32xf32>
    %10 = tpu.matmul %9, %2, %cst_15 {dimension_numbers = #tpu.dot_dimension_numbers<[1], [0], [0], [1], [0, 0, 1, 1], [], []>} : vector<128x128xf32>, vector<128x32xf32>, vector<128x32xf32> -> vector<128x32xf32>
    %11 = vector.broadcast %4 : vector<1x32xf32> to vector<128x32xf32>
    %12 = arith.addf %10, %11 : vector<128x32xf32>
    %cst_16 = arith.constant 0.000000e+00 : f32
    %13 = vector.broadcast %cst_16 : f32 to vector<128x32xf32>
    %14 = arith.maximumf %12, %13 : vector<128x32xf32>
    %c24 = arith.constant 24 : index
    %c0_17 = arith.constant 0 : index
    %15 = vector.load %arg9[%c24, %c0_17] : memref<304x32xf32, #tpu.memory_space<vmem>>, vector<128x32xf32>
    tpu.vector_store %arg9[%c24, %c0_17], %14 {strides = array<i32>} : memref<304x32xf32, #tpu.memory_space<vmem>>, vector<128x32xf32>,
    %c0_18 = arith.constant 0 : index
    %c8 = arith.constant 8 : index
    %c0_19 = arith.constant 0 : index
    %c0_20 = arith.constant 0 : index
    %16 = vector.load %arg1[%c0_18, %c8, %c0_19, %c0_20] : memref<1x16x16x128xf32, #tpu.memory_space<vmem>>, vector<1x8x16x128xf32>
    %17 = vector.shape_cast %16 : vector<1x8x16x128xf32> to vector<8x16x128xf32>
    %18 = vector.shape_cast %17 : vector<8x16x128xf32> to vector<128x128xf32>
    %cst_21 = arith.constant dense<0.000000e+00> : vector<128x32xf32>
    %19 = tpu.matmul %18, %2, %cst_21 {dimension_numbers = #tpu.dot_dimension_numbers<[1], [0], [0], [1], [0, 0, 1, 1], [], []>} : vector<128x128xf32>, vector<128x32xf32>, vector<128x32xf32> -> vector<128x32xf32>
    %20 = vector.broadcast %4 : vector<1x32xf32> to vector<128x32xf32>
    %21 = arith.addf %19, %20 : vector<128x32xf32>
    %cst_22 = arith.constant 0.000000e+00 : f32
    %22 = vector.broadcast %cst_22 : f32 to vector<128x32xf32>
    %23 = arith.maximumf %21, %22 : vector<128x32xf32>
    %c152 = arith.constant 152 : index
    %c0_23 = arith.constant 0 : index
    %24 = vector.load %arg9[%c152, %c0_23] : memref<304x32xf32, #tpu.memory_space<vmem>>, vector<128x32xf32>
    tpu.vector_store %arg9[%c152, %c0_23], %23 {strides = array<i32>} : memref<304x32xf32, #tpu.memory_space<vmem>>, vector<128x32xf32>,
    %25 = tpu.iota {dimensions = array<i32: 0>} : vector<128x1xi32>
    %c16_i32 = arith.constant 16 : i32
    %c0_i32 = arith.constant 0 : i32
    %26 = arith.cmpi eq, %c16_i32, %c0_i32 : i32
    %c1_i32 = arith.constant 1 : i32
    %27 = arith.select %26, %c1_i32, %c16_i32 : i32
    %28 = vector.broadcast %27 : i32 to vector<128x1xi32>
    %29 = arith.remsi %25, %28 : vector<128x1xi32>
    %c0_i32_24 = arith.constant 0 : i32
    %30 = vector.broadcast %c0_i32_24 : i32 to vector<128x1xi32>
    %31 = arith.cmpi ne, %29, %30 : vector<128x1xi32>
    %c0_i32_25 = arith.constant 0 : i32
    %32 = vector.broadcast %c0_i32_25 : i32 to vector<128x1xi32>
    %33 = arith.cmpi slt, %29, %32 : vector<128x1xi32>
    %c0_i32_26 = arith.constant 0 : i32
    %34 = arith.cmpi slt, %27, %c0_i32_26 : i32
    %35 = vector.broadcast %34 : i1 to vector<128x1xi1>
    %36 = vector.broadcast %35 : vector<128x1xi1> to vector<128x1xi1>
    %37 = arith.xori %33, %36 : vector<128x1xi1>
    %38 = arith.andi %37, %31 : vector<128x1xi1>
    %39 = vector.broadcast %27 : i32 to vector<128x1xi32>
    %40 = arith.addi %29, %39 : vector<128x1xi32>
    %41 = arith.select %38, %40, %29 : vector<128x1xi1>, vector<128x1xi32>
    %cst_27 = arith.constant 0.000000e+00 : f32
    %42 = vector.broadcast %cst_27 : f32 to vector<128x32xf32>
    %c7 = arith.constant 7 : index
    %c0_28 = arith.constant 0 : index
    %43 = vector.load %arg9[%c7, %c0_28] : memref<304x32xf32, #tpu.memory_space<vmem>>, vector<128x32xf32>
    %c0_i32_29 = arith.constant 0 : i32
    %44 = vector.broadcast %c0_i32_29 : i32 to vector<128x1xi32>
    %45 = arith.cmpi sgt, %41, %44 : vector<128x1xi32>
    %cst_30 = arith.constant 0.000000e+00 : f32
    %46 = vector.shape_cast %45 : vector<128x1xi1> to vector<128x1xi1>
    %47 = vector.broadcast %46 : vector<128x1xi1> to vector<128x32xi1>
    %48 = vector.broadcast %cst_30 : f32 to vector<128x32xf32>
    %49 = arith.select %47, %43, %48 : vector<128x32xi1>, vector<128x32xf32>
    %c0_31 = arith.constant 0 : index
    %c0_32 = arith.constant 0 : index
    %c0_33 = arith.constant 0 : index
    %50 = vector.load %arg3[%c0_31, %c0_32, %c0_33] : memref<9x32x32xf32, #tpu.memory_space<vmem>>, vector<1x32x32xf32>
    %51 = vector.shape_cast %50 : vector<1x32x32xf32> to vector<32x32xf32>
    %cst_34 = arith.constant dense<0.000000e+00> : vector<128x32xf32>
    %52 = tpu.matmul %49, %51, %cst_34 {dimension_numbers = #tpu.dot_dimension_numbers<[1], [0], [0], [1], [0, 0, 1, 1], [], []>} : vector<128x32xf32>, vector<32x32xf32>, vector<128x32xf32> -> vector<128x32xf32>
    %53 = arith.addf %42, %52 : vector<128x32xf32>
    %c8_35 = arith.constant 8 : index
    %c0_36 = arith.constant 0 : index
    %54 = vector.load %arg9[%c8_35, %c0_36] : memref<304x32xf32, #tpu.memory_space<vmem>>, vector<128x32xf32>
    %c1 = arith.constant 1 : index
    %c0_37 = arith.constant 0 : index
    %c0_38 = arith.constant 0 : index
    %55 = vector.load %arg3[%c1, %c0_37, %c0_38] : memref<9x32x32xf32, #tpu.memory_space<vmem>>, vector<1x32x32xf32>
    %56 = vector.shape_cast %55 : vector<1x32x32xf32> to vector<32x32xf32>
    %cst_39 = arith.constant dense<0.000000e+00> : vector<128x32xf32>
    %57 = tpu.matmul %54, %56, %cst_39 {dimension_numbers = #tpu.dot_dimension_numbers<[1], [0], [0], [1], [0, 0, 1, 1], [], []>} : vector<128x32xf32>, vector<32x32xf32>, vector<128x32xf32> -> vector<128x32xf32>
    %58 = arith.addf %53, %57 : vector<128x32xf32>
    %c9 = arith.constant 9 : index
    %c0_40 = arith.constant 0 : index
    %59 = vector.load %arg9[%c9, %c0_40] : memref<304x32xf32, #tpu.memory_space<vmem>>, vector<128x32xf32>
    %c15_i32 = arith.constant 15 : i32
    %60 = vector.broadcast %c15_i32 : i32 to vector<128x1xi32>
    %61 = arith.cmpi slt, %41, %60 : vector<128x1xi32>
    %cst_41 = arith.constant 0.000000e+00 : f32
    %62 = vector.shape_cast %61 : vector<128x1xi1> to vector<128x1xi1>
    %63 = vector.broadcast %62 : vector<128x1xi1> to vector<128x32xi1>
    %64 = vector.broadcast %cst_41 : f32 to vector<128x32xf32>
    %65 = arith.select %63, %59, %64 : vector<128x32xi1>, vector<128x32xf32>
    %c2 = arith.constant 2 : index
    %c0_42 = arith.constant 0 : index
    %c0_43 = arith.constant 0 : index
    %66 = vector.load %arg3[%c2, %c0_42, %c0_43] : memref<9x32x32xf32, #tpu.memory_space<vmem>>, vector<1x32x32xf32>
    %67 = vector.shape_cast %66 : vector<1x32x32xf32> to vector<32x32xf32>
    %cst_44 = arith.constant dense<0.000000e+00> : vector<128x32xf32>
    %68 = tpu.matmul %65, %67, %cst_44 {dimension_numbers = #tpu.dot_dimension_numbers<[1], [0], [0], [1], [0, 0, 1, 1], [], []>} : vector<128x32xf32>, vector<32x32xf32>, vector<128x32xf32> -> vector<128x32xf32>
    %69 = arith.addf %58, %68 : vector<128x32xf32>
    %c23 = arith.constant 23 : index
    %c0_45 = arith.constant 0 : index
    %70 = vector.load %arg9[%c23, %c0_45] : memref<304x32xf32, #tpu.memory_space<vmem>>, vector<128x32xf32>
    %c0_i32_46 = arith.constant 0 : i32
    %71 = vector.broadcast %c0_i32_46 : i32 to vector<128x1xi32>
    %72 = arith.cmpi sgt, %41, %71 : vector<128x1xi32>
    %cst_47 = arith.constant 0.000000e+00 : f32
    %73 = vector.shape_cast %72 : vector<128x1xi1> to vector<128x1xi1>
    %74 = vector.broadcast %73 : vector<128x1xi1> to vector<128x32xi1>
    %75 = vector.broadcast %cst_47 : f32 to vector<128x32xf32>
    %76 = arith.select %74, %70, %75 : vector<128x32xi1>, vector<128x32xf32>
    %c3 = arith.constant 3 : index
    %c0_48 = arith.constant 0 : index
    %c0_49 = arith.constant 0 : index
    %77 = vector.load %arg3[%c3, %c0_48, %c0_49] : memref<9x32x32xf32, #tpu.memory_space<vmem>>, vector<1x32x32xf32>
    %78 = vector.shape_cast %77 : vector<1x32x32xf32> to vector<32x32xf32>
    %cst_50 = arith.constant dense<0.000000e+00> : vector<128x32xf32>
    %79 = tpu.matmul %76, %78, %cst_50 {dimension_numbers = #tpu.dot_dimension_numbers<[1], [0], [0], [1], [0, 0, 1, 1], [], []>} : vector<128x32xf32>, vector<32x32xf32>, vector<128x32xf32> -> vector<128x32xf32>
    %80 = arith.addf %69, %79 : vector<128x32xf32>
    %c24_51 = arith.constant 24 : index
    %c0_52 = arith.constant 0 : index
    %81 = vector.load %arg9[%c24_51, %c0_52] : memref<304x32xf32, #tpu.memory_space<vmem>>, vector<128x32xf32>
    %c4 = arith.constant 4 : index
    %c0_53 = arith.constant 0 : index
    %c0_54 = arith.constant 0 : index
    %82 = vector.load %arg3[%c4, %c0_53, %c0_54] : memref<9x32x32xf32, #tpu.memory_space<vmem>>, vector<1x32x32xf32>
    %83 = vector.shape_cast %82 : vector<1x32x32xf32> to vector<32x32xf32>
    %cst_55 = arith.constant dense<0.000000e+00> : vector<128x32xf32>
    %84 = tpu.matmul %81, %83, %cst_55 {dimension_numbers = #tpu.dot_dimension_numbers<[1], [0], [0], [1], [0, 0, 1, 1], [], []>} : vector<128x32xf32>, vector<32x32xf32>, vector<128x32xf32> -> vector<128x32xf32>
    %85 = arith.addf %80, %84 : vector<128x32xf32>
    %c25 = arith.constant 25 : index
    %c0_56 = arith.constant 0 : index
    %86 = vector.load %arg9[%c25, %c0_56] : memref<304x32xf32, #tpu.memory_space<vmem>>, vector<128x32xf32>
    %c15_i32_57 = arith.constant 15 : i32
    %87 = vector.broadcast %c15_i32_57 : i32 to vector<128x1xi32>
    %88 = arith.cmpi slt, %41, %87 : vector<128x1xi32>
    %cst_58 = arith.constant 0.000000e+00 : f32
    %89 = vector.shape_cast %88 : vector<128x1xi1> to vector<128x1xi1>
    %90 = vector.broadcast %89 : vector<128x1xi1> to vector<128x32xi1>
    %91 = vector.broadcast %cst_58 : f32 to vector<128x32xf32>
    %92 = arith.select %90, %86, %91 : vector<128x32xi1>, vector<128x32xf32>
    %c5 = arith.constant 5 : index
    %c0_59 = arith.constant 0 : index
    %c0_60 = arith.constant 0 : index
    %93 = vector.load %arg3[%c5, %c0_59, %c0_60] : memref<9x32x32xf32, #tpu.memory_space<vmem>>, vector<1x32x32xf32>
    %94 = vector.shape_cast %93 : vector<1x32x32xf32> to vector<32x32xf32>
    %cst_61 = arith.constant dense<0.000000e+00> : vector<128x32xf32>
    %95 = tpu.matmul %92, %94, %cst_61 {dimension_numbers = #tpu.dot_dimension_numbers<[1], [0], [0], [1], [0, 0, 1, 1], [], []>} : vector<128x32xf32>, vector<32x32xf32>, vector<128x32xf32> -> vector<128x32xf32>
    %96 = arith.addf %85, %95 : vector<128x32xf32>
    %c39 = arith.constant 39 : index
    %c0_62 = arith.constant 0 : index
    %97 = vector.load %arg9[%c39, %c0_62] : memref<304x32xf32, #tpu.memory_space<vmem>>, vector<128x32xf32>
    %c0_i32_63 = arith.constant 0 : i32
    %98 = vector.broadcast %c0_i32_63 : i32 to vector<128x1xi32>
    %99 = arith.cmpi sgt, %41, %98 : vector<128x1xi32>
    %cst_64 = arith.constant 0.000000e+00 : f32
    %100 = vector.shape_cast %99 : vector<128x1xi1> to vector<128x1xi1>
    %101 = vector.broadcast %100 : vector<128x1xi1> to vector<128x32xi1>
    %102 = vector.broadcast %cst_64 : f32 to vector<128x32xf32>
    %103 = arith.select %101, %97, %102 : vector<128x32xi1>, vector<128x32xf32>
    %c6 = arith.constant 6 : index
    %c0_65 = arith.constant 0 : index
    %c0_66 = arith.constant 0 : index
    %104 = vector.load %arg3[%c6, %c0_65, %c0_66] : memref<9x32x32xf32, #tpu.memory_space<vmem>>, vector<1x32x32xf32>
    %105 = vector.shape_cast %104 : vector<1x32x32xf32> to vector<32x32xf32>
    %cst_67 = arith.constant dense<0.000000e+00> : vector<128x32xf32>
    %106 = tpu.matmul %103, %105, %cst_67 {dimension_numbers = #tpu.dot_dimension_numbers<[1], [0], [0], [1], [0, 0, 1, 1], [], []>} : vector<128x32xf32>, vector<32x32xf32>, vector<128x32xf32> -> vector<128x32xf32>
    %107 = arith.addf %96, %106 : vector<128x32xf32>
    %c40 = arith.constant 40 : index
    %c0_68 = arith.constant 0 : index
    %108 = vector.load %arg9[%c40, %c0_68] : memref<304x32xf32, #tpu.memory_space<vmem>>, vector<128x32xf32>
    %c7_69 = arith.constant 7 : index
    %c0_70 = arith.constant 0 : index
    %c0_71 = arith.constant 0 : index
    %109 = vector.load %arg3[%c7_69, %c0_70, %c0_71] : memref<9x32x32xf32, #tpu.memory_space<vmem>>, vector<1x32x32xf32>
    %110 = vector.shape_cast %109 : vector<1x32x32xf32> to vector<32x32xf32>
    %cst_72 = arith.constant dense<0.000000e+00> : vector<128x32xf32>
    %111 = tpu.matmul %108, %110, %cst_72 {dimension_numbers = #tpu.dot_dimension_numbers<[1], [0], [0], [1], [0, 0, 1, 1], [], []>} : vector<128x32xf32>, vector<32x32xf32>, vector<128x32xf32> -> vector<128x32xf32>
    %112 = arith.addf %107, %111 : vector<128x32xf32>
    %c41 = arith.constant 41 : index
    %c0_73 = arith.constant 0 : index
    %113 = vector.load %arg9[%c41, %c0_73] : memref<304x32xf32, #tpu.memory_space<vmem>>, vector<128x32xf32>
    %c15_i32_74 = arith.constant 15 : i32
    %114 = vector.broadcast %c15_i32_74 : i32 to vector<128x1xi32>
    %115 = arith.cmpi slt, %41, %114 : vector<128x1xi32>
    %cst_75 = arith.constant 0.000000e+00 : f32
    %116 = vector.shape_cast %115 : vector<128x1xi1> to vector<128x1xi1>
    %117 = vector.broadcast %116 : vector<128x1xi1> to vector<128x32xi1>
    %118 = vector.broadcast %cst_75 : f32 to vector<128x32xf32>
    %119 = arith.select %117, %113, %118 : vector<128x32xi1>, vector<128x32xf32>
    %c8_76 = arith.constant 8 : index
    %c0_77 = arith.constant 0 : index
    %c0_78 = arith.constant 0 : index
    %120 = vector.load %arg3[%c8_76, %c0_77, %c0_78] : memref<9x32x32xf32, #tpu.memory_space<vmem>>, vector<1x32x32xf32>
    %121 = vector.shape_cast %120 : vector<1x32x32xf32> to vector<32x32xf32>
    %cst_79 = arith.constant dense<0.000000e+00> : vector<128x32xf32>
    %122 = tpu.matmul %119, %121, %cst_79 {dimension_numbers = #tpu.dot_dimension_numbers<[1], [0], [0], [1], [0, 0, 1, 1], [], []>} : vector<128x32xf32>, vector<32x32xf32>, vector<128x32xf32> -> vector<128x32xf32>
    %123 = arith.addf %112, %122 : vector<128x32xf32>
    %124 = vector.broadcast %5 : vector<1x32xf32> to vector<128x32xf32>
    %125 = arith.addf %123, %124 : vector<128x32xf32>
    %cst_80 = arith.constant 0.000000e+00 : f32
    %126 = vector.broadcast %cst_80 : f32 to vector<128x32xf32>
    %127 = arith.maximumf %125, %126 : vector<128x32xf32>
    %cst_81 = arith.constant dense<0.000000e+00> : vector<128x128xf32>
    %128 = tpu.matmul %127, %3, %cst_81 {dimension_numbers = #tpu.dot_dimension_numbers<[1], [0], [0], [1], [0, 0, 1, 1], [], []>} : vector<128x32xf32>, vector<32x128xf32>, vector<128x128xf32> -> vector<128x128xf32>
    %129 = vector.broadcast %6 : vector<1x128xf32> to vector<128x128xf32>
    %130 = arith.addf %128, %129 : vector<128x128xf32>
    %c0_82 = arith.constant 0 : index
    %c0_83 = arith.constant 0 : index
    %c0_84 = arith.constant 0 : index
    %c0_85 = arith.constant 0 : index
    %131 = vector.load %arg1[%c0_82, %c0_83, %c0_84, %c0_85] : memref<1x16x16x128xf32, #tpu.memory_space<vmem>>, vector<1x8x16x128xf32>
    %132 = vector.shape_cast %131 : vector<1x8x16x128xf32> to vector<8x16x128xf32>
    %133 = vector.shape_cast %132 : vector<8x16x128xf32> to vector<128x128xf32>
    %134 = arith.addf %130, %133 : vector<128x128xf32>
    %cst_86 = arith.constant 0.000000e+00 : f32
    %135 = vector.broadcast %cst_86 : f32 to vector<128x128xf32>
    %136 = arith.maximumf %134, %135 : vector<128x128xf32>
    %137 = vector.shape_cast %136 : vector<128x128xf32> to vector<8x16x128xf32>
    %c0_87 = arith.constant 0 : index
    %c0_88 = arith.constant 0 : index
    %c0_89 = arith.constant 0 : index
    %c0_90 = arith.constant 0 : index
    %138 = vector.load %arg8[%c0_87, %c0_88, %c0_89, %c0_90] : memref<1x16x16x128xf32, #tpu.memory_space<vmem>>, vector<1x8x16x128xf32>
    %139 = vector.shape_cast %138 : vector<1x8x16x128xf32> to vector<8x16x128xf32>
    %140 = vector.shape_cast %137 : vector<8x16x128xf32> to vector<1x8x16x128xf32>
    tpu.vector_store %arg8[%c0_87, %c0_88, %c0_89, %c0_90], %140 {strides = array<i32>} : memref<1x16x16x128xf32, #tpu.memory_space<vmem>>, vector<1x8x16x128xf32>,
    %cst_91 = arith.constant 0.000000e+00 : f32
    %141 = vector.broadcast %cst_91 : f32 to vector<128x32xf32>
    %c135 = arith.constant 135 : index
    %c0_92 = arith.constant 0 : index
    %142 = vector.load %arg9[%c135, %c0_92] : memref<304x32xf32, #tpu.memory_space<vmem>>, vector<128x32xf32>
    %c0_i32_93 = arith.constant 0 : i32
    %143 = vector.broadcast %c0_i32_93 : i32 to vector<128x1xi32>
    %144 = arith.cmpi sgt, %41, %143 : vector<128x1xi32>
    %cst_94 = arith.constant 0.000000e+00 : f32
    %145 = vector.shape_cast %144 : vector<128x1xi1> to vector<128x1xi1>
    %146 = vector.broadcast %145 : vector<128x1xi1> to vector<128x32xi1>
    %147 = vector.broadcast %cst_94 : f32 to vector<128x32xf32>
    %148 = arith.select %146, %142, %147 : vector<128x32xi1>, vector<128x32xf32>
    %c0_95 = arith.constant 0 : index
    %c0_96 = arith.constant 0 : index
    %c0_97 = arith.constant 0 : index
    %149 = vector.load %arg3[%c0_95, %c0_96, %c0_97] : memref<9x32x32xf32, #tpu.memory_space<vmem>>, vector<1x32x32xf32>
    %150 = vector.shape_cast %149 : vector<1x32x32xf32> to vector<32x32xf32>
    %cst_98 = arith.constant dense<0.000000e+00> : vector<128x32xf32>
    %151 = tpu.matmul %148, %150, %cst_98 {dimension_numbers = #tpu.dot_dimension_numbers<[1], [0], [0], [1], [0, 0, 1, 1], [], []>} : vector<128x32xf32>, vector<32x32xf32>, vector<128x32xf32> -> vector<128x32xf32>
    %152 = arith.addf %141, %151 : vector<128x32xf32>
    %c136 = arith.constant 136 : index
    %c0_99 = arith.constant 0 : index
    %153 = vector.load %arg9[%c136, %c0_99] : memref<304x32xf32, #tpu.memory_space<vmem>>, vector<128x32xf32>
    %c1_100 = arith.constant 1 : index
    %c0_101 = arith.constant 0 : index
    %c0_102 = arith.constant 0 : index
    %154 = vector.load %arg3[%c1_100, %c0_101, %c0_102] : memref<9x32x32xf32, #tpu.memory_space<vmem>>, vector<1x32x32xf32>
    %155 = vector.shape_cast %154 : vector<1x32x32xf32> to vector<32x32xf32>
    %cst_103 = arith.constant dense<0.000000e+00> : vector<128x32xf32>
    %156 = tpu.matmul %153, %155, %cst_103 {dimension_numbers = #tpu.dot_dimension_numbers<[1], [0], [0], [1], [0, 0, 1, 1], [], []>} : vector<128x32xf32>, vector<32x32xf32>, vector<128x32xf32> -> vector<128x32xf32>
    %157 = arith.addf %152, %156 : vector<128x32xf32>
    %c137 = arith.constant 137 : index
    %c0_104 = arith.constant 0 : index
    %158 = vector.load %arg9[%c137, %c0_104] : memref<304x32xf32, #tpu.memory_space<vmem>>, vector<128x32xf32>
    %c15_i32_105 = arith.constant 15 : i32
    %159 = vector.broadcast %c15_i32_105 : i32 to vector<128x1xi32>
    %160 = arith.cmpi slt, %41, %159 : vector<128x1xi32>
    %cst_106 = arith.constant 0.000000e+00 : f32
    %161 = vector.shape_cast %160 : vector<128x1xi1> to vector<128x1xi1>
    %162 = vector.broadcast %161 : vector<128x1xi1> to vector<128x32xi1>
    %163 = vector.broadcast %cst_106 : f32 to vector<128x32xf32>
    %164 = arith.select %162, %158, %163 : vector<128x32xi1>, vector<128x32xf32>
    %c2_107 = arith.constant 2 : index
    %c0_108 = arith.constant 0 : index
    %c0_109 = arith.constant 0 : index
    %165 = vector.load %arg3[%c2_107, %c0_108, %c0_109] : memref<9x32x32xf32, #tpu.memory_space<vmem>>, vector<1x32x32xf32>
    %166 = vector.shape_cast %165 : vector<1x32x32xf32> to vector<32x32xf32>
    %cst_110 = arith.constant dense<0.000000e+00> : vector<128x32xf32>
    %167 = tpu.matmul %164, %166, %cst_110 {dimension_numbers = #tpu.dot_dimension_numbers<[1], [0], [0], [1], [0, 0, 1, 1], [], []>} : vector<128x32xf32>, vector<32x32xf32>, vector<128x32xf32> -> vector<128x32xf32>
    %168 = arith.addf %157, %167 : vector<128x32xf32>
    %c151 = arith.constant 151 : index
    %c0_111 = arith.constant 0 : index
    %169 = vector.load %arg9[%c151, %c0_111] : memref<304x32xf32, #tpu.memory_space<vmem>>, vector<128x32xf32>
    %c0_i32_112 = arith.constant 0 : i32
    %170 = vector.broadcast %c0_i32_112 : i32 to vector<128x1xi32>
    %171 = arith.cmpi sgt, %41, %170 : vector<128x1xi32>
    %cst_113 = arith.constant 0.000000e+00 : f32
    %172 = vector.shape_cast %171 : vector<128x1xi1> to vector<128x1xi1>
    %173 = vector.broadcast %172 : vector<128x1xi1> to vector<128x32xi1>
    %174 = vector.broadcast %cst_113 : f32 to vector<128x32xf32>
    %175 = arith.select %173, %169, %174 : vector<128x32xi1>, vector<128x32xf32>
    %c3_114 = arith.constant 3 : index
    %c0_115 = arith.constant 0 : index
    %c0_116 = arith.constant 0 : index
    %176 = vector.load %arg3[%c3_114, %c0_115, %c0_116] : memref<9x32x32xf32, #tpu.memory_space<vmem>>, vector<1x32x32xf32>
    %177 = vector.shape_cast %176 : vector<1x32x32xf32> to vector<32x32xf32>
    %cst_117 = arith.constant dense<0.000000e+00> : vector<128x32xf32>
    %178 = tpu.matmul %175, %177, %cst_117 {dimension_numbers = #tpu.dot_dimension_numbers<[1], [0], [0], [1], [0, 0, 1, 1], [], []>} : vector<128x32xf32>, vector<32x32xf32>, vector<128x32xf32> -> vector<128x32xf32>
    %179 = arith.addf %168, %178 : vector<128x32xf32>
    %c152_118 = arith.constant 152 : index
    %c0_119 = arith.constant 0 : index
    %180 = vector.load %arg9[%c152_118, %c0_119] : memref<304x32xf32, #tpu.memory_space<vmem>>, vector<128x32xf32>
    %c4_120 = arith.constant 4 : index
    %c0_121 = arith.constant 0 : index
    %c0_122 = arith.constant 0 : index
    %181 = vector.load %arg3[%c4_120, %c0_121, %c0_122] : memref<9x32x32xf32, #tpu.memory_space<vmem>>, vector<1x32x32xf32>
    %182 = vector.shape_cast %181 : vector<1x32x32xf32> to vector<32x32xf32>
    %cst_123 = arith.constant dense<0.000000e+00> : vector<128x32xf32>
    %183 = tpu.matmul %180, %182, %cst_123 {dimension_numbers = #tpu.dot_dimension_numbers<[1], [0], [0], [1], [0, 0, 1, 1], [], []>} : vector<128x32xf32>, vector<32x32xf32>, vector<128x32xf32> -> vector<128x32xf32>
    %184 = arith.addf %179, %183 : vector<128x32xf32>
    %c153 = arith.constant 153 : index
    %c0_124 = arith.constant 0 : index
    %185 = vector.load %arg9[%c153, %c0_124] : memref<304x32xf32, #tpu.memory_space<vmem>>, vector<128x32xf32>
    %c15_i32_125 = arith.constant 15 : i32
    %186 = vector.broadcast %c15_i32_125 : i32 to vector<128x1xi32>
    %187 = arith.cmpi slt, %41, %186 : vector<128x1xi32>
    %cst_126 = arith.constant 0.000000e+00 : f32
    %188 = vector.shape_cast %187 : vector<128x1xi1> to vector<128x1xi1>
    %189 = vector.broadcast %188 : vector<128x1xi1> to vector<128x32xi1>
    %190 = vector.broadcast %cst_126 : f32 to vector<128x32xf32>
    %191 = arith.select %189, %185, %190 : vector<128x32xi1>, vector<128x32xf32>
    %c5_127 = arith.constant 5 : index
    %c0_128 = arith.constant 0 : index
    %c0_129 = arith.constant 0 : index
    %192 = vector.load %arg3[%c5_127, %c0_128, %c0_129] : memref<9x32x32xf32, #tpu.memory_space<vmem>>, vector<1x32x32xf32>
    %193 = vector.shape_cast %192 : vector<1x32x32xf32> to vector<32x32xf32>
    %cst_130 = arith.constant dense<0.000000e+00> : vector<128x32xf32>
    %194 = tpu.matmul %191, %193, %cst_130 {dimension_numbers = #tpu.dot_dimension_numbers<[1], [0], [0], [1], [0, 0, 1, 1], [], []>} : vector<128x32xf32>, vector<32x32xf32>, vector<128x32xf32> -> vector<128x32xf32>
    %195 = arith.addf %184, %194 : vector<128x32xf32>
    %c167 = arith.constant 167 : index
    %c0_131 = arith.constant 0 : index
    %196 = vector.load %arg9[%c167, %c0_131] : memref<304x32xf32, #tpu.memory_space<vmem>>, vector<128x32xf32>
    %c0_i32_132 = arith.constant 0 : i32
    %197 = vector.broadcast %c0_i32_132 : i32 to vector<128x1xi32>
    %198 = arith.cmpi sgt, %41, %197 : vector<128x1xi32>
    %cst_133 = arith.constant 0.000000e+00 : f32
    %199 = vector.shape_cast %198 : vector<128x1xi1> to vector<128x1xi1>
    %200 = vector.broadcast %199 : vector<128x1xi1> to vector<128x32xi1>
    %201 = vector.broadcast %cst_133 : f32 to vector<128x32xf32>
    %202 = arith.select %200, %196, %201 : vector<128x32xi1>, vector<128x32xf32>
    %c6_134 = arith.constant 6 : index
    %c0_135 = arith.constant 0 : index
    %c0_136 = arith.constant 0 : index
    %203 = vector.load %arg3[%c6_134, %c0_135, %c0_136] : memref<9x32x32xf32, #tpu.memory_space<vmem>>, vector<1x32x32xf32>
    %204 = vector.shape_cast %203 : vector<1x32x32xf32> to vector<32x32xf32>
    %cst_137 = arith.constant dense<0.000000e+00> : vector<128x32xf32>
    %205 = tpu.matmul %202, %204, %cst_137 {dimension_numbers = #tpu.dot_dimension_numbers<[1], [0], [0], [1], [0, 0, 1, 1], [], []>} : vector<128x32xf32>, vector<32x32xf32>, vector<128x32xf32> -> vector<128x32xf32>
    %206 = arith.addf %195, %205 : vector<128x32xf32>
    %c168 = arith.constant 168 : index
    %c0_138 = arith.constant 0 : index
    %207 = vector.load %arg9[%c168, %c0_138] : memref<304x32xf32, #tpu.memory_space<vmem>>, vector<128x32xf32>
    %c7_139 = arith.constant 7 : index
    %c0_140 = arith.constant 0 : index
    %c0_141 = arith.constant 0 : index
    %208 = vector.load %arg3[%c7_139, %c0_140, %c0_141] : memref<9x32x32xf32, #tpu.memory_space<vmem>>, vector<1x32x32xf32>
    %209 = vector.shape_cast %208 : vector<1x32x32xf32> to vector<32x32xf32>
    %cst_142 = arith.constant dense<0.000000e+00> : vector<128x32xf32>
    %210 = tpu.matmul %207, %209, %cst_142 {dimension_numbers = #tpu.dot_dimension_numbers<[1], [0], [0], [1], [0, 0, 1, 1], [], []>} : vector<128x32xf32>, vector<32x32xf32>, vector<128x32xf32> -> vector<128x32xf32>
    %211 = arith.addf %206, %210 : vector<128x32xf32>
    %c169 = arith.constant 169 : index
    %c0_143 = arith.constant 0 : index
    %212 = vector.load %arg9[%c169, %c0_143] : memref<304x32xf32, #tpu.memory_space<vmem>>, vector<128x32xf32>
    %c15_i32_144 = arith.constant 15 : i32
    %213 = vector.broadcast %c15_i32_144 : i32 to vector<128x1xi32>
    %214 = arith.cmpi slt, %41, %213 : vector<128x1xi32>
    %cst_145 = arith.constant 0.000000e+00 : f32
    %215 = vector.shape_cast %214 : vector<128x1xi1> to vector<128x1xi1>
    %216 = vector.broadcast %215 : vector<128x1xi1> to vector<128x32xi1>
    %217 = vector.broadcast %cst_145 : f32 to vector<128x32xf32>
    %218 = arith.select %216, %212, %217 : vector<128x32xi1>, vector<128x32xf32>
    %c8_146 = arith.constant 8 : index
    %c0_147 = arith.constant 0 : index
    %c0_148 = arith.constant 0 : index
    %219 = vector.load %arg3[%c8_146, %c0_147, %c0_148] : memref<9x32x32xf32, #tpu.memory_space<vmem>>, vector<1x32x32xf32>
    %220 = vector.shape_cast %219 : vector<1x32x32xf32> to vector<32x32xf32>
    %cst_149 = arith.constant dense<0.000000e+00> : vector<128x32xf32>
    %221 = tpu.matmul %218, %220, %cst_149 {dimension_numbers = #tpu.dot_dimension_numbers<[1], [0], [0], [1], [0, 0, 1, 1], [], []>} : vector<128x32xf32>, vector<32x32xf32>, vector<128x32xf32> -> vector<128x32xf32>
    %222 = arith.addf %211, %221 : vector<128x32xf32>
    %223 = vector.broadcast %5 : vector<1x32xf32> to vector<128x32xf32>
    %224 = arith.addf %222, %223 : vector<128x32xf32>
    %cst_150 = arith.constant 0.000000e+00 : f32
    %225 = vector.broadcast %cst_150 : f32 to vector<128x32xf32>
    %226 = arith.maximumf %224, %225 : vector<128x32xf32>
    %cst_151 = arith.constant dense<0.000000e+00> : vector<128x128xf32>
    %227 = tpu.matmul %226, %3, %cst_151 {dimension_numbers = #tpu.dot_dimension_numbers<[1], [0], [0], [1], [0, 0, 1, 1], [], []>} : vector<128x32xf32>, vector<32x128xf32>, vector<128x128xf32> -> vector<128x128xf32>
    %228 = vector.broadcast %6 : vector<1x128xf32> to vector<128x128xf32>
    %229 = arith.addf %227, %228 : vector<128x128xf32>
    %c0_152 = arith.constant 0 : index
    %c8_153 = arith.constant 8 : index
    %c0_154 = arith.constant 0 : index
    %c0_155 = arith.constant 0 : index
    %230 = vector.load %arg1[%c0_152, %c8_153, %c0_154, %c0_155] : memref<1x16x16x128xf32, #tpu.memory_space<vmem>>, vector<1x8x16x128xf32>
    %231 = vector.shape_cast %230 : vector<1x8x16x128xf32> to vector<8x16x128xf32>
    %232 = vector.shape_cast %231 : vector<8x16x128xf32> to vector<128x128xf32>
    %233 = arith.addf %229, %232 : vector<128x128xf32>
    %cst_156 = arith.constant 0.000000e+00 : f32
    %234 = vector.broadcast %cst_156 : f32 to vector<128x128xf32>
    %235 = arith.maximumf %233, %234 : vector<128x128xf32>
    %236 = vector.shape_cast %235 : vector<128x128xf32> to vector<8x16x128xf32>
    %c0_157 = arith.constant 0 : index
    %c8_158 = arith.constant 8 : index
    %c0_159 = arith.constant 0 : index
    %c0_160 = arith.constant 0 : index
    %237 = vector.load %arg8[%c0_157, %c8_158, %c0_159, %c0_160] : memref<1x16x16x128xf32, #tpu.memory_space<vmem>>, vector<1x8x16x128xf32>
    %238 = vector.shape_cast %237 : vector<1x8x16x128xf32> to vector<8x16x128xf32>
    %239 = vector.shape_cast %236 : vector<8x16x128xf32> to vector<1x8x16x128xf32>
    tpu.vector_store %arg8[%c0_157, %c8_158, %c0_159, %c0_160], %239 {strides = array<i32>} : memref<1x16x16x128xf32, #tpu.memory_space<vmem>>, vector<1x8x16x128xf32>,
    return
  }
  func.func @transform_0(%arg0: i32) -> (i32, i32, i32, i32) {
    %c0_i32 = arith.constant 0 : i32
    %c0_i32_0 = arith.constant 0 : i32
    %c0_i32_1 = arith.constant 0 : i32
    %c0_i32_2 = arith.constant 0 : i32
    return %arg0, %c0_i32, %c0_i32_0, %c0_i32_1 : i32, i32, i32, i32
  }
  func.func @transform_1(%arg0: i32) -> (i32, i32) {
    %c0_i32 = arith.constant 0 : i32
    %c0_i32_0 = arith.constant 0 : i32
    %c0_i32_1 = arith.constant 0 : i32
    return %c0_i32, %c0_i32_0 : i32, i32
  }
  func.func @transform_2(%arg0: i32) -> (i32, i32, i32) {
    %c0_i32 = arith.constant 0 : i32
    %c0_i32_0 = arith.constant 0 : i32
    %c0_i32_1 = arith.constant 0 : i32
    %c0_i32_2 = arith.constant 0 : i32
    return %c0_i32, %c0_i32_0, %c0_i32_1 : i32, i32, i32
  }
  func.func @transform_3(%arg0: i32) -> (i32, i32) {
    %c0_i32 = arith.constant 0 : i32
    %c0_i32_0 = arith.constant 0 : i32
    %c0_i32_1 = arith.constant 0 : i32
    return %c0_i32, %c0_i32_0 : i32, i32
  }
  func.func @transform_4(%arg0: i32) -> (i32, i32) {
    %c0_i32 = arith.constant 0 : i32
    %c0_i32_0 = arith.constant 0 : i32
    %c0_i32_1 = arith.constant 0 : i32
    return %c0_i32, %c0_i32_0 : i32, i32
  }
  func.func @transform_5(%arg0: i32) -> (i32, i32) {
    %c0_i32 = arith.constant 0 : i32
    %c0_i32_0 = arith.constant 0 : i32
    %c0_i32_1 = arith.constant 0 : i32
    return %c0_i32, %c0_i32_0 : i32, i32
  }
  func.func @transform_6(%arg0: i32) -> (i32, i32) {
    %c0_i32 = arith.constant 0 : i32
    %c0_i32_0 = arith.constant 0 : i32
    %c0_i32_1 = arith.constant 0 : i32
    return %c0_i32, %c0_i32_0 : i32, i32
  }
  func.func @transform_7(%arg0: i32) -> (i32, i32, i32, i32) {
    %c0_i32 = arith.constant 0 : i32
    %c0_i32_0 = arith.constant 0 : i32
    %c0_i32_1 = arith.constant 0 : i32
    %c0_i32_2 = arith.constant 0 : i32
    return %arg0, %c0_i32, %c0_i32_0, %c0_i32_1 : i32, i32, i32, i32
  }
}

</mosaic_0001>

<llo_original>
// kernel: _lambda_.1
$region0: #{_lambda_.1}
  #allocation0 [shape = 'u32[]', space=smem, size = 0x4, offset = 0x4, fixed_abs, tag = 'smem constant byte address 0x4 - core index']
  #allocation1 [shape = 'u32[144,128]{1,0:T(1,128)}', space=vmem, size = 0x12000, scoped, tag = 'internal scratch']
  #allocation2 [shape = 'f32[304,32]{1,0:T(8,128)}', space=vmem, size = 0x26000, scoped, tag = 'scratch operand']
  %s0 = inlined_call_operand.hbm [shape: f32[2,16,16,128], index: 0, kind: input, shape index: {}]
  %s1 = inlined_call_operand.hbm [shape: f32[128,32], index: 1, kind: input, shape index: {}]
  %s2 = inlined_call_operand.hbm [shape: f32[9,32,32], index: 2, kind: input, shape index: {}]
  %s3 = inlined_call_operand.hbm [shape: f32[32,128], index: 3, kind: input, shape index: {}]
  %s4 = inlined_call_operand.vmem [shape: f32[1,32], index: 4, kind: input, shape index: {}]
  %s5 = inlined_call_operand.vmem [shape: f32[1,32], index: 5, kind: input, shape index: {}]
  %s6 = inlined_call_operand.vmem [shape: f32[1,128], index: 6, kind: input, shape index: {}]
  %s7 = inlined_call_operand.hbm [shape: f32[2,16,16,128], index: 7, kind: output, shape index: {}]
  %s8 = sld [smem:[#allocation0]]
  $region77: #{_lambda_.1} parent=0
    _
  %s10 = ssub.s32 1, %s8
  %s11 = scalar_select 0, %s10, %s8
  $region1: #{_lambda_.1} parent=0
    #allocation3 [shape = 'u8[262144]{0}', space=vmem, size = 0x40000, scoped, tag = 'input window, operand 0']
    #allocation4 [shape = 's32[2]{0}', space=sflag, size = 0x8, scoped, tag = 'scoped memory for _lambda_.1']
    #allocation5 [shape = 's32[2]{0}', space=sflag, size = 0x8, scoped, tag = 'scoped memory for _lambda_.1']
    #allocation6 [shape = 'u8[65536]{0}', space=vmem, size = 0x10000, scoped, tag = 'input window, operand 1, single buffered']
    #allocation7 [shape = 's32[1]{0}', space=sflag, size = 0x4, scoped, tag = 'scoped memory for _lambda_.1']
    #allocation8 [shape = 'u8[147456]{0}', space=vmem, size = 0x24000, scoped, tag = 'input window, operand 2, single buffered']
    #allocation9 [shape = 'u8[16384]{0}', space=vmem, size = 0x4000, scoped, tag = 'input window, operand 3, single buffered']
    #allocation10 [shape = 's32[1]{0}', space=sflag, size = 0x4, scoped, tag = 'scoped memory for _lambda_.1']
    #allocation11 [shape = 'u8[262144]{0}', space=vmem, size = 0x40000, scoped, tag = 'output window, operand 0']
    %12 = vsyncpa [#allocation4], 0
    %s13 = scalar_lea.sflag [#allocation4], 1
    %14 = vsyncpa %s13, 0
    %15 = vsyncpa [#allocation7], 0
    %16 = vsyncpa [#allocation10], 0
    %17 = vsyncpa [#allocation5], 0
    %s18 = scalar_lea.sflag [#allocation5], 1
    %19 = vsyncpa %s18, 0
    loop: start=0, step=1, limit=4
    $region2: #{_lambda_.1} parent=1 // loop_pre_header
      _
    $region3: #{_lambda_.1} parent=1 // loop_header
      %s21 = sphi 0, %s25
      %p22 = scmp.ge.s32.totalorder %s21, 4
      %s31 = sphi 0, %s33
      %s34 = sphi 0, %s31
      %s35 = sphi 0, %s34
      %s51 = sphi 0, %s35
      %s55 = sphi 0, %s55
      %s57 = sphi 0, %s55
      %s58 = sphi 0, %s57
      %s72 = sphi 0, %s58
      %s76 = sphi 0, %s76
      %s78 = sphi 0, %s76
      %s79 = sphi 0, %s78
      %s93 = sphi 0, %s79
      %s97 = sphi 0, %s97
      %s99 = sphi 0, %s97
      %s100 = sphi 0, %s99
      %s114 = sphi 0, %s100
      %s118 = sphi 0, %s118
      %s120 = sphi 0, %s118
      %s121 = sphi 0, %s120
      %s135 = sphi 0, %s121
      %s139 = sphi 0, %s139
      %s141 = sphi 0, %s139
      %s142 = sphi 0, %s141
      %s156 = sphi 0, %s142
      %s160 = sphi 0, %s160
      %s162 = sphi 0, %s160
      %s163 = sphi 0, %s162
      %s177 = sphi 0, %s163
      %s183 = sphi 0, %s185
      %s186 = sphi 0, %s183
      %s187 = sphi 0, %s186
      %s203 = sphi 0, %s187
    $region4: #{_lambda_.1} parent=1 // loop_header_branch
      %24 = sbr.rel (%p22) target = $region8
    $region5: #{_lambda_.1} parent=1 // loop_body
      %s26 = ssub.s32 %s21, 1
      %s27 = ssub.s32 %s21, 2
      %s28 = sadd.s32 %s21, 1
      %s29 = ssub.s32 %s21, %s28
      %p30 = scmp.eq.s32.totalorder %s29, 0
      %s32 = sadd.s32 %s31, 1
      %s33 = scalar_select %p30, %s31, %s32
      %p36 = pneg %p30
      %p37 = scmp.eq.s32.totalorder %s21, 1
      %p38 = por %p36, %p37
      %p39 = scmp.ne.s32.totalorder %s31, %s34
      %p40 = scmp.eq.s32.totalorder %s21, 0
      %p41 = por %p39, %p40
      %p42 = scmp.ne.s32.totalorder %s31, %s34
      %p43 = scmp.eq.s32.totalorder %s26, 1
      %p44 = por %p42, %p43
      %p45 = scmp.ne.s32.totalorder %s34, %s35
      %p46 = scmp.eq.s32.totalorder %s26, 0
      %p47 = por %p45, %p46
      %p48 = scmp.ne.s32.totalorder %s34, %s35
      %p49 = scmp.eq.s32.totalorder %s27, 1
      %p50 = por %p48, %p49
      %p52 = scmp.ne.s32.totalorder %s35, %s51
      %p53 = scmp.eq.s32.totalorder %s27, 0
      %p54 = por %p52, %p53
      %s56 = sadd.s32 %s55, 1
      %p59 = scmp.eq.s32.totalorder %s21, 1
      %p60 = scmp.ne.s32.totalorder %s55, %s57
      %p61 = scmp.eq.s32.totalorder %s21, 0
      %p62 = por %p60, %p61
      %p63 = scmp.ne.s32.totalorder %s55, %s57
      %p64 = scmp.eq.s32.totalorder %s26, 1
      %p65 = por %p63, %p64
      %p66 = scmp.ne.s32.totalorder %s57, %s58
      %p67 = scmp.eq.s32.totalorder %s26, 0
      %p68 = por %p66, %p67
      %p69 = scmp.ne.s32.totalorder %s57, %s58
      %p70 = scmp.eq.s32.totalorder %s27, 1
      %p71 = por %p69, %p70
      %p73 = scmp.ne.s32.totalorder %s58, %s72
      %p74 = scmp.eq.s32.totalorder %s27, 0
      %p75 = por %p73, %p74
      %s77 = sadd.s32 %s76, 1
      %p80 = scmp.eq.s32.totalorder %s21, 1
      %p81 = scmp.ne.s32.totalorder %s76, %s78
      %p82 = scmp.eq.s32.totalorder %s21, 0
      %p83 = por %p81, %p82
      %p84 = scmp.ne.s32.totalorder %s76, %s78
      %p85 = scmp.eq.s32.totalorder %s26, 1
      %p86 = por %p84, %p85
      %p87 = scmp.ne.s32.totalorder %s78, %s79
      %p88 = scmp.eq.s32.totalorder %s26, 0
      %p89 = por %p87, %p88
      %p90 = scmp.ne.s32.totalorder %s78, %s79
      %p91 = scmp.eq.s32.totalorder %s27, 1
      %p92 = por %p90, %p91
      %p94 = scmp.ne.s32.totalorder %s79, %s93
      %p95 = scmp.eq.s32.totalorder %s27, 0
      %p96 = por %p94, %p95
      %s98 = sadd.s32 %s97, 1
      %p101 = scmp.eq.s32.totalorder %s21, 1
      %p102 = scmp.ne.s32.totalorder %s97, %s99
      %p103 = scmp.eq.s32.totalorder %s21, 0
      %p104 = por %p102, %p103
      %p105 = scmp.ne.s32.totalorder %s97, %s99
      %p106 = scmp.eq.s32.totalorder %s26, 1
      %p107 = por %p105, %p106
      %p108 = scmp.ne.s32.totalorder %s99, %s100
      %p109 = scmp.eq.s32.totalorder %s26, 0
      %p110 = por %p108, %p109
      %p111 = scmp.ne.s32.totalorder %s99, %s100
      %p112 = scmp.eq.s32.totalorder %s27, 1
      %p113 = por %p111, %p112
      %p115 = scmp.ne.s32.totalorder %s100, %s114
      %p116 = scmp.eq.s32.totalorder %s27, 0
      %p117 = por %p115, %p116
      %s119 = sadd.s32 %s118, 1
      %p122 = scmp.eq.s32.totalorder %s21, 1
      %p123 = scmp.ne.s32.totalorder %s118, %s120
      %p124 = scmp.eq.s32.totalorder %s21, 0
      %p125 = por %p123, %p124
      %p126 = scmp.ne.s32.totalorder %s118, %s120
      %p127 = scmp.eq.s32.totalorder %s26, 1
      %p128 = por %p126, %p127
      %p129 = scmp.ne.s32.totalorder %s120, %s121
      %p130 = scmp.eq.s32.totalorder %s26, 0
      %p131 = por %p129, %p130
      %p132 = scmp.ne.s32.totalorder %s120, %s121
      %p133 = scmp.eq.s32.totalorder %s27, 1
      %p134 = por %p132, %p133
      %p136 = scmp.ne.s32.totalorder %s121, %s135
      %p137 = scmp.eq.s32.totalorder %s27, 0
      %p138 = por %p136, %p137
      %s140 = sadd.s32 %s139, 1
      %p143 = scmp.eq.s32.totalorder %s21, 1
      %p144 = scmp.ne.s32.totalorder %s139, %s141
      %p145 = scmp.eq.s32.totalorder %s21, 0
      %p146 = por %p144, %p145
      %p147 = scmp.ne.s32.totalorder %s139, %s141
      %p148 = scmp.eq.s32.totalorder %s26, 1
      %p149 = por %p147, %p148
      %p150 = scmp.ne.s32.totalorder %s141, %s142
      %p151 = scmp.eq.s32.totalorder %s26, 0
      %p152 = por %p150, %p151
      %p153 = scmp.ne.s32.totalorder %s141, %s142
      %p154 = scmp.eq.s32.totalorder %s27, 1
      %p155 = por %p153, %p154
      %p157 = scmp.ne.s32.totalorder %s142, %s156
      %p158 = scmp.eq.s32.totalorder %s27, 0
      %p159 = por %p157, %p158
      %s161 = sadd.s32 %s160, 1
      %p164 = scmp.eq.s32.totalorder %s21, 1
      %p165 = scmp.ne.s32.totalorder %s160, %s162
      %p166 = scmp.eq.s32.totalorder %s21, 0
      %p167 = por %p165, %p166
      %p168 = scmp.ne.s32.totalorder %s160, %s162
      %p169 = scmp.eq.s32.totalorder %s26, 1
      %p170 = por %p168, %p169
      %p171 = scmp.ne.s32.totalorder %s162, %s163
      %p172 = scmp.eq.s32.totalorder %s26, 0
      %p173 = por %p171, %p172
      %p174 = scmp.ne.s32.totalorder %s162, %s163
      %p175 = scmp.eq.s32.totalorder %s27, 1
      %p176 = por %p174, %p175
      %p178 = scmp.ne.s32.totalorder %s163, %s177
      %p179 = scmp.eq.s32.totalorder %s27, 0
      %p180 = por %p178, %p179
      %s181 = ssub.s32 %s21, %s28
      %p182 = scmp.eq.s32.totalorder %s181, 0
      %s184 = sadd.s32 %s183, 1
      %s185 = scalar_select %p182, %s183, %s184
      %p188 = pneg %p182
      %p189 = scmp.eq.s32.totalorder %s21, 1
      %p190 = por %p188, %p189
      %p191 = scmp.ne.s32.totalorder %s183, %s186
      %p192 = scmp.eq.s32.totalorder %s21, 0
      %p193 = por %p191, %p192
      %p194 = scmp.ne.s32.totalorder %s183, %s186
      %p195 = scmp.eq.s32.totalorder %s26, 1
      %p196 = por %p194, %p195
      %p197 = scmp.ne.s32.totalorder %s186, %s187
      %p198 = scmp.eq.s32.totalorder %s26, 0
      %p199 = por %p197, %p198
      %p200 = scmp.ne.s32.totalorder %s186, %s187
      %p201 = scmp.eq.s32.totalorder %s27, 1
      %p202 = por %p200, %p201
      %p204 = scmp.ne.s32.totalorder %s187, %s203
      %p205 = scmp.eq.s32.totalorder %s27, 0
      %p206 = por %p204, %p205
      %p207 = scmp.le.s32.totalorder 1, %s21
      %p208 = scmp.lt.s32.totalorder %s21, 3
      %p209 = pnand %p207, %p208
      %p210 = pneg %p209
      // Predicated region
      $region9: #{_lambda_.1} parent=5 // pred_check
        _
      $region10: #{_lambda_.1} parent=5 // pred_check_branch
        %212 = sbr.rel (%p209) target = $region12
      $region11: #{_lambda_.1} parent=5 // pred_region
        %s213 = ssub.s32 %s21, 1
        // Predicated region
        $region13: #{_lambda_.1} parent=11 // pred_check
          %p214 = pneg %p68
        $region14: #{_lambda_.1} parent=11 // pred_check_branch
          %216 = sbr.rel (%p214) target = $region16
        $region15: #{_lambda_.1} parent=11 // pred_region
          %s218 = ssub.s32 2048, 2048
          %219 = vsyncadd [#allocation7], %s218
          %s220 = sshll.u32 [#allocation6], 4
          %s221 = int_to_ptr.vmem [resolvable:$true] %s220
          %226 = dma.hbm_to_vmem [thread:$0]  %s1, 2048, %s221, [#allocation7], 128, 128, 8
        $region16: #{_lambda_.1} parent=11 // pred_fallthru
          _
        // Predicated region
        $region17: #{_lambda_.1} parent=11 // pred_check
          %p227 = pneg %p89
        $region18: #{_lambda_.1} parent=11 // pred_check_branch
          %229 = sbr.rel (%p227) target = $region20
        $region19: #{_lambda_.1} parent=11 // pred_region
          %s231 = ssub.s32 4608, 4608
          %232 = vsyncadd [#allocation7], %s231
          %s233 = sshll.u32 [#allocation8], 4
          %s234 = int_to_ptr.vmem [resolvable:$true] %s233
          %239 = dma.hbm_to_vmem [thread:$0]  %s2, 4608, %s234, [#allocation7], 128, 128, 8
        $region20: #{_lambda_.1} parent=11 // pred_fallthru
          _
        // Predicated region
        $region21: #{_lambda_.1} parent=11 // pred_check
          %p240 = pneg %p110
        $region22: #{_lambda_.1} parent=11 // pred_check_branch
          %242 = sbr.rel (%p240) target = $region24
        $region23: #{_lambda_.1} parent=11 // pred_region
          %s244 = ssub.s32 512, 512
          %245 = vsyncadd [#allocation10], %s244
          %s246 = sshll.u32 [#allocation9], 4
          %s247 = int_to_ptr.vmem [resolvable:$true] %s246
          %252 = dma.hbm_to_vmem [thread:$0]  %s3, 512, %s247, [#allocation10], 128, 128, 8
        $region24: #{_lambda_.1} parent=11 // pred_fallthru
          _
        // Predicated region
        $region25: #{_lambda_.1} parent=11 // pred_check
          %p253 = pneg %p131
        $region26: #{_lambda_.1} parent=11 // pred_check_branch
          %255 = sbr.rel (%p253) target = $region28
        $region27: #{_lambda_.1} parent=11 // pred_region
          _
        $region28: #{_lambda_.1} parent=11 // pred_fallthru
          _
        // Predicated region
        $region29: #{_lambda_.1} parent=11 // pred_check
          %p256 = pneg %p152
        $region30: #{_lambda_.1} parent=11 // pred_check_branch
          %258 = sbr.rel (%p256) target = $region32
        $region31: #{_lambda_.1} parent=11 // pred_region
          _
        $region32: #{_lambda_.1} parent=11 // pred_fallthru
          _
        // Predicated region
        $region33: #{_lambda_.1} parent=11 // pred_check
          %p259 = pneg %p173
        $region34: #{_lambda_.1} parent=11 // pred_check_branch
          %261 = sbr.rel (%p259) target = $region36
        $region35: #{_lambda_.1} parent=11 // pred_region
          _
        $region36: #{_lambda_.1} parent=11 // pred_fallthru
          _
      $region12: #{_lambda_.1} parent=5 // pred_fallthru
        _
      %p262 = scmp.lt.s32.totalorder %s21, 2
      // Predicated region
      $region37: #{_lambda_.1} parent=5 // pred_check
        %p263 = pneg %p262
      $region38: #{_lambda_.1} parent=5 // pred_check_branch
        %265 = sbr.rel (%p263) target = $region40
      $region39: #{_lambda_.1} parent=5 // pred_region
        // Predicated region
        $region41: #{_lambda_.1} parent=39 // pred_check
          %p266 = pneg %p41
        $region42: #{_lambda_.1} parent=39 // pred_check_branch
          %268 = sbr.rel (%p266) target = $region44
        $region43: #{_lambda_.1} parent=39 // pred_region
          %s269 = sand.u32 %s31, 1
          %s270 = scalar_lea.sflag [#allocation4], %s269
          %s271 = sand.u32 %s31, 1
          %s272 = smul.addr %s271, 256
          %s273 = scalar_lea.vmem [#allocation3], %s272
          %s275 = ssub.s32 4096, 4096
          %276 = vsyncadd %s270, %s275
          %s277 = smul.addr %s21, 32
          %s278 = smul.addr %s277, 128
          %s279 = scalar_lea.hbm %s0, %s278
          %s280 = sshll.u32 %s273, 4
          %s281 = int_to_ptr.vmem [resolvable:$true] %s280
          %286 = dma.hbm_to_vmem [thread:$0]  %s279, 4096, %s281, %s270, 128, 128, 8
        $region44: #{_lambda_.1} parent=39 // pred_fallthru
          _
      $region40: #{_lambda_.1} parent=5 // pred_fallthru
        _
      %p287 = scmp.le.s32.totalorder 1, %s21
      %p288 = scmp.lt.s32.totalorder %s21, 3
      %p289 = pnand %p287, %p288
      %p290 = pneg %p289
      // Predicated region
      $region45: #{_lambda_.1} parent=5 // pred_check
        _
      $region46: #{_lambda_.1} parent=5 // pred_check_branch
        %292 = sbr.rel (%p289) target = $region48
      $region47: #{_lambda_.1} parent=5 // pred_region
        %s293 = ssub.s32 %s21, 1
        %s294 = sand.u32 %s34, 1
        %s295 = scalar_lea.sflag [#allocation4], %s294
        %s296 = sand.u32 %s34, 1
        %s297 = smul.addr %s296, 256
        %s298 = scalar_lea.vmem [#allocation3], %s297
        // Predicated region
        $region49: #{_lambda_.1} parent=47 // pred_check
          %p299 = pneg %p47
        $region50: #{_lambda_.1} parent=47 // pred_check_branch
          %301 = sbr.rel (%p299) target = $region52
        $region51: #{_lambda_.1} parent=47 // pred_region
          %302 = dma.done %s295, 4096
        $region52: #{_lambda_.1} parent=47 // pred_fallthru
          _
        // Predicated region
        $region53: #{_lambda_.1} parent=47 // pred_check
          %p303 = pneg %p68
        $region54: #{_lambda_.1} parent=47 // pred_check_branch
          %305 = sbr.rel (%p303) target = $region56
        $region55: #{_lambda_.1} parent=47 // pred_region
          %306 = dma.done [#allocation7], 2048
        $region56: #{_lambda_.1} parent=47 // pred_fallthru
          _
        // Predicated region
        $region57: #{_lambda_.1} parent=47 // pred_check
          %p307 = pneg %p89
        $region58: #{_lambda_.1} parent=47 // pred_check_branch
          %309 = sbr.rel (%p307) target = $region60
        $region59: #{_lambda_.1} parent=47 // pred_region
          %310 = dma.done [#allocation7], 4608
        $region60: #{_lambda_.1} parent=47 // pred_fallthru
          _
        // Predicated region
        $region61: #{_lambda_.1} parent=47 // pred_check
          %p311 = pneg %p110
        $region62: #{_lambda_.1} parent=47 // pred_check_branch
          %313 = sbr.rel (%p311) target = $region64
        $region63: #{_lambda_.1} parent=47 // pred_region
          %314 = dma.done [#allocation10], 512
        $region64: #{_lambda_.1} parent=47 // pred_fallthru
          _
        %s315 = sand.u32 %s34, 1
        %s316 = scalar_lea.sflag [#allocation4], %s315
        %s317 = sand.u32 %s34, 1
        %s318 = smul.addr %s317, 256
        %s319 = scalar_lea.vmem [#allocation3], %s318
        %p320 = pneg %p47
        %p321 = pneg %p44
        %p322 = pneg %p68
        %p323 = pneg %p65
        %p324 = pneg %p89
        %p325 = pneg %p86
        %p326 = pneg %p110
        %p327 = pneg %p107
        %p328 = pneg %p131
        %p329 = pneg %p128
        %p330 = pneg %p152
        %p331 = pneg %p149
        %p332 = pneg %p173
        %p333 = pneg %p170
        %p334 = pneg %p199
        %p335 = pneg %p196
        %s336 = sand.u32 %s186, 1
        %s337 = scalar_lea.sflag [#allocation5], %s336
        %s338 = sand.u32 %s186, 1
        %s339 = smul.addr %s338, 256
        %s340 = scalar_lea.vmem [#allocation11], %s339
        %vm341 = vcmask 261120
        %342 = vst.msk [vmem:[#allocation2] sm:$0xff] %vm341, 0.0
        %343 = vst.msk [vmem:[#allocation2 + $0x8] sm:$0xff] %vm341, 0.0
        %344 = vst.msk [vmem:[#allocation2 + $0x10] sm:$0xff] %vm341, 0.0
        %345 = vst.msk [vmem:[#allocation2 + $0x18] sm:$0xff] %vm341, 0.0
        %346 = vst.msk [vmem:[#allocation2 + $0x20] sm:$0xff] %vm341, 0.0
        %347 = vst.msk [vmem:[#allocation2 + $0x28] sm:$0xff] %vm341, 0.0
        %348 = vst.msk [vmem:[#allocation2 + $0x30] sm:$0xff] %vm341, 0.0
        %349 = vst.msk [vmem:[#allocation2 + $0x38] sm:$0xff] %vm341, 0.0
        %350 = vst.msk [vmem:[#allocation2 + $0x40] sm:$0xff] %vm341, 0.0
        %351 = vst.msk [vmem:[#allocation2 + $0x48] sm:$0xff] %vm341, 0.0
        %352 = vst.msk [vmem:[#allocation2 + $0x50] sm:$0xff] %vm341, 0.0
        %353 = vst.msk [vmem:[#allocation2 + $0x58] sm:$0xff] %vm341, 0.0
        %354 = vst.msk [vmem:[#allocation2 + $0x60] sm:$0xff] %vm341, 0.0
        %355 = vst.msk [vmem:[#allocation2 + $0x68] sm:$0xff] %vm341, 0.0
        %356 = vst.msk [vmem:[#allocation2 + $0x70] sm:$0xff] %vm341, 0.0
        %357 = vst.msk [vmem:[#allocation2 + $0x78] sm:$0xff] %vm341, 0.0
        %358 = vst.msk [vmem:[#allocation2 + $0x80] sm:$0xff] %vm341, 0.0
        %359 = vst.msk [vmem:[#allocation2 + $0x88] sm:$0xff] %vm341, 0.0
        %360 = vst.msk [vmem:[#allocation2 + $0x90] sm:$0xff] %vm341, 0.0
        %361 = vst.msk [vmem:[#allocation2 + $0x98] sm:$0xff] %vm341, 0.0
        %362 = vst.msk [vmem:[#allocation2 + $0xa0] sm:$0xff] %vm341, 0.0
        %363 = vst.msk [vmem:[#allocation2 + $0xa8] sm:$0xff] %vm341, 0.0
        %364 = vst.msk [vmem:[#allocation2 + $0xb0] sm:$0xff] %vm341, 0.0
        %365 = vst.msk [vmem:[#allocation2 + $0xb8] sm:$0xff] %vm341, 0.0
        %366 = vst.msk [vmem:[#allocation2 + $0xc0] sm:$0xff] %vm341, 0.0
        %367 = vst.msk [vmem:[#allocation2 + $0xc8] sm:$0xff] %vm341, 0.0
        %368 = vst.msk [vmem:[#allocation2 + $0xd0] sm:$0xff] %vm341, 0.0
        %369 = vst.msk [vmem:[#allocation2 + $0xd8] sm:$0xff] %vm341, 0.0
        %370 = vst.msk [vmem:[#allocation2 + $0xe0] sm:$0xff] %vm341, 0.0
        %371 = vst.msk [vmem:[#allocation2 + $0xe8] sm:$0xff] %vm341, 0.0
        %372 = vst.msk [vmem:[#allocation2 + $0xf0] sm:$0xff] %vm341, 0.0
        %373 = vst.msk [vmem:[#allocation2 + $0xf8] sm:$0xff] %vm341, 0.0
        %374 = vst.msk [vmem:[#allocation2 + $0x100] sm:$0xff] %vm341, 0.0
        %375 = vst.msk [vmem:[#allocation2 + $0x108] sm:$0xff] %vm341, 0.0
        %376 = vst.msk [vmem:[#allocation2 + $0x110] sm:$0xff] %vm341, 0.0
        %377 = vst.msk [vmem:[#allocation2 + $0x118] sm:$0xff] %vm341, 0.0
        %378 = vst.msk [vmem:[#allocation2 + $0x120] sm:$0xff] %vm341, 0.0
        %379 = vst.msk [vmem:[#allocation2 + $0x128] sm:$0xff] %vm341, 0.0
        %v380 = vld [vmem:[#allocation6] sm:$0xff]
        %v381 = vld [vmem:[#allocation6 + $0x8] sm:$0xff]
        %v382 = vld [vmem:[#allocation6 + $0x10] sm:$0xff]
        %v383 = vld [vmem:[#allocation6 + $0x18] sm:$0xff]
        %v384 = vld [vmem:[#allocation6 + $0x20] sm:$0xff]
        %v385 = vld [vmem:[#allocation6 + $0x28] sm:$0xff]
        %v386 = vld [vmem:[#allocation6 + $0x30] sm:$0xff]
        %v387 = vld [vmem:[#allocation6 + $0x38] sm:$0xff]
        %v388 = vld [vmem:[#allocation6 + $0x40] sm:$0xff]
        %v389 = vld [vmem:[#allocation6 + $0x48] sm:$0xff]
        %v390 = vld [vmem:[#allocation6 + $0x50] sm:$0xff]
        %v391 = vld [vmem:[#allocation6 + $0x58] sm:$0xff]
        %v392 = vld [vmem:[#allocation6 + $0x60] sm:$0xff]
        %v393 = vld [vmem:[#allocation6 + $0x68] sm:$0xff]
        %v394 = vld [vmem:[#allocation6 + $0x70] sm:$0xff]
        %v395 = vld [vmem:[#allocation6 + $0x78] sm:$0xff]
        %v396 = vld [vmem:[#allocation9] sm:$0xff]
        %v397 = vld [vmem:[#allocation9 + $0x8] sm:$0xff]
        %v398 = vld [vmem:[#allocation9 + $0x10] sm:$0xff]
        %v399 = vld [vmem:[#allocation9 + $0x18] sm:$0xff]
        %v400 = vld [vmem:[%s4] sm:$0x1]
        %v401 = vld [vmem:[%s5] sm:$0x1]
        %v402 = vld [vmem:[%s6] sm:$0x1]
        %v403 = vld [vmem:[%s298] sm:$0xff]
        %v404 = vld [vmem:[%s298 + $0x8] sm:$0xff]
        %v405 = vld [vmem:[%s298 + $0x10] sm:$0xff]
        %v406 = vld [vmem:[%s298 + $0x18] sm:$0xff]
        %v407 = vld [vmem:[%s298 + $0x20] sm:$0xff]
        %v408 = vld [vmem:[%s298 + $0x28] sm:$0xff]
        %v409 = vld [vmem:[%s298 + $0x30] sm:$0xff]
        %v410 = vld [vmem:[%s298 + $0x38] sm:$0xff]
        %v411 = vld [vmem:[%s298 + $0x40] sm:$0xff]
        %v412 = vld [vmem:[%s298 + $0x48] sm:$0xff]
        %v413 = vld [vmem:[%s298 + $0x50] sm:$0xff]
        %v414 = vld [vmem:[%s298 + $0x58] sm:$0xff]
        %v415 = vld [vmem:[%s298 + $0x60] sm:$0xff]
        %v416 = vld [vmem:[%s298 + $0x68] sm:$0xff]
        %v417 = vld [vmem:[%s298 + $0x70] sm:$0xff]
        %v418 = vld [vmem:[%s298 + $0x78] sm:$0xff]
        %v420 = vlaneseq
        %v421 = vshrl.u32 %v420, 7
        %v422 = vsub.s32 0, %v421
        %v423 = vrot.slane %v400, %v422
        %425 = vmatprep.subr.mxu0 0.0
        %426 = vmatpush1.msra.mxu0 %v395
        %427 = vmatprep.subr.mxu0 0.0
        %428 = vmatpush1.msra.mxu0 %v394
        %429 = vmatprep.subr.mxu0 0.0
        %430 = vmatpush1.msra.mxu0 %v393
        %431 = vmatprep.subr.mxu0 0.0
        %432 = vmatpush1.msra.mxu0 %v392
        %433 = vmatprep.subr.mxu0 0.0
        %434 = vmatpush1.msra.mxu0 %v391
        %435 = vmatprep.subr.mxu0 0.0
        %436 = vmatpush1.msra.mxu0 %v390
        %437 = vmatprep.subr.mxu0 0.0
        %438 = vmatpush1.msra.mxu0 %v389
        %439 = vmatprep.subr.mxu0 0.0
        %440 = vmatpush1.msra.mxu0 %v388
        %441 = vmatprep.subr.mxu0 0.0
        %442 = vmatpush1.msra.mxu0 %v387
        %443 = vmatprep.subr.mxu0 0.0
        %444 = vmatpush1.msra.mxu0 %v386
        %445 = vmatprep.subr.mxu0 0.0
        %446 = vmatpush1.msra.mxu0 %v385
        %447 = vmatprep.subr.mxu0 0.0
        %448 = vmatpush1.msra.mxu0 %v384
        %449 = vmatprep.subr.mxu0 0.0
        %450 = vmatpush1.msra.mxu0 %v383
        %451 = vmatprep.subr.mxu0 0.0
        %452 = vmatpush1.msra.mxu0 %v382
        %453 = vmatprep.subr.mxu0 0.0
        %454 = vmatpush1.msra.mxu0 %v381
        %455 = vmatprep.subr.mxu0 0.0
        %456 = vmatpush1.msra.mxu0 %v380
        %457 = vmatprep.subr.mxu0 0.0
        %458 = vmatpush2.msra.mxu0 0.0
        %459 = vmatprep.subr.mxu0 0.0
        %460 = vmatpush2.msra.mxu0 0.0
        %461 = vmatprep.subr.mxu0 0.0
        %462 = vmatpush2.msra.mxu0 0.0
        %463 = vmatprep.subr.mxu0 0.0
        %464 = vmatpush2.msra.mxu0 0.0
        %465 = vmatprep.subr.mxu0 0.0
        %466 = vmatpush2.msra.mxu0 0.0
        %467 = vmatprep.subr.mxu0 0.0
        %468 = vmatpush2.msra.mxu0 0.0
        %469 = vmatprep.subr.mxu0 0.0
        %470 = vmatpush2.msra.mxu0 0.0
        %471 = vmatprep.subr.mxu0 0.0
        %472 = vmatpush2.msra.mxu0 0.0
        %473 = vmatprep.subr.mxu0 0.0
        %474 = vmatpush2.msra.mxu0 0.0
        %475 = vmatprep.subr.mxu0 0.0
        %476 = vmatpush2.msra.mxu0 0.0
        %477 = vmatprep.subr.mxu0 0.0
        %478 = vmatpush2.msra.mxu0 0.0
        %479 = vmatprep.subr.mxu0 0.0
        %480 = vmatpush2.msra.mxu0 0.0
        %481 = vmatprep.subr.mxu0 0.0
        %482 = vmatpush2.msra.mxu0 0.0
        %483 = vmatprep.subr.mxu0 0.0
        %484 = vmatpush2.msra.mxu0 0.0
        %485 = vmatprep.subr.mxu0 0.0
        %486 = vmatpush2.msra.mxu0 0.0
        %487 = vmatprep.subr.mxu0 0.0
        %488 = vmatpush2.msra.mxu0 0.0
        %489 = vmatprep.mubr.f32.mxu0 0.0
        %490 = vmatmul.mubr.f32.gmra.mxu0 %v403
        %v491 = vpop.f32.mrf.mxu0
        %v492 = vadd.f32 %v423, %v491
        %v493 = vpop.f32.mrf.mxu0
        %494 = vmatprep.mubr.f32.mxu0 0.0
        %495 = vmatmul.mubr.f32.gmra.mxu0 %v404
        %v496 = vpop.f32.mrf.mxu0
        %v497 = vadd.f32 %v423, %v496
        %v498 = vpop.f32.mrf.mxu0
        %499 = vmatprep.mubr.f32.mxu0 0.0
        %500 = vmatmul.mubr.f32.gmra.mxu0 %v405
        %v501 = vpop.f32.mrf.mxu0
        %v502 = vadd.f32 %v423, %v501
        %v503 = vpop.f32.mrf.mxu0
        %504 = vmatprep.mubr.f32.mxu0 0.0
        %505 = vmatmul.mubr.f32.gmra.mxu0 %v406
        %v506 = vpop.f32.mrf.mxu0
        %v507 = vadd.f32 %v423, %v506
        %v508 = vpop.f32.mrf.mxu0
        %509 = vmatprep.mubr.f32.mxu0 0.0
        %510 = vmatmul.mubr.f32.gmra.mxu0 %v407
        %v511 = vpop.f32.mrf.mxu0
        %v512 = vadd.f32 %v423, %v511
        %v513 = vpop.f32.mrf.mxu0
        %514 = vmatprep.mubr.f32.mxu0 0.0
        %515 = vmatmul.mubr.f32.gmra.mxu0 %v408
        %v516 = vpop.f32.mrf.mxu0
        %v517 = vadd.f32 %v423, %v516
        %v518 = vpop.f32.mrf.mxu0
        %519 = vmatprep.mubr.f32.mxu0 0.0
        %520 = vmatmul.mubr.f32.gmra.mxu0 %v409
        %v521 = vpop.f32.mrf.mxu0
        %v522 = vadd.f32 %v423, %v521
        %v523 = vpop.f32.mrf.mxu0
        %524 = vmatprep.mubr.f32.mxu0 0.0
        %525 = vmatmul.mubr.f32.gmra.mxu0 %v410
        %v526 = vpop.f32.mrf.mxu0
        %v527 = vadd.f32 %v423, %v526
        %v528 = vpop.f32.mrf.mxu0
        %529 = vmatprep.mubr.f32.mxu0 0.0
        %530 = vmatmul.mubr.f32.gmra.mxu0 %v411
        %v531 = vpop.f32.mrf.mxu0
        %v532 = vadd.f32 %v423, %v531
        %v533 = vpop.f32.mrf.mxu0
        %534 = vmatprep.mubr.f32.mxu0 0.0
        %535 = vmatmul.mubr.f32.gmra.mxu0 %v412
        %v536 = vpop.f32.mrf.mxu0
        %v537 = vadd.f32 %v423, %v536
        %v538 = vpop.f32.mrf.mxu0
        %539 = vmatprep.mubr.f32.mxu0 0.0
        %540 = vmatmul.mubr.f32.gmra.mxu0 %v413
        %v541 = vpop.f32.mrf.mxu0
        %v542 = vadd.f32 %v423, %v541
        %v543 = vpop.f32.mrf.mxu0
        %544 = vmatprep.mubr.f32.mxu0 0.0
        %545 = vmatmul.mubr.f32.gmra.mxu0 %v414
        %v546 = vpop.f32.mrf.mxu0
        %v547 = vadd.f32 %v423, %v546
        %v548 = vpop.f32.mrf.mxu0
        %549 = vmatprep.mubr.f32.mxu0 0.0
        %550 = vmatmul.mubr.f32.gmra.mxu0 %v415
        %v551 = vpop.f32.mrf.mxu0
        %v552 = vadd.f32 %v423, %v551
        %v553 = vpop.f32.mrf.mxu0
        %554 = vmatprep.mubr.f32.mxu0 0.0
        %555 = vmatmul.mubr.f32.gmra.mxu0 %v416
        %v556 = vpop.f32.mrf.mxu0
        %v557 = vadd.f32 %v423, %v556
        %v558 = vpop.f32.mrf.mxu0
        %559 = vmatprep.mubr.f32.mxu0 0.0
        %560 = vmatmul.mubr.f32.gmra.mxu0 %v417
        %v561 = vpop.f32.mrf.mxu0
        %v562 = vadd.f32 %v423, %v561
        %v563 = vpop.f32.mrf.mxu0
        %564 = vmatprep.mubr.f32.mxu0 0.0
        %565 = vmatmul.mubr.f32.gmra.mxu0 %v418
        %v566 = vpop.f32.mrf.mxu0
        %v567 = vadd.f32 %v423, %v566
        %v568 = vpop.f32.mrf.mxu0
        %569 = vdwg.mxu0
        %v570 = vmax.f32 %v492, 0.0
        %v571 = vmax.f32 %v497, 0.0
        %v572 = vmax.f32 %v502, 0.0
        %v573 = vmax.f32 %v507, 0.0
        %v574 = vmax.f32 %v512, 0.0
        %v575 = vmax.f32 %v517, 0.0
        %v576 = vmax.f32 %v522, 0.0
        %v577 = vmax.f32 %v527, 0.0
        %v578 = vmax.f32 %v532, 0.0
        %v579 = vmax.f32 %v537, 0.0
        %v580 = vmax.f32 %v542, 0.0
        %v581 = vmax.f32 %v547, 0.0
        %v582 = vmax.f32 %v552, 0.0
        %v583 = vmax.f32 %v557, 0.0
        %v584 = vmax.f32 %v562, 0.0
        %v585 = vmax.f32 %v567, 0.0
        %586 = vst.msk [vmem:[#allocation2 + $0x18] sm:$0xff] %vm341, %v570
        %587 = vst.msk [vmem:[#allocation2 + $0x20] sm:$0xff] %vm341, %v571
        %588 = vst.msk [vmem:[#allocation2 + $0x28] sm:$0xff] %vm341, %v572
        %589 = vst.msk [vmem:[#allocation2 + $0x30] sm:$0xff] %vm341, %v573
        %590 = vst.msk [vmem:[#allocation2 + $0x38] sm:$0xff] %vm341, %v574
        %591 = vst.msk [vmem:[#allocation2 + $0x40] sm:$0xff] %vm341, %v575
        %592 = vst.msk [vmem:[#allocation2 + $0x48] sm:$0xff] %vm341, %v576
        %593 = vst.msk [vmem:[#allocation2 + $0x50] sm:$0xff] %vm341, %v577
        %594 = vst.msk [vmem:[#allocation2 + $0x58] sm:$0xff] %vm341, %v578
        %595 = vst.msk [vmem:[#allocation2 + $0x60] sm:$0xff] %vm341, %v579
        %596 = vst.msk [vmem:[#allocation2 + $0x68] sm:$0xff] %vm341, %v580
        %597 = vst.msk [vmem:[#allocation2 + $0x70] sm:$0xff] %vm341, %v581
        %598 = vst.msk [vmem:[#allocation2 + $0x78] sm:$0xff] %vm341, %v582
        %599 = vst.msk [vmem:[#allocation2 + $0x80] sm:$0xff] %vm341, %v583
        %600 = vst.msk [vmem:[#allocation2 + $0x88] sm:$0xff] %vm341, %v584
        %601 = vst.msk [vmem:[#allocation2 + $0x90] sm:$0xff] %vm341, %v585
        %s602 = scalar_lea.vmem %s298, 128 [#allocation3]
        %v603 = vld [vmem:[%s602] sm:$0xff]
        %v604 = vld [vmem:[%s602 + $0x8] sm:$0xff]
        %v605 = vld [vmem:[%s602 + $0x10] sm:$0xff]
        %v606 = vld [vmem:[%s602 + $0x18] sm:$0xff]
        %v607 = vld [vmem:[%s602 + $0x20] sm:$0xff]
        %v608 = vld [vmem:[%s602 + $0x28] sm:$0xff]
        %v609 = vld [vmem:[%s602 + $0x30] sm:$0xff]
        %v610 = vld [vmem:[%s602 + $0x38] sm:$0xff]
        %v611 = vld [vmem:[%s602 + $0x40] sm:$0xff]
        %v612 = vld [vmem:[%s602 + $0x48] sm:$0xff]
        %v613 = vld [vmem:[%s602 + $0x50] sm:$0xff]
        %v614 = vld [vmem:[%s602 + $0x58] sm:$0xff]
        %v615 = vld [vmem:[%s602 + $0x60] sm:$0xff]
        %v616 = vld [vmem:[%s602 + $0x68] sm:$0xff]
        %v617 = vld [vmem:[%s602 + $0x70] sm:$0xff]
        %v618 = vld [vmem:[%s602 + $0x78] sm:$0xff]
        %619 = vmatprep.subr.mxu0 0.0
        %620 = vmatpush1.msra.mxu0 %v395
        %621 = vmatprep.subr.mxu0 0.0
        %622 = vmatpush1.msra.mxu0 %v394
        %623 = vmatprep.subr.mxu0 0.0
        %624 = vmatpush1.msra.mxu0 %v393
        %625 = vmatprep.subr.mxu0 0.0
        %626 = vmatpush1.msra.mxu0 %v392
        %627 = vmatprep.subr.mxu0 0.0
        %628 = vmatpush1.msra.mxu0 %v391
        %629 = vmatprep.subr.mxu0 0.0
        %630 = vmatpush1.msra.mxu0 %v390
        %631 = vmatprep.subr.mxu0 0.0
        %632 = vmatpush1.msra.mxu0 %v389
        %633 = vmatprep.subr.mxu0 0.0
        %634 = vmatpush1.msra.mxu0 %v388
        %635 = vmatprep.subr.mxu0 0.0
        %636 = vmatpush1.msra.mxu0 %v387
        %637 = vmatprep.subr.mxu0 0.0
        %638 = vmatpush1.msra.mxu0 %v386
        %639 = vmatprep.subr.mxu0 0.0
        %640 = vmatpush1.msra.mxu0 %v385
        %641 = vmatprep.subr.mxu0 0.0
        %642 = vmatpush1.msra.mxu0 %v384
        %643 = vmatprep.subr.mxu0 0.0
        %644 = vmatpush1.msra.mxu0 %v383
        %645 = vmatprep.subr.mxu0 0.0
        %646 = vmatpush1.msra.mxu0 %v382
        %647 = vmatprep.subr.mxu0 0.0
        %648 = vmatpush1.msra.mxu0 %v381
        %649 = vmatprep.subr.mxu0 0.0
        %650 = vmatpush1.msra.mxu0 %v380
        %651 = vmatprep.subr.mxu0 0.0
        %652 = vmatpush2.msra.mxu0 0.0
        %653 = vmatprep.subr.mxu0 0.0
        %654 = vmatpush2.msra.mxu0 0.0
        %655 = vmatprep.subr.mxu0 0.0
        %656 = vmatpush2.msra.mxu0 0.0
        %657 = vmatprep.subr.mxu0 0.0
        %658 = vmatpush2.msra.mxu0 0.0
        %659 = vmatprep.subr.mxu0 0.0
        %660 = vmatpush2.msra.mxu0 0.0
        %661 = vmatprep.subr.mxu0 0.0
        %662 = vmatpush2.msra.mxu0 0.0
        %663 = vmatprep.subr.mxu0 0.0
        %664 = vmatpush2.msra.mxu0 0.0
        %665 = vmatprep.subr.mxu0 0.0
        %666 = vmatpush2.msra.mxu0 0.0
        %667 = vmatprep.subr.mxu0 0.0
        %668 = vmatpush2.msra.mxu0 0.0
        %669 = vmatprep.subr.mxu0 0.0
        %670 = vmatpush2.msra.mxu0 0.0
        %671 = vmatprep.subr.mxu0 0.0
        %672 = vmatpush2.msra.mxu0 0.0
        %673 = vmatprep.subr.mxu0 0.0
        %674 = vmatpush2.msra.mxu0 0.0
        %675 = vmatprep.subr.mxu0 0.0
        %676 = vmatpush2.msra.mxu0 0.0
        %677 = vmatprep.subr.mxu0 0.0
        %678 = vmatpush2.msra.mxu0 0.0
        %679 = vmatprep.subr.mxu0 0.0
        %680 = vmatpush2.msra.mxu0 0.0
        %681 = vmatprep.subr.mxu0 0.0
        %682 = vmatpush2.msra.mxu0 0.0
        %683 = vmatprep.mubr.f32.mxu0 0.0
        %684 = vmatmul.mubr.f32.gmra.mxu0 %v603
        %v685 = vpop.f32.mrf.mxu0
        %v686 = vadd.f32 %v423, %v685
        %v687 = vpop.f32.mrf.mxu0
        %688 = vmatprep.mubr.f32.mxu0 0.0
        %689 = vmatmul.mubr.f32.gmra.mxu0 %v604
        %v690 = vpop.f32.mrf.mxu0
        %v691 = vadd.f32 %v423, %v690
        %v692 = vpop.f32.mrf.mxu0
        %693 = vmatprep.mubr.f32.mxu0 0.0
        %694 = vmatmul.mubr.f32.gmra.mxu0 %v605
        %v695 = vpop.f32.mrf.mxu0
        %v696 = vadd.f32 %v423, %v695
        %v697 = vpop.f32.mrf.mxu0
        %698 = vmatprep.mubr.f32.mxu0 0.0
        %699 = vmatmul.mubr.f32.gmra.mxu0 %v606
        %v700 = vpop.f32.mrf.mxu0
        %v701 = vadd.f32 %v423, %v700
        %v702 = vpop.f32.mrf.mxu0
        %703 = vmatprep.mubr.f32.mxu0 0.0
        %704 = vmatmul.mubr.f32.gmra.mxu0 %v607
        %v705 = vpop.f32.mrf.mxu0
        %v706 = vadd.f32 %v423, %v705
        %v707 = vpop.f32.mrf.mxu0
        %708 = vmatprep.mubr.f32.mxu0 0.0
        %709 = vmatmul.mubr.f32.gmra.mxu0 %v608
        %v710 = vpop.f32.mrf.mxu0
        %v711 = vadd.f32 %v423, %v710
        %v712 = vpop.f32.mrf.mxu0
        %713 = vmatprep.mubr.f32.mxu0 0.0
        %714 = vmatmul.mubr.f32.gmra.mxu0 %v609
        %v715 = vpop.f32.mrf.mxu0
        %v716 = vadd.f32 %v423, %v715
        %v717 = vpop.f32.mrf.mxu0
        %718 = vmatprep.mubr.f32.mxu0 0.0
        %719 = vmatmul.mubr.f32.gmra.mxu0 %v610
        %v720 = vpop.f32.mrf.mxu0
        %v721 = vadd.f32 %v423, %v720
        %v722 = vpop.f32.mrf.mxu0
        %723 = vmatprep.mubr.f32.mxu0 0.0
        %724 = vmatmul.mubr.f32.gmra.mxu0 %v611
        %v725 = vpop.f32.mrf.mxu0
        %v726 = vadd.f32 %v423, %v725
        %v727 = vpop.f32.mrf.mxu0
        %728 = vmatprep.mubr.f32.mxu0 0.0
        %729 = vmatmul.mubr.f32.gmra.mxu0 %v612
        %v730 = vpop.f32.mrf.mxu0
        %v731 = vadd.f32 %v423, %v730
        %v732 = vpop.f32.mrf.mxu0
        %733 = vmatprep.mubr.f32.mxu0 0.0
        %734 = vmatmul.mubr.f32.gmra.mxu0 %v613
        %v735 = vpop.f32.mrf.mxu0
        %v736 = vadd.f32 %v423, %v735
        %v737 = vpop.f32.mrf.mxu0
        %738 = vmatprep.mubr.f32.mxu0 0.0
        %739 = vmatmul.mubr.f32.gmra.mxu0 %v614
        %v740 = vpop.f32.mrf.mxu0
        %v741 = vadd.f32 %v423, %v740
        %v742 = vpop.f32.mrf.mxu0
        %743 = vmatprep.mubr.f32.mxu0 0.0
        %744 = vmatmul.mubr.f32.gmra.mxu0 %v615
        %v745 = vpop.f32.mrf.mxu0
        %v746 = vadd.f32 %v423, %v745
        %v747 = vpop.f32.mrf.mxu0
        %748 = vmatprep.mubr.f32.mxu0 0.0
        %749 = vmatmul.mubr.f32.gmra.mxu0 %v616
        %v750 = vpop.f32.mrf.mxu0
        %v751 = vadd.f32 %v423, %v750
        %v752 = vpop.f32.mrf.mxu0
        %753 = vmatprep.mubr.f32.mxu0 0.0
        %754 = vmatmul.mubr.f32.gmra.mxu0 %v617
        %v755 = vpop.f32.mrf.mxu0
        %v756 = vadd.f32 %v423, %v755
        %v757 = vpop.f32.mrf.mxu0
        %758 = vmatprep.mubr.f32.mxu0 0.0
        %759 = vmatmul.mubr.f32.gmra.mxu0 %v618
        %v760 = vpop.f32.mrf.mxu0
        %v761 = vadd.f32 %v423, %v760
        %v762 = vpop.f32.mrf.mxu0
        %763 = vdwg.mxu0
        %v764 = vmax.f32 %v686, 0.0
        %v765 = vmax.f32 %v691, 0.0
        %v766 = vmax.f32 %v696, 0.0
        %v767 = vmax.f32 %v701, 0.0
        %v768 = vmax.f32 %v706, 0.0
        %v769 = vmax.f32 %v711, 0.0
        %v770 = vmax.f32 %v716, 0.0
        %v771 = vmax.f32 %v721, 0.0
        %v772 = vmax.f32 %v726, 0.0
        %v773 = vmax.f32 %v731, 0.0
        %v774 = vmax.f32 %v736, 0.0
        %v775 = vmax.f32 %v741, 0.0
        %v776 = vmax.f32 %v746, 0.0
        %v777 = vmax.f32 %v751, 0.0
        %v778 = vmax.f32 %v756, 0.0
        %v779 = vmax.f32 %v761, 0.0
        %780 = vst.msk [vmem:[#allocation2 + $0x98] sm:$0xff] %vm341, %v764
        %781 = vst.msk [vmem:[#allocation2 + $0xa0] sm:$0xff] %vm341, %v765
        %782 = vst.msk [vmem:[#allocation2 + $0xa8] sm:$0xff] %vm341, %v766
        %783 = vst.msk [vmem:[#allocation2 + $0xb0] sm:$0xff] %vm341, %v767
        %784 = vst.msk [vmem:[#allocation2 + $0xb8] sm:$0xff] %vm341, %v768
        %785 = vst.msk [vmem:[#allocation2 + $0xc0] sm:$0xff] %vm341, %v769
        %786 = vst.msk [vmem:[#allocation2 + $0xc8] sm:$0xff] %vm341, %v770
        %787 = vst.msk [vmem:[#allocation2 + $0xd0] sm:$0xff] %vm341, %v771
        %788 = vst.msk [vmem:[#allocation2 + $0xd8] sm:$0xff] %vm341, %v772
        %789 = vst.msk [vmem:[#allocation2 + $0xe0] sm:$0xff] %vm341, %v773
        %790 = vst.msk [vmem:[#allocation2 + $0xe8] sm:$0xff] %vm341, %v774
        %791 = vst.msk [vmem:[#allocation2 + $0xf0] sm:$0xff] %vm341, %v775
        %792 = vst.msk [vmem:[#allocation2 + $0xf8] sm:$0xff] %vm341, %v776
        %793 = vst.msk [vmem:[#allocation2 + $0x100] sm:$0xff] %vm341, %v777
        %794 = vst.msk [vmem:[#allocation2 + $0x108] sm:$0xff] %vm341, %v778
        %795 = vst.msk [vmem:[#allocation2 + $0x110] sm:$0xff] %vm341, %v779
        %v796 = vlaneseq
        %v797 = vshrl.u32 %v796, 7
        %v798 = vadd.s32 %v797, 8
        %v799 = vadd.s32 %v797, 16
        %v800 = vadd.s32 %v797, 24
        %v801 = vadd.s32 %v797, 32
        %v802 = vadd.s32 %v797, 40
        %v803 = vadd.s32 %v797, 48
        %v804 = vadd.s32 %v797, 56
        %v805 = vadd.s32 %v797, 64
        %v806 = vadd.s32 %v797, 72
        %v807 = vadd.s32 %v797, 80
        %v808 = vadd.s32 %v797, 88
        %v809 = vadd.s32 %v797, 96
        %v810 = vadd.s32 %v797, 104
        %v811 = vadd.s32 %v797, 112
        %v812 = vadd.s32 %v797, 120
        %vm813 = vcmp.lt.s32.totalorder %v797, 0
        %v814 = vsub.s32 0, %v797
        %v815 = vsel %vm813, %v814, %v797
        %v816 = vshrl.u32 %v815, 4
        %v817 = vand.u32 %v815, 15
        %v818 = vsub.s32 0, %v817
        %v819 = vsel %vm813, %v818, %v817
        %vm820 = vcmp.lt.s32.totalorder %v798, 0
        %v821 = vsub.s32 0, %v798
        %v822 = vsel %vm820, %v821, %v798
        %v823 = vshrl.u32 %v822, 4
        %v824 = vand.u32 %v822, 15
        %v825 = vsub.s32 0, %v824
        %v826 = vsel %vm820, %v825, %v824
        %vm827 = vcmp.lt.s32.totalorder %v799, 0
        %v828 = vsub.s32 0, %v799
        %v829 = vsel %vm827, %v828, %v799
        %v830 = vshrl.u32 %v829, 4
        %v831 = vand.u32 %v829, 15
        %v832 = vsub.s32 0, %v831
        %v833 = vsel %vm827, %v832, %v831
        %vm834 = vcmp.lt.s32.totalorder %v800, 0
        %v835 = vsub.s32 0, %v800
        %v836 = vsel %vm834, %v835, %v800
        %v837 = vshrl.u32 %v836, 4
        %v838 = vand.u32 %v836, 15
        %v839 = vsub.s32 0, %v838
        %v840 = vsel %vm834, %v839, %v838
        %vm841 = vcmp.lt.s32.totalorder %v801, 0
        %v842 = vsub.s32 0, %v801
        %v843 = vsel %vm841, %v842, %v801
        %v844 = vshrl.u32 %v843, 4
        %v845 = vand.u32 %v843, 15
        %v846 = vsub.s32 0, %v845
        %v847 = vsel %vm841, %v846, %v845
        %vm848 = vcmp.lt.s32.totalorder %v802, 0
        %v849 = vsub.s32 0, %v802
        %v850 = vsel %vm848, %v849, %v802
        %v851 = vshrl.u32 %v850, 4
        %v852 = vand.u32 %v850, 15
        %v853 = vsub.s32 0, %v852
        %v854 = vsel %vm848, %v853, %v852
        %vm855 = vcmp.lt.s32.totalorder %v803, 0
        %v856 = vsub.s32 0, %v803
        %v857 = vsel %vm855, %v856, %v803
        %v858 = vshrl.u32 %v857, 4
        %v859 = vand.u32 %v857, 15
        %v860 = vsub.s32 0, %v859
        %v861 = vsel %vm855, %v860, %v859
        %vm862 = vcmp.lt.s32.totalorder %v804, 0
        %v863 = vsub.s32 0, %v804
        %v864 = vsel %vm862, %v863, %v804
        %v865 = vshrl.u32 %v864, 4
        %v866 = vand.u32 %v864, 15
        %v867 = vsub.s32 0, %v866
        %v868 = vsel %vm862, %v867, %v866
        %vm869 = vcmp.lt.s32.totalorder %v805, 0
        %v870 = vsub.s32 0, %v805
        %v871 = vsel %vm869, %v870, %v805
        %v872 = vshrl.u32 %v871, 4
        %v873 = vand.u32 %v871, 15
        %v874 = vsub.s32 0, %v873
        %v875 = vsel %vm869, %v874, %v873
        %vm876 = vcmp.lt.s32.totalorder %v806, 0
        %v877 = vsub.s32 0, %v806
        %v878 = vsel %vm876, %v877, %v806
        %v879 = vshrl.u32 %v878, 4
        %v880 = vand.u32 %v878, 15
        %v881 = vsub.s32 0, %v880
        %v882 = vsel %vm876, %v881, %v880
        %vm883 = vcmp.lt.s32.totalorder %v807, 0
        %v884 = vsub.s32 0, %v807
        %v885 = vsel %vm883, %v884, %v807
        %v886 = vshrl.u32 %v885, 4
        %v887 = vand.u32 %v885, 15
        %v888 = vsub.s32 0, %v887
        %v889 = vsel %vm883, %v888, %v887
        %vm890 = vcmp.lt.s32.totalorder %v808, 0
        %v891 = vsub.s32 0, %v808
        %v892 = vsel %vm890, %v891, %v808
        %v893 = vshrl.u32 %v892, 4
        %v894 = vand.u32 %v892, 15
        %v895 = vsub.s32 0, %v894
        %v896 = vsel %vm890, %v895, %v894
        %vm897 = vcmp.lt.s32.totalorder %v809, 0
        %v898 = vsub.s32 0, %v809
        %v899 = vsel %vm897, %v898, %v809
        %v900 = vshrl.u32 %v899, 4
        %v901 = vand.u32 %v899, 15
        %v902 = vsub.s32 0, %v901
        %v903 = vsel %vm897, %v902, %v901
        %vm904 = vcmp.lt.s32.totalorder %v810, 0
        %v905 = vsub.s32 0, %v810
        %v906 = vsel %vm904, %v905, %v810
        %v907 = vshrl.u32 %v906, 4
        %v908 = vand.u32 %v906, 15
        %v909 = vsub.s32 0, %v908
        %v910 = vsel %vm904, %v909, %v908
        %vm911 = vcmp.lt.s32.totalorder %v811, 0
        %v912 = vsub.s32 0, %v811
        %v913 = vsel %vm911, %v912, %v811
        %v914 = vshrl.u32 %v913, 4
        %v915 = vand.u32 %v913, 15
        %v916 = vsub.s32 0, %v915
        %v917 = vsel %vm911, %v916, %v915
        %vm918 = vcmp.lt.s32.totalorder %v812, 0
        %v919 = vsub.s32 0, %v812
        %v920 = vsel %vm918, %v919, %v812
        %v921 = vshrl.u32 %v920, 4
        %v922 = vand.u32 %v920, 15
        %v923 = vsub.s32 0, %v922
        %v924 = vsel %vm918, %v923, %v922
        %vm925 = vcmp.ne.s32.totalorder %v819, 0
        %vm926 = vcmp.ne.s32.totalorder %v826, 0
        %vm927 = vcmp.ne.s32.totalorder %v833, 0
        %vm928 = vcmp.ne.s32.totalorder %v840, 0
        %vm929 = vcmp.ne.s32.totalorder %v847, 0
        %vm930 = vcmp.ne.s32.totalorder %v854, 0
        %vm931 = vcmp.ne.s32.totalorder %v861, 0
        %vm932 = vcmp.ne.s32.totalorder %v868, 0
        %vm933 = vcmp.ne.s32.totalorder %v875, 0
        %vm934 = vcmp.ne.s32.totalorder %v882, 0
        %vm935 = vcmp.ne.s32.totalorder %v889, 0
        %vm936 = vcmp.ne.s32.totalorder %v896, 0
        %vm937 = vcmp.ne.s32.totalorder %v903, 0
        %vm938 = vcmp.ne.s32.totalorder %v910, 0
        %vm939 = vcmp.ne.s32.totalorder %v917, 0
        %vm940 = vcmp.ne.s32.totalorder %v924, 0
        %vm941 = vcmp.lt.s32.totalorder %v819, 0
        %vm942 = vcmp.lt.s32.totalorder %v826, 0
        %vm943 = vcmp.lt.s32.totalorder %v833, 0
        %vm944 = vcmp.lt.s32.totalorder %v840, 0
        %vm945 = vcmp.lt.s32.totalorder %v847, 0
        %vm946 = vcmp.lt.s32.totalorder %v854, 0
        %vm947 = vcmp.lt.s32.totalorder %v861, 0
        %vm948 = vcmp.lt.s32.totalorder %v868, 0
        %vm949 = vcmp.lt.s32.totalorder %v875, 0
        %vm950 = vcmp.lt.s32.totalorder %v882, 0
        %vm951 = vcmp.lt.s32.totalorder %v889, 0
        %vm952 = vcmp.lt.s32.totalorder %v896, 0
        %vm953 = vcmp.lt.s32.totalorder %v903, 0
        %vm954 = vcmp.lt.s32.totalorder %v910, 0
        %vm955 = vcmp.lt.s32.totalorder %v917, 0
        %vm956 = vcmp.lt.s32.totalorder %v924, 0
        %vm957 = vmand %vm941, %vm925
        %vm958 = vmand %vm942, %vm926
        %vm959 = vmand %vm943, %vm927
        %vm960 = vmand %vm944, %vm928
        %vm961 = vmand %vm945, %vm929
        %vm962 = vmand %vm946, %vm930
        %vm963 = vmand %vm947, %vm931
        %vm964 = vmand %vm948, %vm932
        %vm965 = vmand %vm949, %vm933
        %vm966 = vmand %vm950, %vm934
        %vm967 = vmand %vm951, %vm935
        %vm968 = vmand %vm952, %vm936
        %vm969 = vmand %vm953, %vm937
        %vm970 = vmand %vm954, %vm938
        %vm971 = vmand %vm955, %vm939
        %vm972 = vmand %vm956, %vm940
        %v973 = vadd.s32 %v819, 16
        %v974 = vadd.s32 %v826, 16
        %v975 = vadd.s32 %v833, 16
        %v976 = vadd.s32 %v840, 16
        %v977 = vadd.s32 %v847, 16
        %v978 = vadd.s32 %v854, 16
        %v979 = vadd.s32 %v861, 16
        %v980 = vadd.s32 %v868, 16
        %v981 = vadd.s32 %v875, 16
        %v982 = vadd.s32 %v882, 16
        %v983 = vadd.s32 %v889, 16
        %v984 = vadd.s32 %v896, 16
        %v985 = vadd.s32 %v903, 16
        %v986 = vadd.s32 %v910, 16
        %v987 = vadd.s32 %v917, 16
        %v988 = vadd.s32 %v924, 16
        %v989 = vsel %vm957, %v973, %v819
        %v990 = vsel %vm958, %v974, %v826
        %v991 = vsel %vm959, %v975, %v833
        %v992 = vsel %vm960, %v976, %v840
        %v993 = vsel %vm961, %v977, %v847
        %v994 = vsel %vm962, %v978, %v854
        %v995 = vsel %vm963, %v979, %v861
        %v996 = vsel %vm964, %v980, %v868
        %v997 = vsel %vm965, %v981, %v875
        %v998 = vsel %vm966, %v982, %v882
        %v999 = vsel %vm967, %v983, %v889
        %v1000 = vsel %vm968, %v984, %v896
        %v1001 = vsel %vm969, %v985, %v903
        %v1002 = vsel %vm970, %v986, %v910
        %v1003 = vsel %vm971, %v987, %v917
        %v1004 = vsel %vm972, %v988, %v924
        %v1005 = vld [vmem:[#allocation2 + $0x7] sm:$0xff]
        %v1006 = vld [vmem:[#allocation2 + $0xf] sm:$0xff]
        %v1007 = vld [vmem:[#allocation2 + $0x17] sm:$0xff]
        %v1008 = vld [vmem:[#allocation2 + $0x1f] sm:$0xff]
        %v1009 = vld [vmem:[#allocation2 + $0x27] sm:$0xff]
        %v1010 = vld [vmem:[#allocation2 + $0x2f] sm:$0xff]
        %v1011 = vld [vmem:[#allocation2 + $0x37] sm:$0xff]
        %v1012 = vld [vmem:[#allocation2 + $0x3f] sm:$0xff]
        %v1013 = vld [vmem:[#allocation2 + $0x47] sm:$0xff]
        %v1014 = vld [vmem:[#allocation2 + $0x4f] sm:$0xff]
        %v1015 = vld [vmem:[#allocation2 + $0x57] sm:$0xff]
        %v1016 = vld [vmem:[#allocation2 + $0x5f] sm:$0xff]
        %v1017 = vld [vmem:[#allocation2 + $0x67] sm:$0xff]
        %v1018 = vld [vmem:[#allocation2 + $0x6f] sm:$0xff]
        %v1019 = vld [vmem:[#allocation2 + $0x77] sm:$0xff]
        %v1020 = vld [vmem:[#allocation2 + $0x7f] sm:$0xff]
        %vm1021 = vcmp.gt.s32.totalorder %v989, 0
        %vm1022 = vcmp.gt.s32.totalorder %v990, 0
        %vm1023 = vcmp.gt.s32.totalorder %v991, 0
        %vm1024 = vcmp.gt.s32.totalorder %v992, 0
        %vm1025 = vcmp.gt.s32.totalorder %v993, 0
        %vm1026 = vcmp.gt.s32.totalorder %v994, 0
        %vm1027 = vcmp.gt.s32.totalorder %v995, 0
        %vm1028 = vcmp.gt.s32.totalorder %v996, 0
        %vm1029 = vcmp.gt.s32.totalorder %v997, 0
        %vm1030 = vcmp.gt.s32.totalorder %v998, 0
        %vm1031 = vcmp.gt.s32.totalorder %v999, 0
        %vm1032 = vcmp.gt.s32.totalorder %v1000, 0
        %vm1033 = vcmp.gt.s32.totalorder %v1001, 0
        %vm1034 = vcmp.gt.s32.totalorder %v1002, 0
        %vm1035 = vcmp.gt.s32.totalorder %v1003, 0
        %vm1036 = vcmp.gt.s32.totalorder %v1004, 0
        %v1037 = vsel %vm1021, 1, 0
        %v1038 = vsel %vm1022, 1, 0
        %v1039 = vsel %vm1023, 1, 0
        %v1040 = vsel %vm1024, 1, 0
        %v1041 = vsel %vm1025, 1, 0
        %v1042 = vsel %vm1026, 1, 0
        %v1043 = vsel %vm1027, 1, 0
        %v1044 = vsel %vm1028, 1, 0
        %v1045 = vsel %vm1029, 1, 0
        %v1046 = vsel %vm1030, 1, 0
        %v1047 = vsel %vm1031, 1, 0
        %v1048 = vsel %vm1032, 1, 0
        %v1049 = vsel %vm1033, 1, 0
        %v1050 = vsel %vm1034, 1, 0
        %v1051 = vsel %vm1035, 1, 0
        %v1052 = vsel %vm1036, 1, 0
        %vm1053 = vcmp.eq.s32.totalorder %v1037, 1
        %vm1054 = vcmp.eq.s32.totalorder %v1038, 1
        %vm1055 = vcmp.eq.s32.totalorder %v1039, 1
        %vm1056 = vcmp.eq.s32.totalorder %v1040, 1
        %vm1057 = vcmp.eq.s32.totalorder %v1041, 1
        %vm1058 = vcmp.eq.s32.totalorder %v1042, 1
        %vm1059 = vcmp.eq.s32.totalorder %v1043, 1
        %vm1060 = vcmp.eq.s32.totalorder %v1044, 1
        %vm1061 = vcmp.eq.s32.totalorder %v1045, 1
        %vm1062 = vcmp.eq.s32.totalorder %v1046, 1
        %vm1063 = vcmp.eq.s32.totalorder %v1047, 1
        %vm1064 = vcmp.eq.s32.totalorder %v1048, 1
        %vm1065 = vcmp.eq.s32.totalorder %v1049, 1
        %vm1066 = vcmp.eq.s32.totalorder %v1050, 1
        %vm1067 = vcmp.eq.s32.totalorder %v1051, 1
        %vm1068 = vcmp.eq.s32.totalorder %v1052, 1
        %v1069 = vsel %vm1053, %v1005, 0.0
        %v1070 = vsel %vm1054, %v1006, 0.0
        %v1071 = vsel %vm1055, %v1007, 0.0
        %v1072 = vsel %vm1056, %v1008, 0.0
        %v1073 = vsel %vm1057, %v1009, 0.0
        %v1074 = vsel %vm1058, %v1010, 0.0
        %v1075 = vsel %vm1059, %v1011, 0.0
        %v1076 = vsel %vm1060, %v1012, 0.0
        %v1077 = vsel %vm1061, %v1013, 0.0
        %v1078 = vsel %vm1062, %v1014, 0.0
        %v1079 = vsel %vm1063, %v1015, 0.0
        %v1080 = vsel %vm1064, %v1016, 0.0
        %v1081 = vsel %vm1065, %v1017, 0.0
        %v1082 = vsel %vm1066, %v1018, 0.0
        %v1083 = vsel %vm1067, %v1019, 0.0
        %v1084 = vsel %vm1068, %v1020, 0.0
        %v1085 = vld [vmem:[#allocation8] sm:$0xff]
        %v1086 = vld [vmem:[#allocation8 + $0x8] sm:$0xff]
        %v1087 = vld [vmem:[#allocation8 + $0x10] sm:$0xff]
        %v1088 = vld [vmem:[#allocation8 + $0x18] sm:$0xff]
        %v1089 = vld [vmem:[#allocation2 + $0x8] sm:$0xff]
        %v1090 = vld [vmem:[#allocation2 + $0x10] sm:$0xff]
        %v1091 = vld [vmem:[#allocation2 + $0x18] sm:$0xff]
        %v1092 = vld [vmem:[#allocation2 + $0x20] sm:$0xff]
        %v1093 = vld [vmem:[#allocation2 + $0x28] sm:$0xff]
        %v1094 = vld [vmem:[#allocation2 + $0x30] sm:$0xff]
        %v1095 = vld [vmem:[#allocation2 + $0x38] sm:$0xff]
        %v1096 = vld [vmem:[#allocation2 + $0x40] sm:$0xff]
        %v1097 = vld [vmem:[#allocation2 + $0x48] sm:$0xff]
        %v1098 = vld [vmem:[#allocation2 + $0x50] sm:$0xff]
        %v1099 = vld [vmem:[#allocation2 + $0x58] sm:$0xff]
        %v1100 = vld [vmem:[#allocation2 + $0x60] sm:$0xff]
        %v1101 = vld [vmem:[#allocation2 + $0x68] sm:$0xff]
        %v1102 = vld [vmem:[#allocation2 + $0x70] sm:$0xff]
        %v1103 = vld [vmem:[#allocation2 + $0x78] sm:$0xff]
        %v1104 = vld [vmem:[#allocation2 + $0x80] sm:$0xff]
        %s1105 = scalar_lea.vmem [#allocation8], 32
        %v1106 = vld [vmem:[%s1105] sm:$0xff]
        %v1107 = vld [vmem:[%s1105 + $0x8] sm:$0xff]
        %v1108 = vld [vmem:[%s1105 + $0x10] sm:$0xff]
        %v1109 = vld [vmem:[%s1105 + $0x18] sm:$0xff]
        %v1111 = vsel %vm341, %v1089, 0
        %v1114 = vsel %vm341, %v1090, 0
        %v1117 = vsel %vm341, %v1091, 0
        %v1120 = vsel %vm341, %v1092, 0
        %v1123 = vsel %vm341, %v1093, 0
        %v1126 = vsel %vm341, %v1094, 0
        %v1129 = vsel %vm341, %v1095, 0
        %v1132 = vsel %vm341, %v1096, 0
        %v1135 = vsel %vm341, %v1097, 0
        %v1138 = vsel %vm341, %v1098, 0
        %v1141 = vsel %vm341, %v1099, 0
        %v1144 = vsel %vm341, %v1100, 0
        %v1147 = vsel %vm341, %v1101, 0
        %v1150 = vsel %vm341, %v1102, 0
        %v1153 = vsel %vm341, %v1103, 0
        %v1156 = vsel %vm341, %v1104, 0
        %1158 = vmatprep.subr.mxu0 0.0
        %1159 = vmatpush1.msra.mxu0 0.0
        %1160 = vmatprep.subr.mxu0 0.0
        %1161 = vmatpush1.msra.mxu0 0.0
        %1162 = vmatprep.subr.mxu0 0.0
        %1163 = vmatpush1.msra.mxu0 0.0
        %1164 = vmatprep.subr.mxu0 0.0
        %1165 = vmatpush1.msra.mxu0 0.0
        %1166 = vmatprep.subr.mxu0 0.0
        %1167 = vmatpush1.msra.mxu0 0.0
        %1168 = vmatprep.subr.mxu0 0.0
        %1169 = vmatpush1.msra.mxu0 0.0
        %1170 = vmatprep.subr.mxu0 0.0
        %1171 = vmatpush1.msra.mxu0 0.0
        %1172 = vmatprep.subr.mxu0 0.0
        %1173 = vmatpush1.msra.mxu0 0.0
        %1174 = vmatprep.subr.mxu0 0.0
        %1175 = vmatpush1.msra.mxu0 0.0
        %1176 = vmatprep.subr.mxu0 0.0
        %1177 = vmatpush1.msra.mxu0 0.0
        %1178 = vmatprep.subr.mxu0 0.0
        %1179 = vmatpush1.msra.mxu0 0.0
        %1180 = vmatprep.subr.mxu0 0.0
        %1181 = vmatpush1.msra.mxu0 0.0
        %1182 = vmatprep.subr.mxu0 0.0
        %1183 = vmatpush1.msra.mxu0 %v1109
        %1184 = vmatprep.subr.mxu0 0.0
        %1185 = vmatpush1.msra.mxu0 %v1108
        %1186 = vmatprep.subr.mxu0 0.0
        %1187 = vmatpush1.msra.mxu0 %v1107
        %1188 = vmatprep.subr.mxu0 0.0
        %1189 = vmatpush1.msra.mxu0 %v1106
        %1190 = vmatprep.subr.mxu0 0.0
        %1191 = vmatpush2.msra.mxu0 0.0
        %1192 = vmatprep.subr.mxu0 0.0
        %1193 = vmatpush2.msra.mxu0 0.0
        %1194 = vmatprep.subr.mxu0 0.0
        %1195 = vmatpush2.msra.mxu0 0.0
        %1196 = vmatprep.subr.mxu0 0.0
        %1197 = vmatpush2.msra.mxu0 0.0
        %1198 = vmatprep.subr.mxu0 0.0
        %1199 = vmatpush2.msra.mxu0 0.0
        %1200 = vmatprep.subr.mxu0 0.0
        %1201 = vmatpush2.msra.mxu0 0.0
        %1202 = vmatprep.subr.mxu0 0.0
        %1203 = vmatpush2.msra.mxu0 0.0
        %1204 = vmatprep.subr.mxu0 0.0
        %1205 = vmatpush2.msra.mxu0 0.0
        %1206 = vmatprep.subr.mxu0 0.0
        %1207 = vmatpush2.msra.mxu0 0.0
        %1208 = vmatprep.subr.mxu0 0.0
        %1209 = vmatpush2.msra.mxu0 0.0
        %1210 = vmatprep.subr.mxu0 0.0
        %1211 = vmatpush2.msra.mxu0 0.0
        %1212 = vmatprep.subr.mxu0 0.0
        %1213 = vmatpush2.msra.mxu0 0.0
        %1214 = vmatprep.subr.mxu0 0.0
        %1215 = vmatpush2.msra.mxu0 0.0
        %1216 = vmatprep.subr.mxu0 0.0
        %1217 = vmatpush2.msra.mxu0 0.0
        %1218 = vmatprep.subr.mxu0 0.0
        %1219 = vmatpush2.msra.mxu0 0.0
        %1220 = vmatprep.subr.mxu0 0.0
        %1221 = vmatpush2.msra.mxu0 0.0
        %1222 = vmatprep.mubr.f32.mxu0 0.0
        %1223 = vmatmul.mubr.f32.gmra.mxu0 %v1111
        %v1224 = vpop.f32.mrf.mxu0
        %v1225 = vadd.f32 0.0, %v1224
        %v1226 = vpop.f32.mrf.mxu0
        %1227 = vmatprep.mubr.f32.mxu0 0.0
        %1228 = vmatmul.mubr.f32.gmra.mxu0 %v1114
        %v1229 = vpop.f32.mrf.mxu0
        %v1230 = vadd.f32 0.0, %v1229
        %v1231 = vpop.f32.mrf.mxu0
        %1232 = vmatprep.mubr.f32.mxu0 0.0
        %1233 = vmatmul.mubr.f32.gmra.mxu0 %v1117
        %v1234 = vpop.f32.mrf.mxu0
        %v1235 = vadd.f32 0.0, %v1234
        %v1236 = vpop.f32.mrf.mxu0
        %1237 = vmatprep.mubr.f32.mxu0 0.0
        %1238 = vmatmul.mubr.f32.gmra.mxu0 %v1120
        %v1239 = vpop.f32.mrf.mxu0
        %v1240 = vadd.f32 0.0, %v1239
        %v1241 = vpop.f32.mrf.mxu0
        %1242 = vmatprep.mubr.f32.mxu0 0.0
        %1243 = vmatmul.mubr.f32.gmra.mxu0 %v1123
        %v1244 = vpop.f32.mrf.mxu0
        %v1245 = vadd.f32 0.0, %v1244
        %v1246 = vpop.f32.mrf.mxu0
        %1247 = vmatprep.mubr.f32.mxu0 0.0
        %1248 = vmatmul.mubr.f32.gmra.mxu0 %v1126
        %v1249 = vpop.f32.mrf.mxu0
        %v1250 = vadd.f32 0.0, %v1249
        %v1251 = vpop.f32.mrf.mxu0
        %1252 = vmatprep.mubr.f32.mxu0 0.0
        %1253 = vmatmul.mubr.f32.gmra.mxu0 %v1129
        %v1254 = vpop.f32.mrf.mxu0
        %v1255 = vadd.f32 0.0, %v1254
        %v1256 = vpop.f32.mrf.mxu0
        %1257 = vmatprep.mubr.f32.mxu0 0.0
        %1258 = vmatmul.mubr.f32.gmra.mxu0 %v1132
        %v1259 = vpop.f32.mrf.mxu0
        %v1260 = vadd.f32 0.0, %v1259
        %v1261 = vpop.f32.mrf.mxu0
        %1262 = vmatprep.mubr.f32.mxu0 0.0
        %1263 = vmatmul.mubr.f32.gmra.mxu0 %v1135
        %v1264 = vpop.f32.mrf.mxu0
        %v1265 = vadd.f32 0.0, %v1264
        %v1266 = vpop.f32.mrf.mxu0
        %1267 = vmatprep.mubr.f32.mxu0 0.0
        %1268 = vmatmul.mubr.f32.gmra.mxu0 %v1138
        %v1269 = vpop.f32.mrf.mxu0
        %v1270 = vadd.f32 0.0, %v1269
        %v1271 = vpop.f32.mrf.mxu0
        %1272 = vmatprep.mubr.f32.mxu0 0.0
        %1273 = vmatmul.mubr.f32.gmra.mxu0 %v1141
        %v1274 = vpop.f32.mrf.mxu0
        %v1275 = vadd.f32 0.0, %v1274
        %v1276 = vpop.f32.mrf.mxu0
        %1277 = vmatprep.mubr.f32.mxu0 0.0
        %1278 = vmatmul.mubr.f32.gmra.mxu0 %v1144
        %v1279 = vpop.f32.mrf.mxu0
        %v1280 = vadd.f32 0.0, %v1279
        %v1281 = vpop.f32.mrf.mxu0
        %1282 = vmatprep.mubr.f32.mxu0 0.0
        %1283 = vmatmul.mubr.f32.gmra.mxu0 %v1147
        %v1284 = vpop.f32.mrf.mxu0
        %v1285 = vadd.f32 0.0, %v1284
        %v1286 = vpop.f32.mrf.mxu0
        %1287 = vmatprep.mubr.f32.mxu0 0.0
        %1288 = vmatmul.mubr.f32.gmra.mxu0 %v1150
        %v1289 = vpop.f32.mrf.mxu0
        %v1290 = vadd.f32 0.0, %v1289
        %v1291 = vpop.f32.mrf.mxu0
        %1292 = vmatprep.mubr.f32.mxu0 0.0
        %1293 = vmatmul.mubr.f32.gmra.mxu0 %v1153
        %v1294 = vpop.f32.mrf.mxu0
        %v1295 = vadd.f32 0.0, %v1294
        %v1296 = vpop.f32.mrf.mxu0
        %1297 = vmatprep.mubr.f32.mxu0 0.0
        %1298 = vmatmul.mubr.f32.gmra.mxu0 %v1156
        %v1299 = vpop.f32.mrf.mxu0
        %v1300 = vadd.f32 0.0, %v1299
        %v1301 = vpop.f32.mrf.mxu0
        %1302 = vdwg.mxu0
        %v1304 = vsel %vm341, %v1069, 0
        %v1307 = vsel %vm341, %v1070, 0
        %v1310 = vsel %vm341, %v1071, 0
        %v1313 = vsel %vm341, %v1072, 0
        %v1316 = vsel %vm341, %v1073, 0
        %v1319 = vsel %vm341, %v1074, 0
        %v1322 = vsel %vm341, %v1075, 0
        %v1325 = vsel %vm341, %v1076, 0
        %v1328 = vsel %vm341, %v1077, 0
        %v1331 = vsel %vm341, %v1078, 0
        %v1334 = vsel %vm341, %v1079, 0
        %v1337 = vsel %vm341, %v1080, 0
        %v1340 = vsel %vm341, %v1081, 0
        %v1343 = vsel %vm341, %v1082, 0
        %v1346 = vsel %vm341, %v1083, 0
        %v1349 = vsel %vm341, %v1084, 0
        %1351 = vmatprep.subr.mxu0 0.0
        %1352 = vmatpush1.msra.mxu0 0.0
        %1353 = vmatprep.subr.mxu0 0.0
        %1354 = vmatpush1.msra.mxu0 0.0
        %1355 = vmatprep.subr.mxu0 0.0
        %1356 = vmatpush1.msra.mxu0 0.0
        %1357 = vmatprep.subr.mxu0 0.0
        %1358 = vmatpush1.msra.mxu0 0.0
        %1359 = vmatprep.subr.mxu0 0.0
        %1360 = vmatpush1.msra.mxu0 0.0
        %1361 = vmatprep.subr.mxu0 0.0
        %1362 = vmatpush1.msra.mxu0 0.0
        %1363 = vmatprep.subr.mxu0 0.0
        %1364 = vmatpush1.msra.mxu0 0.0
        %1365 = vmatprep.subr.mxu0 0.0
        %1366 = vmatpush1.msra.mxu0 0.0
        %1367 = vmatprep.subr.mxu0 0.0
        %1368 = vmatpush1.msra.mxu0 0.0
        %1369 = vmatprep.subr.mxu0 0.0
        %1370 = vmatpush1.msra.mxu0 0.0
        %1371 = vmatprep.subr.mxu0 0.0
        %1372 = vmatpush1.msra.mxu0 0.0
        %1373 = vmatprep.subr.mxu0 0.0
        %1374 = vmatpush1.msra.mxu0 0.0
        %1375 = vmatprep.subr.mxu0 0.0
        %1376 = vmatpush1.msra.mxu0 %v1088
        %1377 = vmatprep.subr.mxu0 0.0
        %1378 = vmatpush1.msra.mxu0 %v1087
        %1379 = vmatprep.subr.mxu0 0.0
        %1380 = vmatpush1.msra.mxu0 %v1086
        %1381 = vmatprep.subr.mxu0 0.0
        %1382 = vmatpush1.msra.mxu0 %v1085
        %1383 = vmatprep.subr.mxu0 0.0
        %1384 = vmatpush2.msra.mxu0 0.0
        %1385 = vmatprep.subr.mxu0 0.0
        %1386 = vmatpush2.msra.mxu0 0.0
        %1387 = vmatprep.subr.mxu0 0.0
        %1388 = vmatpush2.msra.mxu0 0.0
        %1389 = vmatprep.subr.mxu0 0.0
        %1390 = vmatpush2.msra.mxu0 0.0
        %1391 = vmatprep.subr.mxu0 0.0
        %1392 = vmatpush2.msra.mxu0 0.0
        %1393 = vmatprep.subr.mxu0 0.0
        %1394 = vmatpush2.msra.mxu0 0.0
        %1395 = vmatprep.subr.mxu0 0.0
        %1396 = vmatpush2.msra.mxu0 0.0
        %1397 = vmatprep.subr.mxu0 0.0
        %1398 = vmatpush2.msra.mxu0 0.0
        %1399 = vmatprep.subr.mxu0 0.0
        %1400 = vmatpush2.msra.mxu0 0.0
        %1401 = vmatprep.subr.mxu0 0.0
        %1402 = vmatpush2.msra.mxu0 0.0
        %1403 = vmatprep.subr.mxu0 0.0
        %1404 = vmatpush2.msra.mxu0 0.0
        %1405 = vmatprep.subr.mxu0 0.0
        %1406 = vmatpush2.msra.mxu0 0.0
        %1407 = vmatprep.subr.mxu0 0.0
        %1408 = vmatpush2.msra.mxu0 0.0
        %1409 = vmatprep.subr.mxu0 0.0
        %1410 = vmatpush2.msra.mxu0 0.0
        %1411 = vmatprep.subr.mxu0 0.0
        %1412 = vmatpush2.msra.mxu0 0.0
        %1413 = vmatprep.subr.mxu0 0.0
        %1414 = vmatpush2.msra.mxu0 0.0
        %1415 = vmatprep.mubr.f32.mxu0 0.0
        %1416 = vmatmul.mubr.f32.gmra.mxu0 %v1304
        %v1417 = vpop.f32.mrf.mxu0
        %v1418 = vadd.f32 %v1225, %v1417
        %v1419 = vpop.f32.mrf.mxu0
        %1420 = vmatprep.mubr.f32.mxu0 0.0
        %1421 = vmatmul.mubr.f32.gmra.mxu0 %v1307
        %v1422 = vpop.f32.mrf.mxu0
        %v1423 = vadd.f32 %v1230, %v1422
        %v1424 = vpop.f32.mrf.mxu0
        %1425 = vmatprep.mubr.f32.mxu0 0.0
        %1426 = vmatmul.mubr.f32.gmra.mxu0 %v1310
        %v1427 = vpop.f32.mrf.mxu0
        %v1428 = vadd.f32 %v1235, %v1427
        %v1429 = vpop.f32.mrf.mxu0
        %1430 = vmatprep.mubr.f32.mxu0 0.0
        %1431 = vmatmul.mubr.f32.gmra.mxu0 %v1313
        %v1432 = vpop.f32.mrf.mxu0
        %v1433 = vadd.f32 %v1240, %v1432
        %v1434 = vpop.f32.mrf.mxu0
        %1435 = vmatprep.mubr.f32.mxu0 0.0
        %1436 = vmatmul.mubr.f32.gmra.mxu0 %v1316
        %v1437 = vpop.f32.mrf.mxu0
        %v1438 = vadd.f32 %v1245, %v1437
        %v1439 = vpop.f32.mrf.mxu0
        %1440 = vmatprep.mubr.f32.mxu0 0.0
        %1441 = vmatmul.mubr.f32.gmra.mxu0 %v1319
        %v1442 = vpop.f32.mrf.mxu0
        %v1443 = vadd.f32 %v1250, %v1442
        %v1444 = vpop.f32.mrf.mxu0
        %1445 = vmatprep.mubr.f32.mxu0 0.0
        %1446 = vmatmul.mubr.f32.gmra.mxu0 %v1322
        %v1447 = vpop.f32.mrf.mxu0
        %v1448 = vadd.f32 %v1255, %v1447
        %v1449 = vpop.f32.mrf.mxu0
        %1450 = vmatprep.mubr.f32.mxu0 0.0
        %1451 = vmatmul.mubr.f32.gmra.mxu0 %v1325
        %v1452 = vpop.f32.mrf.mxu0
        %v1453 = vadd.f32 %v1260, %v1452
        %v1454 = vpop.f32.mrf.mxu0
        %1455 = vmatprep.mubr.f32.mxu0 0.0
        %1456 = vmatmul.mubr.f32.gmra.mxu0 %v1328
        %v1457 = vpop.f32.mrf.mxu0
        %v1458 = vadd.f32 %v1265, %v1457
        %v1459 = vpop.f32.mrf.mxu0
        %1460 = vmatprep.mubr.f32.mxu0 0.0
        %1461 = vmatmul.mubr.f32.gmra.mxu0 %v1331
        %v1462 = vpop.f32.mrf.mxu0
        %v1463 = vadd.f32 %v1270, %v1462
        %v1464 = vpop.f32.mrf.mxu0
        %1465 = vmatprep.mubr.f32.mxu0 0.0
        %1466 = vmatmul.mubr.f32.gmra.mxu0 %v1334
        %v1467 = vpop.f32.mrf.mxu0
        %v1468 = vadd.f32 %v1275, %v1467
        %v1469 = vpop.f32.mrf.mxu0
        %1470 = vmatprep.mubr.f32.mxu0 0.0
        %1471 = vmatmul.mubr.f32.gmra.mxu0 %v1337
        %v1472 = vpop.f32.mrf.mxu0
        %v1473 = vadd.f32 %v1280, %v1472
        %v1474 = vpop.f32.mrf.mxu0
        %1475 = vmatprep.mubr.f32.mxu0 0.0
        %1476 = vmatmul.mubr.f32.gmra.mxu0 %v1340
        %v1477 = vpop.f32.mrf.mxu0
        %v1478 = vadd.f32 %v1285, %v1477
        %v1479 = vpop.f32.mrf.mxu0
        %1480 = vmatprep.mubr.f32.mxu0 0.0
        %1481 = vmatmul.mubr.f32.gmra.mxu0 %v1343
        %v1482 = vpop.f32.mrf.mxu0
        %v1483 = vadd.f32 %v1290, %v1482
        %v1484 = vpop.f32.mrf.mxu0
        %1485 = vmatprep.mubr.f32.mxu0 0.0
        %1486 = vmatmul.mubr.f32.gmra.mxu0 %v1346
        %v1487 = vpop.f32.mrf.mxu0
        %v1488 = vadd.f32 %v1295, %v1487
        %v1489 = vpop.f32.mrf.mxu0
        %1490 = vmatprep.mubr.f32.mxu0 0.0
        %1491 = vmatmul.mubr.f32.gmra.mxu0 %v1349
        %v1492 = vpop.f32.mrf.mxu0
        %v1493 = vadd.f32 %v1300, %v1492
        %v1494 = vpop.f32.mrf.mxu0
        %1495 = vdwg.mxu0
        %v1496 = vld [vmem:[#allocation2 + $0x9] sm:$0xff]
        %v1497 = vld [vmem:[#allocation2 + $0x11] sm:$0xff]
        %v1498 = vld [vmem:[#allocation2 + $0x19] sm:$0xff]
        %v1499 = vld [vmem:[#allocation2 + $0x21] sm:$0xff]
        %v1500 = vld [vmem:[#allocation2 + $0x29] sm:$0xff]
        %v1501 = vld [vmem:[#allocation2 + $0x31] sm:$0xff]
        %v1502 = vld [vmem:[#allocation2 + $0x39] sm:$0xff]
        %v1503 = vld [vmem:[#allocation2 + $0x41] sm:$0xff]
        %v1504 = vld [vmem:[#allocation2 + $0x49] sm:$0xff]
        %v1505 = vld [vmem:[#allocation2 + $0x51] sm:$0xff]
        %v1506 = vld [vmem:[#allocation2 + $0x59] sm:$0xff]
        %v1507 = vld [vmem:[#allocation2 + $0x61] sm:$0xff]
        %v1508 = vld [vmem:[#allocation2 + $0x69] sm:$0xff]
        %v1509 = vld [vmem:[#allocation2 + $0x71] sm:$0xff]
        %v1510 = vld [vmem:[#allocation2 + $0x79] sm:$0xff]
        %v1511 = vld [vmem:[#allocation2 + $0x81] sm:$0xff]
        %vm1512 = vcmp.lt.s32.totalorder %v989, 15
        %vm1513 = vcmp.lt.s32.totalorder %v990, 15
        %vm1514 = vcmp.lt.s32.totalorder %v991, 15
        %vm1515 = vcmp.lt.s32.totalorder %v992, 15
        %vm1516 = vcmp.lt.s32.totalorder %v993, 15
        %vm1517 = vcmp.lt.s32.totalorder %v994, 15
        %vm1518 = vcmp.lt.s32.totalorder %v995, 15
        %vm1519 = vcmp.lt.s32.totalorder %v996, 15
        %vm1520 = vcmp.lt.s32.totalorder %v997, 15
        %vm1521 = vcmp.lt.s32.totalorder %v998, 15
        %vm1522 = vcmp.lt.s32.totalorder %v999, 15
        %vm1523 = vcmp.lt.s32.totalorder %v1000, 15
        %vm1524 = vcmp.lt.s32.totalorder %v1001, 15
        %vm1525 = vcmp.lt.s32.totalorder %v1002, 15
        %vm1526 = vcmp.lt.s32.totalorder %v1003, 15
        %vm1527 = vcmp.lt.s32.totalorder %v1004, 15
        %v1528 = vsel %vm1512, 1, 0
        %v1529 = vsel %vm1513, 1, 0
        %v1530 = vsel %vm1514, 1, 0
        %v1531 = vsel %vm1515, 1, 0
        %v1532 = vsel %vm1516, 1, 0
        %v1533 = vsel %vm1517, 1, 0
        %v1534 = vsel %vm1518, 1, 0
        %v1535 = vsel %vm1519, 1, 0
        %v1536 = vsel %vm1520, 1, 0
        %v1537 = vsel %vm1521, 1, 0
        %v1538 = vsel %vm1522, 1, 0
        %v1539 = vsel %vm1523, 1, 0
        %v1540 = vsel %vm1524, 1, 0
        %v1541 = vsel %vm1525, 1, 0
        %v1542 = vsel %vm1526, 1, 0
        %v1543 = vsel %vm1527, 1, 0
        %vm1544 = vcmp.eq.s32.totalorder %v1528, 1
        %vm1545 = vcmp.eq.s32.totalorder %v1529, 1
        %vm1546 = vcmp.eq.s32.totalorder %v1530, 1
        %vm1547 = vcmp.eq.s32.totalorder %v1531, 1
        %vm1548 = vcmp.eq.s32.totalorder %v1532, 1
        %vm1549 = vcmp.eq.s32.totalorder %v1533, 1
        %vm1550 = vcmp.eq.s32.totalorder %v1534, 1
        %vm1551 = vcmp.eq.s32.totalorder %v1535, 1
        %vm1552 = vcmp.eq.s32.totalorder %v1536, 1
        %vm1553 = vcmp.eq.s32.totalorder %v1537, 1
        %vm1554 = vcmp.eq.s32.totalorder %v1538, 1
        %vm1555 = vcmp.eq.s32.totalorder %v1539, 1
        %vm1556 = vcmp.eq.s32.totalorder %v1540, 1
        %vm1557 = vcmp.eq.s32.totalorder %v1541, 1
        %vm1558 = vcmp.eq.s32.totalorder %v1542, 1
        %vm1559 = vcmp.eq.s32.totalorder %v1543, 1
        %v1560 = vsel %vm1544, %v1496, 0.0
        %v1561 = vsel %vm1545, %v1497, 0.0
        %v1562 = vsel %vm1546, %v1498, 0.0
        %v1563 = vsel %vm1547, %v1499, 0.0
        %v1564 = vsel %vm1548, %v1500, 0.0
        %v1565 = vsel %vm1549, %v1501, 0.0
        %v1566 = vsel %vm1550, %v1502, 0.0
        %v1567 = vsel %vm1551, %v1503, 0.0
        %v1568 = vsel %vm1552, %v1504, 0.0
        %v1569 = vsel %vm1553, %v1505, 0.0
        %v1570 = vsel %vm1554, %v1506, 0.0
        %v1571 = vsel %vm1555, %v1507, 0.0
        %v1572 = vsel %vm1556, %v1508, 0.0
        %v1573 = vsel %vm1557, %v1509, 0.0
        %v1574 = vsel %vm1558, %v1510, 0.0
        %v1575 = vsel %vm1559, %v1511, 0.0
        %s1576 = scalar_lea.vmem [#allocation8], 64
        %v1577 = vld [vmem:[%s1576] sm:$0xff]
        %v1578 = vld [vmem:[%s1576 + $0x8] sm:$0xff]
        %v1579 = vld [vmem:[%s1576 + $0x10] sm:$0xff]
        %v1580 = vld [vmem:[%s1576 + $0x18] sm:$0xff]
        %v1582 = vsel %vm341, %v1560, 0
        %v1585 = vsel %vm341, %v1561, 0
        %v1588 = vsel %vm341, %v1562, 0
        %v1591 = vsel %vm341, %v1563, 0
        %v1594 = vsel %vm341, %v1564, 0
        %v1597 = vsel %vm341, %v1565, 0
        %v1600 = vsel %vm341, %v1566, 0
        %v1603 = vsel %vm341, %v1567, 0
        %v1606 = vsel %vm341, %v1568, 0
        %v1609 = vsel %vm341, %v1569, 0
        %v1612 = vsel %vm341, %v1570, 0
        %v1615 = vsel %vm341, %v1571, 0
        %v1618 = vsel %vm341, %v1572, 0
        %v1621 = vsel %vm341, %v1573, 0
        %v1624 = vsel %vm341, %v1574, 0
        %v1627 = vsel %vm341, %v1575, 0
        %1629 = vmatprep.subr.mxu0 0.0
        %1630 = vmatpush1.msra.mxu0 0.0
        %1631 = vmatprep.subr.mxu0 0.0
        %1632 = vmatpush1.msra.mxu0 0.0
        %1633 = vmatprep.subr.mxu0 0.0
        %1634 = vmatpush1.msra.mxu0 0.0
        %1635 = vmatprep.subr.mxu0 0.0
        %1636 = vmatpush1.msra.mxu0 0.0
        %1637 = vmatprep.subr.mxu0 0.0
        %1638 = vmatpush1.msra.mxu0 0.0
        %1639 = vmatprep.subr.mxu0 0.0
        %1640 = vmatpush1.msra.mxu0 0.0
        %1641 = vmatprep.subr.mxu0 0.0
        %1642 = vmatpush1.msra.mxu0 0.0
        %1643 = vmatprep.subr.mxu0 0.0
        %1644 = vmatpush1.msra.mxu0 0.0
        %1645 = vmatprep.subr.mxu0 0.0
        %1646 = vmatpush1.msra.mxu0 0.0
        %1647 = vmatprep.subr.mxu0 0.0
        %1648 = vmatpush1.msra.mxu0 0.0
        %1649 = vmatprep.subr.mxu0 0.0
        %1650 = vmatpush1.msra.mxu0 0.0
        %1651 = vmatprep.subr.mxu0 0.0
        %1652 = vmatpush1.msra.mxu0 0.0
        %1653 = vmatprep.subr.mxu0 0.0
        %1654 = vmatpush1.msra.mxu0 %v1580
        %1655 = vmatprep.subr.mxu0 0.0
        %1656 = vmatpush1.msra.mxu0 %v1579
        %1657 = vmatprep.subr.mxu0 0.0
        %1658 = vmatpush1.msra.mxu0 %v1578
        %1659 = vmatprep.subr.mxu0 0.0
        %1660 = vmatpush1.msra.mxu0 %v1577
        %1661 = vmatprep.subr.mxu0 0.0
        %1662 = vmatpush2.msra.mxu0 0.0
        %1663 = vmatprep.subr.mxu0 0.0
        %1664 = vmatpush2.msra.mxu0 0.0
        %1665 = vmatprep.subr.mxu0 0.0
        %1666 = vmatpush2.msra.mxu0 0.0
        %1667 = vmatprep.subr.mxu0 0.0
        %1668 = vmatpush2.msra.mxu0 0.0
        %1669 = vmatprep.subr.mxu0 0.0
        %1670 = vmatpush2.msra.mxu0 0.0
        %1671 = vmatprep.subr.mxu0 0.0
        %1672 = vmatpush2.msra.mxu0 0.0
        %1673 = vmatprep.subr.mxu0 0.0
        %1674 = vmatpush2.msra.mxu0 0.0
        %1675 = vmatprep.subr.mxu0 0.0
        %1676 = vmatpush2.msra.mxu0 0.0
        %1677 = vmatprep.subr.mxu0 0.0
        %1678 = vmatpush2.msra.mxu0 0.0
        %1679 = vmatprep.subr.mxu0 0.0
        %1680 = vmatpush2.msra.mxu0 0.0
        %1681 = vmatprep.subr.mxu0 0.0
        %1682 = vmatpush2.msra.mxu0 0.0
        %1683 = vmatprep.subr.mxu0 0.0
        %1684 = vmatpush2.msra.mxu0 0.0
        %1685 = vmatprep.subr.mxu0 0.0
        %1686 = vmatpush2.msra.mxu0 0.0
        %1687 = vmatprep.subr.mxu0 0.0
        %1688 = vmatpush2.msra.mxu0 0.0
        %1689 = vmatprep.subr.mxu0 0.0
        %1690 = vmatpush2.msra.mxu0 0.0
        %1691 = vmatprep.subr.mxu0 0.0
        %1692 = vmatpush2.msra.mxu0 0.0
        %1693 = vmatprep.mubr.f32.mxu0 0.0
        %1694 = vmatmul.mubr.f32.gmra.mxu0 %v1582
        %v1695 = vpop.f32.mrf.mxu0
        %v1696 = vadd.f32 0.0, %v1695
        %v1697 = vpop.f32.mrf.mxu0
        %1698 = vmatprep.mubr.f32.mxu0 0.0
        %1699 = vmatmul.mubr.f32.gmra.mxu0 %v1585
        %v1700 = vpop.f32.mrf.mxu0
        %v1701 = vadd.f32 0.0, %v1700
        %v1702 = vpop.f32.mrf.mxu0
        %1703 = vmatprep.mubr.f32.mxu0 0.0
        %1704 = vmatmul.mubr.f32.gmra.mxu0 %v1588
        %v1705 = vpop.f32.mrf.mxu0
        %v1706 = vadd.f32 0.0, %v1705
        %v1707 = vpop.f32.mrf.mxu0
        %1708 = vmatprep.mubr.f32.mxu0 0.0
        %1709 = vmatmul.mubr.f32.gmra.mxu0 %v1591
        %v1710 = vpop.f32.mrf.mxu0
        %v1711 = vadd.f32 0.0, %v1710
        %v1712 = vpop.f32.mrf.mxu0
        %1713 = vmatprep.mubr.f32.mxu0 0.0
        %1714 = vmatmul.mubr.f32.gmra.mxu0 %v1594
        %v1715 = vpop.f32.mrf.mxu0
        %v1716 = vadd.f32 0.0, %v1715
        %v1717 = vpop.f32.mrf.mxu0
        %1718 = vmatprep.mubr.f32.mxu0 0.0
        %1719 = vmatmul.mubr.f32.gmra.mxu0 %v1597
        %v1720 = vpop.f32.mrf.mxu0
        %v1721 = vadd.f32 0.0, %v1720
        %v1722 = vpop.f32.mrf.mxu0
        %1723 = vmatprep.mubr.f32.mxu0 0.0
        %1724 = vmatmul.mubr.f32.gmra.mxu0 %v1600
        %v1725 = vpop.f32.mrf.mxu0
        %v1726 = vadd.f32 0.0, %v1725
        %v1727 = vpop.f32.mrf.mxu0
        %1728 = vmatprep.mubr.f32.mxu0 0.0
        %1729 = vmatmul.mubr.f32.gmra.mxu0 %v1603
        %v1730 = vpop.f32.mrf.mxu0
        %v1731 = vadd.f32 0.0, %v1730
        %v1732 = vpop.f32.mrf.mxu0
        %1733 = vmatprep.mubr.f32.mxu0 0.0
        %1734 = vmatmul.mubr.f32.gmra.mxu0 %v1606
        %v1735 = vpop.f32.mrf.mxu0
        %v1736 = vadd.f32 0.0, %v1735
        %v1737 = vpop.f32.mrf.mxu0
        %1738 = vmatprep.mubr.f32.mxu0 0.0
        %1739 = vmatmul.mubr.f32.gmra.mxu0 %v1609
        %v1740 = vpop.f32.mrf.mxu0
        %v1741 = vadd.f32 0.0, %v1740
        %v1742 = vpop.f32.mrf.mxu0
        %1743 = vmatprep.mubr.f32.mxu0 0.0
        %1744 = vmatmul.mubr.f32.gmra.mxu0 %v1612
        %v1745 = vpop.f32.mrf.mxu0
        %v1746 = vadd.f32 0.0, %v1745
        %v1747 = vpop.f32.mrf.mxu0
        %1748 = vmatprep.mubr.f32.mxu0 0.0
        %1749 = vmatmul.mubr.f32.gmra.mxu0 %v1615
        %v1750 = vpop.f32.mrf.mxu0
        %v1751 = vadd.f32 0.0, %v1750
        %v1752 = vpop.f32.mrf.mxu0
        %1753 = vmatprep.mubr.f32.mxu0 0.0
        %1754 = vmatmul.mubr.f32.gmra.mxu0 %v1618
        %v1755 = vpop.f32.mrf.mxu0
        %v1756 = vadd.f32 0.0, %v1755
        %v1757 = vpop.f32.mrf.mxu0
        %1758 = vmatprep.mubr.f32.mxu0 0.0
        %1759 = vmatmul.mubr.f32.gmra.mxu0 %v1621
        %v1760 = vpop.f32.mrf.mxu0
        %v1761 = vadd.f32 0.0, %v1760
        %v1762 = vpop.f32.mrf.mxu0
        %1763 = vmatprep.mubr.f32.mxu0 0.0
        %1764 = vmatmul.mubr.f32.gmra.mxu0 %v1624
        %v1765 = vpop.f32.mrf.mxu0
        %v1766 = vadd.f32 0.0, %v1765
        %v1767 = vpop.f32.mrf.mxu0
        %1768 = vmatprep.mubr.f32.mxu0 0.0
        %1769 = vmatmul.mubr.f32.gmra.mxu0 %v1627
        %v1770 = vpop.f32.mrf.mxu0
        %v1771 = vadd.f32 0.0, %v1770
        %v1772 = vpop.f32.mrf.mxu0
        %1773 = vdwg.mxu0
        %v1774 = vadd.f32 %v1418, %v1696
        %v1775 = vadd.f32 %v1423, %v1701
        %v1776 = vadd.f32 %v1428, %v1706
        %v1777 = vadd.f32 %v1433, %v1711
        %v1778 = vadd.f32 %v1438, %v1716
        %v1779 = vadd.f32 %v1443, %v1721
        %v1780 = vadd.f32 %v1448, %v1726
        %v1781 = vadd.f32 %v1453, %v1731
        %v1782 = vadd.f32 %v1458, %v1736
        %v1783 = vadd.f32 %v1463, %v1741
        %v1784 = vadd.f32 %v1468, %v1746
        %v1785 = vadd.f32 %v1473, %v1751
        %v1786 = vadd.f32 %v1478, %v1756
        %v1787 = vadd.f32 %v1483, %v1761
        %v1788 = vadd.f32 %v1488, %v1766
        %v1789 = vadd.f32 %v1493, %v1771
        %v1790 = vld [vmem:[#allocation2 + $0x17] sm:$0xff]
        %v1791 = vld [vmem:[#allocation2 + $0x1f] sm:$0xff]
        %v1792 = vld [vmem:[#allocation2 + $0x27] sm:$0xff]
        %v1793 = vld [vmem:[#allocation2 + $0x2f] sm:$0xff]
        %v1794 = vld [vmem:[#allocation2 + $0x37] sm:$0xff]
        %v1795 = vld [vmem:[#allocation2 + $0x3f] sm:$0xff]
        %v1796 = vld [vmem:[#allocation2 + $0x47] sm:$0xff]
        %v1797 = vld [vmem:[#allocation2 + $0x4f] sm:$0xff]
        %v1798 = vld [vmem:[#allocation2 + $0x57] sm:$0xff]
        %v1799 = vld [vmem:[#allocation2 + $0x5f] sm:$0xff]
        %v1800 = vld [vmem:[#allocation2 + $0x67] sm:$0xff]
        %v1801 = vld [vmem:[#allocation2 + $0x6f] sm:$0xff]
        %v1802 = vld [vmem:[#allocation2 + $0x77] sm:$0xff]
        %v1803 = vld [vmem:[#allocation2 + $0x7f] sm:$0xff]
        %v1804 = vld [vmem:[#allocation2 + $0x87] sm:$0xff]
        %v1805 = vld [vmem:[#allocation2 + $0x8f] sm:$0xff]
        %v1806 = vsel %vm1053, %v1790, 0.0
        %v1807 = vsel %vm1054, %v1791, 0.0
        %v1808 = vsel %vm1055, %v1792, 0.0
        %v1809 = vsel %vm1056, %v1793, 0.0
        %v1810 = vsel %vm1057, %v1794, 0.0
        %v1811 = vsel %vm1058, %v1795, 0.0
        %v1812 = vsel %vm1059, %v1796, 0.0
        %v1813 = vsel %vm1060, %v1797, 0.0
        %v1814 = vsel %vm1061, %v1798, 0.0
        %v1815 = vsel %vm1062, %v1799, 0.0
        %v1816 = vsel %vm1063, %v1800, 0.0
        %v1817 = vsel %vm1064, %v1801, 0.0
        %v1818 = vsel %vm1065, %v1802, 0.0
        %v1819 = vsel %vm1066, %v1803, 0.0
        %v1820 = vsel %vm1067, %v1804, 0.0
        %v1821 = vsel %vm1068, %v1805, 0.0
        %s1822 = scalar_lea.vmem [#allocation8], 96
        %v1823 = vld [vmem:[%s1822] sm:$0xff]
        %v1824 = vld [vmem:[%s1822 + $0x8] sm:$0xff]
        %v1825 = vld [vmem:[%s1822 + $0x10] sm:$0xff]
        %v1826 = vld [vmem:[%s1822 + $0x18] sm:$0xff]
        %v1828 = vsel %vm341, %v1806, 0
        %v1831 = vsel %vm341, %v1807, 0
        %v1834 = vsel %vm341, %v1808, 0
        %v1837 = vsel %vm341, %v1809, 0
        %v1840 = vsel %vm341, %v1810, 0
        %v1843 = vsel %vm341, %v1811, 0
        %v1846 = vsel %vm341, %v1812, 0
        %v1849 = vsel %vm341, %v1813, 0
        %v1852 = vsel %vm341, %v1814, 0
        %v1855 = vsel %vm341, %v1815, 0
        %v1858 = vsel %vm341, %v1816, 0
        %v1861 = vsel %vm341, %v1817, 0
        %v1864 = vsel %vm341, %v1818, 0
        %v1867 = vsel %vm341, %v1819, 0
        %v1870 = vsel %vm341, %v1820, 0
        %v1873 = vsel %vm341, %v1821, 0
        %1875 = vmatprep.subr.mxu0 0.0
        %1876 = vmatpush1.msra.mxu0 0.0
        %1877 = vmatprep.subr.mxu0 0.0
        %1878 = vmatpush1.msra.mxu0 0.0
        %1879 = vmatprep.subr.mxu0 0.0
        %1880 = vmatpush1.msra.mxu0 0.0
        %1881 = vmatprep.subr.mxu0 0.0
        %1882 = vmatpush1.msra.mxu0 0.0
        %1883 = vmatprep.subr.mxu0 0.0
        %1884 = vmatpush1.msra.mxu0 0.0
        %1885 = vmatprep.subr.mxu0 0.0
        %1886 = vmatpush1.msra.mxu0 0.0
        %1887 = vmatprep.subr.mxu0 0.0
        %1888 = vmatpush1.msra.mxu0 0.0
        %1889 = vmatprep.subr.mxu0 0.0
        %1890 = vmatpush1.msra.mxu0 0.0
        %1891 = vmatprep.subr.mxu0 0.0
        %1892 = vmatpush1.msra.mxu0 0.0
        %1893 = vmatprep.subr.mxu0 0.0
        %1894 = vmatpush1.msra.mxu0 0.0
        %1895 = vmatprep.subr.mxu0 0.0
        %1896 = vmatpush1.msra.mxu0 0.0
        %1897 = vmatprep.subr.mxu0 0.0
        %1898 = vmatpush1.msra.mxu0 0.0
        %1899 = vmatprep.subr.mxu0 0.0
        %1900 = vmatpush1.msra.mxu0 %v1826
        %1901 = vmatprep.subr.mxu0 0.0
        %1902 = vmatpush1.msra.mxu0 %v1825
        %1903 = vmatprep.subr.mxu0 0.0
        %1904 = vmatpush1.msra.mxu0 %v1824
        %1905 = vmatprep.subr.mxu0 0.0
        %1906 = vmatpush1.msra.mxu0 %v1823
        %1907 = vmatprep.subr.mxu0 0.0
        %1908 = vmatpush2.msra.mxu0 0.0
        %1909 = vmatprep.subr.mxu0 0.0
        %1910 = vmatpush2.msra.mxu0 0.0
        %1911 = vmatprep.subr.mxu0 0.0
        %1912 = vmatpush2.msra.mxu0 0.0
        %1913 = vmatprep.subr.mxu0 0.0
        %1914 = vmatpush2.msra.mxu0 0.0
        %1915 = vmatprep.subr.mxu0 0.0
        %1916 = vmatpush2.msra.mxu0 0.0
        %1917 = vmatprep.subr.mxu0 0.0
        %1918 = vmatpush2.msra.mxu0 0.0
        %1919 = vmatprep.subr.mxu0 0.0
        %1920 = vmatpush2.msra.mxu0 0.0
        %1921 = vmatprep.subr.mxu0 0.0
        %1922 = vmatpush2.msra.mxu0 0.0
        %1923 = vmatprep.subr.mxu0 0.0
        %1924 = vmatpush2.msra.mxu0 0.0
        %1925 = vmatprep.subr.mxu0 0.0
        %1926 = vmatpush2.msra.mxu0 0.0
        %1927 = vmatprep.subr.mxu0 0.0
        %1928 = vmatpush2.msra.mxu0 0.0
        %1929 = vmatprep.subr.mxu0 0.0
        %1930 = vmatpush2.msra.mxu0 0.0
        %1931 = vmatprep.subr.mxu0 0.0
        %1932 = vmatpush2.msra.mxu0 0.0
        %1933 = vmatprep.subr.mxu0 0.0
        %1934 = vmatpush2.msra.mxu0 0.0
        %1935 = vmatprep.subr.mxu0 0.0
        %1936 = vmatpush2.msra.mxu0 0.0
        %1937 = vmatprep.subr.mxu0 0.0
        %1938 = vmatpush2.msra.mxu0 0.0
        %1939 = vmatprep.mubr.f32.mxu0 0.0
        %1940 = vmatmul.mubr.f32.gmra.mxu0 %v1828
        %v1941 = vpop.f32.mrf.mxu0
        %v1942 = vadd.f32 0.0, %v1941
        %v1943 = vpop.f32.mrf.mxu0
        %1944 = vmatprep.mubr.f32.mxu0 0.0
        %1945 = vmatmul.mubr.f32.gmra.mxu0 %v1831
        %v1946 = vpop.f32.mrf.mxu0
        %v1947 = vadd.f32 0.0, %v1946
        %v1948 = vpop.f32.mrf.mxu0
        %1949 = vmatprep.mubr.f32.mxu0 0.0
        %1950 = vmatmul.mubr.f32.gmra.mxu0 %v1834
        %v1951 = vpop.f32.mrf.mxu0
        %v1952 = vadd.f32 0.0, %v1951
        %v1953 = vpop.f32.mrf.mxu0
        %1954 = vmatprep.mubr.f32.mxu0 0.0
        %1955 = vmatmul.mubr.f32.gmra.mxu0 %v1837
        %v1956 = vpop.f32.mrf.mxu0
        %v1957 = vadd.f32 0.0, %v1956
        %v1958 = vpop.f32.mrf.mxu0
        %1959 = vmatprep.mubr.f32.mxu0 0.0
        %1960 = vmatmul.mubr.f32.gmra.mxu0 %v1840
        %v1961 = vpop.f32.mrf.mxu0
        %v1962 = vadd.f32 0.0, %v1961
        %v1963 = vpop.f32.mrf.mxu0
        %1964 = vmatprep.mubr.f32.mxu0 0.0
        %1965 = vmatmul.mubr.f32.gmra.mxu0 %v1843
        %v1966 = vpop.f32.mrf.mxu0
        %v1967 = vadd.f32 0.0, %v1966
        %v1968 = vpop.f32.mrf.mxu0
        %1969 = vmatprep.mubr.f32.mxu0 0.0
        %1970 = vmatmul.mubr.f32.gmra.mxu0 %v1846
        %v1971 = vpop.f32.mrf.mxu0
        %v1972 = vadd.f32 0.0, %v1971
        %v1973 = vpop.f32.mrf.mxu0
        %1974 = vmatprep.mubr.f32.mxu0 0.0
        %1975 = vmatmul.mubr.f32.gmra.mxu0 %v1849
        %v1976 = vpop.f32.mrf.mxu0
        %v1977 = vadd.f32 0.0, %v1976
        %v1978 = vpop.f32.mrf.mxu0
        %1979 = vmatprep.mubr.f32.mxu0 0.0
        %1980 = vmatmul.mubr.f32.gmra.mxu0 %v1852
        %v1981 = vpop.f32.mrf.mxu0
        %v1982 = vadd.f32 0.0, %v1981
        %v1983 = vpop.f32.mrf.mxu0
        %1984 = vmatprep.mubr.f32.mxu0 0.0
        %1985 = vmatmul.mubr.f32.gmra.mxu0 %v1855
        %v1986 = vpop.f32.mrf.mxu0
        %v1987 = vadd.f32 0.0, %v1986
        %v1988 = vpop.f32.mrf.mxu0
        %1989 = vmatprep.mubr.f32.mxu0 0.0
        %1990 = vmatmul.mubr.f32.gmra.mxu0 %v1858
        %v1991 = vpop.f32.mrf.mxu0
        %v1992 = vadd.f32 0.0, %v1991
        %v1993 = vpop.f32.mrf.mxu0
        %1994 = vmatprep.mubr.f32.mxu0 0.0
        %1995 = vmatmul.mubr.f32.gmra.mxu0 %v1861
        %v1996 = vpop.f32.mrf.mxu0
        %v1997 = vadd.f32 0.0, %v1996
        %v1998 = vpop.f32.mrf.mxu0
        %1999 = vmatprep.mubr.f32.mxu0 0.0
        %2000 = vmatmul.mubr.f32.gmra.mxu0 %v1864
        %v2001 = vpop.f32.mrf.mxu0
        %v2002 = vadd.f32 0.0, %v2001
        %v2003 = vpop.f32.mrf.mxu0
        %2004 = vmatprep.mubr.f32.mxu0 0.0
        %2005 = vmatmul.mubr.f32.gmra.mxu0 %v1867
        %v2006 = vpop.f32.mrf.mxu0
        %v2007 = vadd.f32 0.0, %v2006
        %v2008 = vpop.f32.mrf.mxu0
        %2009 = vmatprep.mubr.f32.mxu0 0.0
        %2010 = vmatmul.mubr.f32.gmra.mxu0 %v1870
        %v2011 = vpop.f32.mrf.mxu0
        %v2012 = vadd.f32 0.0, %v2011
        %v2013 = vpop.f32.mrf.mxu0
        %2014 = vmatprep.mubr.f32.mxu0 0.0
        %2015 = vmatmul.mubr.f32.gmra.mxu0 %v1873
        %v2016 = vpop.f32.mrf.mxu0
        %v2017 = vadd.f32 0.0, %v2016
        %v2018 = vpop.f32.mrf.mxu0
        %2019 = vdwg.mxu0
        %v2020 = vadd.f32 %v1774, %v1942
        %v2021 = vadd.f32 %v1775, %v1947
        %v2022 = vadd.f32 %v1776, %v1952
        %v2023 = vadd.f32 %v1777, %v1957
        %v2024 = vadd.f32 %v1778, %v1962
        %v2025 = vadd.f32 %v1779, %v1967
        %v2026 = vadd.f32 %v1780, %v1972
        %v2027 = vadd.f32 %v1781, %v1977
        %v2028 = vadd.f32 %v1782, %v1982
        %v2029 = vadd.f32 %v1783, %v1987
        %v2030 = vadd.f32 %v1784, %v1992
        %v2031 = vadd.f32 %v1785, %v1997
        %v2032 = vadd.f32 %v1786, %v2002
        %v2033 = vadd.f32 %v1787, %v2007
        %v2034 = vadd.f32 %v1788, %v2012
        %v2035 = vadd.f32 %v1789, %v2017
        %v2036 = vld [vmem:[#allocation2 + $0x18] sm:$0xff]
        %v2037 = vld [vmem:[#allocation2 + $0x20] sm:$0xff]
        %v2038 = vld [vmem:[#allocation2 + $0x28] sm:$0xff]
        %v2039 = vld [vmem:[#allocation2 + $0x30] sm:$0xff]
        %v2040 = vld [vmem:[#allocation2 + $0x38] sm:$0xff]
        %v2041 = vld [vmem:[#allocation2 + $0x40] sm:$0xff]
        %v2042 = vld [vmem:[#allocation2 + $0x48] sm:$0xff]
        %v2043 = vld [vmem:[#allocation2 + $0x50] sm:$0xff]
        %v2044 = vld [vmem:[#allocation2 + $0x58] sm:$0xff]
        %v2045 = vld [vmem:[#allocation2 + $0x60] sm:$0xff]
        %v2046 = vld [vmem:[#allocation2 + $0x68] sm:$0xff]
        %v2047 = vld [vmem:[#allocation2 + $0x70] sm:$0xff]
        %v2048 = vld [vmem:[#allocation2 + $0x78] sm:$0xff]
        %v2049 = vld [vmem:[#allocation2 + $0x80] sm:$0xff]
        %v2050 = vld [vmem:[#allocation2 + $0x88] sm:$0xff]
        %v2051 = vld [vmem:[#allocation2 + $0x90] sm:$0xff]
        %s2052 = scalar_lea.vmem [#allocation8], 128
        %v2053 = vld [vmem:[%s2052] sm:$0xff]
        %v2054 = vld [vmem:[%s2052 + $0x8] sm:$0xff]
        %v2055 = vld [vmem:[%s2052 + $0x10] sm:$0xff]
        %v2056 = vld [vmem:[%s2052 + $0x18] sm:$0xff]
        %v2058 = vsel %vm341, %v2036, 0
        %v2061 = vsel %vm341, %v2037, 0
        %v2064 = vsel %vm341, %v2038, 0
        %v2067 = vsel %vm341, %v2039, 0
        %v2070 = vsel %vm341, %v2040, 0
        %v2073 = vsel %vm341, %v2041, 0
        %v2076 = vsel %vm341, %v2042, 0
        %v2079 = vsel %vm341, %v2043, 0
        %v2082 = vsel %vm341, %v2044, 0
        %v2085 = vsel %vm341, %v2045, 0
        %v2088 = vsel %vm341, %v2046, 0
        %v2091 = vsel %vm341, %v2047, 0
        %v2094 = vsel %vm341, %v2048, 0
        %v2097 = vsel %vm341, %v2049, 0
        %v2100 = vsel %vm341, %v2050, 0
        %v2103 = vsel %vm341, %v2051, 0
        %2105 = vmatprep.subr.mxu0 0.0
        %2106 = vmatpush1.msra.mxu0 0.0
        %2107 = vmatprep.subr.mxu0 0.0
        %2108 = vmatpush1.msra.mxu0 0.0
        %2109 = vmatprep.subr.mxu0 0.0
        %2110 = vmatpush1.msra.mxu0 0.0
        %2111 = vmatprep.subr.mxu0 0.0
        %2112 = vmatpush1.msra.mxu0 0.0
        %2113 = vmatprep.subr.mxu0 0.0
        %2114 = vmatpush1.msra.mxu0 0.0
        %2115 = vmatprep.subr.mxu0 0.0
        %2116 = vmatpush1.msra.mxu0 0.0
        %2117 = vmatprep.subr.mxu0 0.0
        %2118 = vmatpush1.msra.mxu0 0.0
        %2119 = vmatprep.subr.mxu0 0.0
        %2120 = vmatpush1.msra.mxu0 0.0
        %2121 = vmatprep.subr.mxu0 0.0
        %2122 = vmatpush1.msra.mxu0 0.0
        %2123 = vmatprep.subr.mxu0 0.0
        %2124 = vmatpush1.msra.mxu0 0.0
        %2125 = vmatprep.subr.mxu0 0.0
        %2126 = vmatpush1.msra.mxu0 0.0
        %2127 = vmatprep.subr.mxu0 0.0
        %2128 = vmatpush1.msra.mxu0 0.0
        %2129 = vmatprep.subr.mxu0 0.0
        %2130 = vmatpush1.msra.mxu0 %v2056
        %2131 = vmatprep.subr.mxu0 0.0
        %2132 = vmatpush1.msra.mxu0 %v2055
        %2133 = vmatprep.subr.mxu0 0.0
        %2134 = vmatpush1.msra.mxu0 %v2054
        %2135 = vmatprep.subr.mxu0 0.0
        %2136 = vmatpush1.msra.mxu0 %v2053
        %2137 = vmatprep.subr.mxu0 0.0
        %2138 = vmatpush2.msra.mxu0 0.0
        %2139 = vmatprep.subr.mxu0 0.0
        %2140 = vmatpush2.msra.mxu0 0.0
        %2141 = vmatprep.subr.mxu0 0.0
        %2142 = vmatpush2.msra.mxu0 0.0
        %2143 = vmatprep.subr.mxu0 0.0
        %2144 = vmatpush2.msra.mxu0 0.0
        %2145 = vmatprep.subr.mxu0 0.0
        %2146 = vmatpush2.msra.mxu0 0.0
        %2147 = vmatprep.subr.mxu0 0.0
        %2148 = vmatpush2.msra.mxu0 0.0
        %2149 = vmatprep.subr.mxu0 0.0
        %2150 = vmatpush2.msra.mxu0 0.0
        %2151 = vmatprep.subr.mxu0 0.0
        %2152 = vmatpush2.msra.mxu0 0.0
        %2153 = vmatprep.subr.mxu0 0.0
        %2154 = vmatpush2.msra.mxu0 0.0
        %2155 = vmatprep.subr.mxu0 0.0
        %2156 = vmatpush2.msra.mxu0 0.0
        %2157 = vmatprep.subr.mxu0 0.0
        %2158 = vmatpush2.msra.mxu0 0.0
        %2159 = vmatprep.subr.mxu0 0.0
        %2160 = vmatpush2.msra.mxu0 0.0
        %2161 = vmatprep.subr.mxu0 0.0
        %2162 = vmatpush2.msra.mxu0 0.0
        %2163 = vmatprep.subr.mxu0 0.0
        %2164 = vmatpush2.msra.mxu0 0.0
        %2165 = vmatprep.subr.mxu0 0.0
        %2166 = vmatpush2.msra.mxu0 0.0
        %2167 = vmatprep.subr.mxu0 0.0
        %2168 = vmatpush2.msra.mxu0 0.0
        %2169 = vmatprep.mubr.f32.mxu0 0.0
        %2170 = vmatmul.mubr.f32.gmra.mxu0 %v2058
        %v2171 = vpop.f32.mrf.mxu0
        %v2172 = vadd.f32 0.0, %v2171
        %v2173 = vpop.f32.mrf.mxu0
        %2174 = vmatprep.mubr.f32.mxu0 0.0
        %2175 = vmatmul.mubr.f32.gmra.mxu0 %v2061
        %v2176 = vpop.f32.mrf.mxu0
        %v2177 = vadd.f32 0.0, %v2176
        %v2178 = vpop.f32.mrf.mxu0
        %2179 = vmatprep.mubr.f32.mxu0 0.0
        %2180 = vmatmul.mubr.f32.gmra.mxu0 %v2064
        %v2181 = vpop.f32.mrf.mxu0
        %v2182 = vadd.f32 0.0, %v2181
        %v2183 = vpop.f32.mrf.mxu0
        %2184 = vmatprep.mubr.f32.mxu0 0.0
        %2185 = vmatmul.mubr.f32.gmra.mxu0 %v2067
        %v2186 = vpop.f32.mrf.mxu0
        %v2187 = vadd.f32 0.0, %v2186
        %v2188 = vpop.f32.mrf.mxu0
        %2189 = vmatprep.mubr.f32.mxu0 0.0
        %2190 = vmatmul.mubr.f32.gmra.mxu0 %v2070
        %v2191 = vpop.f32.mrf.mxu0
        %v2192 = vadd.f32 0.0, %v2191
        %v2193 = vpop.f32.mrf.mxu0
        %2194 = vmatprep.mubr.f32.mxu0 0.0
        %2195 = vmatmul.mubr.f32.gmra.mxu0 %v2073
        %v2196 = vpop.f32.mrf.mxu0
        %v2197 = vadd.f32 0.0, %v2196
        %v2198 = vpop.f32.mrf.mxu0
        %2199 = vmatprep.mubr.f32.mxu0 0.0
        %2200 = vmatmul.mubr.f32.gmra.mxu0 %v2076
        %v2201 = vpop.f32.mrf.mxu0
        %v2202 = vadd.f32 0.0, %v2201
        %v2203 = vpop.f32.mrf.mxu0
        %2204 = vmatprep.mubr.f32.mxu0 0.0
        %2205 = vmatmul.mubr.f32.gmra.mxu0 %v2079
        %v2206 = vpop.f32.mrf.mxu0
        %v2207 = vadd.f32 0.0, %v2206
        %v2208 = vpop.f32.mrf.mxu0
        %2209 = vmatprep.mubr.f32.mxu0 0.0
        %2210 = vmatmul.mubr.f32.gmra.mxu0 %v2082
        %v2211 = vpop.f32.mrf.mxu0
        %v2212 = vadd.f32 0.0, %v2211
        %v2213 = vpop.f32.mrf.mxu0
        %2214 = vmatprep.mubr.f32.mxu0 0.0
        %2215 = vmatmul.mubr.f32.gmra.mxu0 %v2085
        %v2216 = vpop.f32.mrf.mxu0
        %v2217 = vadd.f32 0.0, %v2216
        %v2218 = vpop.f32.mrf.mxu0
        %2219 = vmatprep.mubr.f32.mxu0 0.0
        %2220 = vmatmul.mubr.f32.gmra.mxu0 %v2088
        %v2221 = vpop.f32.mrf.mxu0
        %v2222 = vadd.f32 0.0, %v2221
        %v2223 = vpop.f32.mrf.mxu0
        %2224 = vmatprep.mubr.f32.mxu0 0.0
        %2225 = vmatmul.mubr.f32.gmra.mxu0 %v2091
        %v2226 = vpop.f32.mrf.mxu0
        %v2227 = vadd.f32 0.0, %v2226
        %v2228 = vpop.f32.mrf.mxu0
        %2229 = vmatprep.mubr.f32.mxu0 0.0
        %2230 = vmatmul.mubr.f32.gmra.mxu0 %v2094
        %v2231 = vpop.f32.mrf.mxu0
        %v2232 = vadd.f32 0.0, %v2231
        %v2233 = vpop.f32.mrf.mxu0
        %2234 = vmatprep.mubr.f32.mxu0 0.0
        %2235 = vmatmul.mubr.f32.gmra.mxu0 %v2097
        %v2236 = vpop.f32.mrf.mxu0
        %v2237 = vadd.f32 0.0, %v2236
        %v2238 = vpop.f32.mrf.mxu0
        %2239 = vmatprep.mubr.f32.mxu0 0.0
        %2240 = vmatmul.mubr.f32.gmra.mxu0 %v2100
        %v2241 = vpop.f32.mrf.mxu0
        %v2242 = vadd.f32 0.0, %v2241
        %v2243 = vpop.f32.mrf.mxu0
        %2244 = vmatprep.mubr.f32.mxu0 0.0
        %2245 = vmatmul.mubr.f32.gmra.mxu0 %v2103
        %v2246 = vpop.f32.mrf.mxu0
        %v2247 = vadd.f32 0.0, %v2246
        %v2248 = vpop.f32.mrf.mxu0
        %2249 = vdwg.mxu0
        %v2250 = vadd.f32 %v2020, %v2172
        %v2251 = vadd.f32 %v2021, %v2177
        %v2252 = vadd.f32 %v2022, %v2182
        %v2253 = vadd.f32 %v2023, %v2187
        %v2254 = vadd.f32 %v2024, %v2192
        %v2255 = vadd.f32 %v2025, %v2197
        %v2256 = vadd.f32 %v2026, %v2202
        %v2257 = vadd.f32 %v2027, %v2207
        %v2258 = vadd.f32 %v2028, %v2212
        %v2259 = vadd.f32 %v2029, %v2217
        %v2260 = vadd.f32 %v2030, %v2222
        %v2261 = vadd.f32 %v2031, %v2227
        %v2262 = vadd.f32 %v2032, %v2232
        %v2263 = vadd.f32 %v2033, %v2237
        %v2264 = vadd.f32 %v2034, %v2242
        %v2265 = vadd.f32 %v2035, %v2247
        %v2266 = vld [vmem:[#allocation2 + $0x19] sm:$0xff]
        %v2267 = vld [vmem:[#allocation2 + $0x21] sm:$0xff]
        %v2268 = vld [vmem:[#allocation2 + $0x29] sm:$0xff]
        %v2269 = vld [vmem:[#allocation2 + $0x31] sm:$0xff]
        %v2270 = vld [vmem:[#allocation2 + $0x39] sm:$0xff]
        %v2271 = vld [vmem:[#allocation2 + $0x41] sm:$0xff]
        %v2272 = vld [vmem:[#allocation2 + $0x49] sm:$0xff]
        %v2273 = vld [vmem:[#allocation2 + $0x51] sm:$0xff]
        %v2274 = vld [vmem:[#allocation2 + $0x59] sm:$0xff]
        %v2275 = vld [vmem:[#allocation2 + $0x61] sm:$0xff]
        %v2276 = vld [vmem:[#allocation2 + $0x69] sm:$0xff]
        %v2277 = vld [vmem:[#allocation2 + $0x71] sm:$0xff]
        %v2278 = vld [vmem:[#allocation2 + $0x79] sm:$0xff]
        %v2279 = vld [vmem:[#allocation2 + $0x81] sm:$0xff]
        %v2280 = vld [vmem:[#allocation2 + $0x89] sm:$0xff]
        %v2281 = vld [vmem:[#allocation2 + $0x91] sm:$0xff]
        %v2282 = vsel %vm1544, %v2266, 0.0
        %v2283 = vsel %vm1545, %v2267, 0.0
        %v2284 = vsel %vm1546, %v2268, 0.0
        %v2285 = vsel %vm1547, %v2269, 0.0
        %v2286 = vsel %vm1548, %v2270, 0.0
        %v2287 = vsel %vm1549, %v2271, 0.0
        %v2288 = vsel %vm1550, %v2272, 0.0
        %v2289 = vsel %vm1551, %v2273, 0.0
        %v2290 = vsel %vm1552, %v2274, 0.0
        %v2291 = vsel %vm1553, %v2275, 0.0
        %v2292 = vsel %vm1554, %v2276, 0.0
        %v2293 = vsel %vm1555, %v2277, 0.0
        %v2294 = vsel %vm1556, %v2278, 0.0
        %v2295 = vsel %vm1557, %v2279, 0.0
        %v2296 = vsel %vm1558, %v2280, 0.0
        %v2297 = vsel %vm1559, %v2281, 0.0
        %s2298 = scalar_lea.vmem [#allocation8], 160
        %v2299 = vld [vmem:[%s2298] sm:$0xff]
        %v2300 = vld [vmem:[%s2298 + $0x8] sm:$0xff]
        %v2301 = vld [vmem:[%s2298 + $0x10] sm:$0xff]
        %v2302 = vld [vmem:[%s2298 + $0x18] sm:$0xff]
        %v2304 = vsel %vm341, %v2282, 0
        %v2307 = vsel %vm341, %v2283, 0
        %v2310 = vsel %vm341, %v2284, 0
        %v2313 = vsel %vm341, %v2285, 0
        %v2316 = vsel %vm341, %v2286, 0
        %v2319 = vsel %vm341, %v2287, 0
        %v2322 = vsel %vm341, %v2288, 0
        %v2325 = vsel %vm341, %v2289, 0
        %v2328 = vsel %vm341, %v2290, 0
        %v2331 = vsel %vm341, %v2291, 0
        %v2334 = vsel %vm341, %v2292, 0
        %v2337 = vsel %vm341, %v2293, 0
        %v2340 = vsel %vm341, %v2294, 0
        %v2343 = vsel %vm341, %v2295, 0
        %v2346 = vsel %vm341, %v2296, 0
        %v2349 = vsel %vm341, %v2297, 0
        %2351 = vmatprep.subr.mxu0 0.0
        %2352 = vmatpush1.msra.mxu0 0.0
        %2353 = vmatprep.subr.mxu0 0.0
        %2354 = vmatpush1.msra.mxu0 0.0
        %2355 = vmatprep.subr.mxu0 0.0
        %2356 = vmatpush1.msra.mxu0 0.0
        %2357 = vmatprep.subr.mxu0 0.0
        %2358 = vmatpush1.msra.mxu0 0.0
        %2359 = vmatprep.subr.mxu0 0.0
        %2360 = vmatpush1.msra.mxu0 0.0
        %2361 = vmatprep.subr.mxu0 0.0
        %2362 = vmatpush1.msra.mxu0 0.0
        %2363 = vmatprep.subr.mxu0 0.0
        %2364 = vmatpush1.msra.mxu0 0.0
        %2365 = vmatprep.subr.mxu0 0.0
        %2366 = vmatpush1.msra.mxu0 0.0
        %2367 = vmatprep.subr.mxu0 0.0
        %2368 = vmatpush1.msra.mxu0 0.0
        %2369 = vmatprep.subr.mxu0 0.0
        %2370 = vmatpush1.msra.mxu0 0.0
        %2371 = vmatprep.subr.mxu0 0.0
        %2372 = vmatpush1.msra.mxu0 0.0
        %2373 = vmatprep.subr.mxu0 0.0
        %2374 = vmatpush1.msra.mxu0 0.0
        %2375 = vmatprep.subr.mxu0 0.0
        %2376 = vmatpush1.msra.mxu0 %v2302
        %2377 = vmatprep.subr.mxu0 0.0
        %2378 = vmatpush1.msra.mxu0 %v2301
        %2379 = vmatprep.subr.mxu0 0.0
        %2380 = vmatpush1.msra.mxu0 %v2300
        %2381 = vmatprep.subr.mxu0 0.0
        %2382 = vmatpush1.msra.mxu0 %v2299
        %2383 = vmatprep.subr.mxu0 0.0
        %2384 = vmatpush2.msra.mxu0 0.0
        %2385 = vmatprep.subr.mxu0 0.0
        %2386 = vmatpush2.msra.mxu0 0.0
        %2387 = vmatprep.subr.mxu0 0.0
        %2388 = vmatpush2.msra.mxu0 0.0
        %2389 = vmatprep.subr.mxu0 0.0
        %2390 = vmatpush2.msra.mxu0 0.0
        %2391 = vmatprep.subr.mxu0 0.0
        %2392 = vmatpush2.msra.mxu0 0.0
        %2393 = vmatprep.subr.mxu0 0.0
        %2394 = vmatpush2.msra.mxu0 0.0
        %2395 = vmatprep.subr.mxu0 0.0
        %2396 = vmatpush2.msra.mxu0 0.0
        %2397 = vmatprep.subr.mxu0 0.0
        %2398 = vmatpush2.msra.mxu0 0.0
        %2399 = vmatprep.subr.mxu0 0.0
        %2400 = vmatpush2.msra.mxu0 0.0
        %2401 = vmatprep.subr.mxu0 0.0
        %2402 = vmatpush2.msra.mxu0 0.0
        %2403 = vmatprep.subr.mxu0 0.0
        %2404 = vmatpush2.msra.mxu0 0.0
        %2405 = vmatprep.subr.mxu0 0.0
        %2406 = vmatpush2.msra.mxu0 0.0
        %2407 = vmatprep.subr.mxu0 0.0
        %2408 = vmatpush2.msra.mxu0 0.0
        %2409 = vmatprep.subr.mxu0 0.0
        %2410 = vmatpush2.msra.mxu0 0.0
        %2411 = vmatprep.subr.mxu0 0.0
        %2412 = vmatpush2.msra.mxu0 0.0
        %2413 = vmatprep.subr.mxu0 0.0
        %2414 = vmatpush2.msra.mxu0 0.0
        %2415 = vmatprep.mubr.f32.mxu0 0.0
        %2416 = vmatmul.mubr.f32.gmra.mxu0 %v2304
        %v2417 = vpop.f32.mrf.mxu0
        %v2418 = vadd.f32 0.0, %v2417
        %v2419 = vpop.f32.mrf.mxu0
        %2420 = vmatprep.mubr.f32.mxu0 0.0
        %2421 = vmatmul.mubr.f32.gmra.mxu0 %v2307
        %v2422 = vpop.f32.mrf.mxu0
        %v2423 = vadd.f32 0.0, %v2422
        %v2424 = vpop.f32.mrf.mxu0
        %2425 = vmatprep.mubr.f32.mxu0 0.0
        %2426 = vmatmul.mubr.f32.gmra.mxu0 %v2310
        %v2427 = vpop.f32.mrf.mxu0
        %v2428 = vadd.f32 0.0, %v2427
        %v2429 = vpop.f32.mrf.mxu0
        %2430 = vmatprep.mubr.f32.mxu0 0.0
        %2431 = vmatmul.mubr.f32.gmra.mxu0 %v2313
        %v2432 = vpop.f32.mrf.mxu0
        %v2433 = vadd.f32 0.0, %v2432
        %v2434 = vpop.f32.mrf.mxu0
        %2435 = vmatprep.mubr.f32.mxu0 0.0
        %2436 = vmatmul.mubr.f32.gmra.mxu0 %v2316
        %v2437 = vpop.f32.mrf.mxu0
        %v2438 = vadd.f32 0.0, %v2437
        %v2439 = vpop.f32.mrf.mxu0
        %2440 = vmatprep.mubr.f32.mxu0 0.0
        %2441 = vmatmul.mubr.f32.gmra.mxu0 %v2319
        %v2442 = vpop.f32.mrf.mxu0
        %v2443 = vadd.f32 0.0, %v2442
        %v2444 = vpop.f32.mrf.mxu0
        %2445 = vmatprep.mubr.f32.mxu0 0.0
        %2446 = vmatmul.mubr.f32.gmra.mxu0 %v2322
        %v2447 = vpop.f32.mrf.mxu0
        %v2448 = vadd.f32 0.0, %v2447
        %v2449 = vpop.f32.mrf.mxu0
        %2450 = vmatprep.mubr.f32.mxu0 0.0
        %2451 = vmatmul.mubr.f32.gmra.mxu0 %v2325
        %v2452 = vpop.f32.mrf.mxu0
        %v2453 = vadd.f32 0.0, %v2452
        %v2454 = vpop.f32.mrf.mxu0
        %2455 = vmatprep.mubr.f32.mxu0 0.0
        %2456 = vmatmul.mubr.f32.gmra.mxu0 %v2328
        %v2457 = vpop.f32.mrf.mxu0
        %v2458 = vadd.f32 0.0, %v2457
        %v2459 = vpop.f32.mrf.mxu0
        %2460 = vmatprep.mubr.f32.mxu0 0.0
        %2461 = vmatmul.mubr.f32.gmra.mxu0 %v2331
        %v2462 = vpop.f32.mrf.mxu0
        %v2463 = vadd.f32 0.0, %v2462
        %v2464 = vpop.f32.mrf.mxu0
        %2465 = vmatprep.mubr.f32.mxu0 0.0
        %2466 = vmatmul.mubr.f32.gmra.mxu0 %v2334
        %v2467 = vpop.f32.mrf.mxu0
        %v2468 = vadd.f32 0.0, %v2467
        %v2469 = vpop.f32.mrf.mxu0
        %2470 = vmatprep.mubr.f32.mxu0 0.0
        %2471 = vmatmul.mubr.f32.gmra.mxu0 %v2337
        %v2472 = vpop.f32.mrf.mxu0
        %v2473 = vadd.f32 0.0, %v2472
        %v2474 = vpop.f32.mrf.mxu0
        %2475 = vmatprep.mubr.f32.mxu0 0.0
        %2476 = vmatmul.mubr.f32.gmra.mxu0 %v2340
        %v2477 = vpop.f32.mrf.mxu0
        %v2478 = vadd.f32 0.0, %v2477
        %v2479 = vpop.f32.mrf.mxu0
        %2480 = vmatprep.mubr.f32.mxu0 0.0
        %2481 = vmatmul.mubr.f32.gmra.mxu0 %v2343
        %v2482 = vpop.f32.mrf.mxu0
        %v2483 = vadd.f32 0.0, %v2482
        %v2484 = vpop.f32.mrf.mxu0
        %2485 = vmatprep.mubr.f32.mxu0 0.0
        %2486 = vmatmul.mubr.f32.gmra.mxu0 %v2346
        %v2487 = vpop.f32.mrf.mxu0
        %v2488 = vadd.f32 0.0, %v2487
        %v2489 = vpop.f32.mrf.mxu0
        %2490 = vmatprep.mubr.f32.mxu0 0.0
        %2491 = vmatmul.mubr.f32.gmra.mxu0 %v2349
        %v2492 = vpop.f32.mrf.mxu0
        %v2493 = vadd.f32 0.0, %v2492
        %v2494 = vpop.f32.mrf.mxu0
        %2495 = vdwg.mxu0
        %v2496 = vadd.f32 %v2250, %v2418
        %v2497 = vadd.f32 %v2251, %v2423
        %v2498 = vadd.f32 %v2252, %v2428
        %v2499 = vadd.f32 %v2253, %v2433
        %v2500 = vadd.f32 %v2254, %v2438
        %v2501 = vadd.f32 %v2255, %v2443
        %v2502 = vadd.f32 %v2256, %v2448
        %v2503 = vadd.f32 %v2257, %v2453
        %v2504 = vadd.f32 %v2258, %v2458
        %v2505 = vadd.f32 %v2259, %v2463
        %v2506 = vadd.f32 %v2260, %v2468
        %v2507 = vadd.f32 %v2261, %v2473
        %v2508 = vadd.f32 %v2262, %v2478
        %v2509 = vadd.f32 %v2263, %v2483
        %v2510 = vadd.f32 %v2264, %v2488
        %v2511 = vadd.f32 %v2265, %v2493
        %v2512 = vld [vmem:[#allocation2 + $0x27] sm:$0xff]
        %v2513 = vld [vmem:[#allocation2 + $0x2f] sm:$0xff]
        %v2514 = vld [vmem:[#allocation2 + $0x37] sm:$0xff]
        %v2515 = vld [vmem:[#allocation2 + $0x3f] sm:$0xff]
        %v2516 = vld [vmem:[#allocation2 + $0x47] sm:$0xff]
        %v2517 = vld [vmem:[#allocation2 + $0x4f] sm:$0xff]
        %v2518 = vld [vmem:[#allocation2 + $0x57] sm:$0xff]
        %v2519 = vld [vmem:[#allocation2 + $0x5f] sm:$0xff]
        %v2520 = vld [vmem:[#allocation2 + $0x67] sm:$0xff]
        %v2521 = vld [vmem:[#allocation2 + $0x6f] sm:$0xff]
        %v2522 = vld [vmem:[#allocation2 + $0x77] sm:$0xff]
        %v2523 = vld [vmem:[#allocation2 + $0x7f] sm:$0xff]
        %v2524 = vld [vmem:[#allocation2 + $0x87] sm:$0xff]
        %v2525 = vld [vmem:[#allocation2 + $0x8f] sm:$0xff]
        %v2526 = vld [vmem:[#allocation2 + $0x97] sm:$0xff]
        %v2527 = vld [vmem:[#allocation2 + $0x9f] sm:$0xff]
        %v2528 = vsel %vm1053, %v2512, 0.0
        %v2529 = vsel %vm1054, %v2513, 0.0
        %v2530 = vsel %vm1055, %v2514, 0.0
        %v2531 = vsel %vm1056, %v2515, 0.0
        %v2532 = vsel %vm1057, %v2516, 0.0
        %v2533 = vsel %vm1058, %v2517, 0.0
        %v2534 = vsel %vm1059, %v2518, 0.0
        %v2535 = vsel %vm1060, %v2519, 0.0
        %v2536 = vsel %vm1061, %v2520, 0.0
        %v2537 = vsel %vm1062, %v2521, 0.0
        %v2538 = vsel %vm1063, %v2522, 0.0
        %v2539 = vsel %vm1064, %v2523, 0.0
        %v2540 = vsel %vm1065, %v2524, 0.0
        %v2541 = vsel %vm1066, %v2525, 0.0
        %v2542 = vsel %vm1067, %v2526, 0.0
        %v2543 = vsel %vm1068, %v2527, 0.0
        %s2544 = scalar_lea.vmem [#allocation8], 192
        %v2545 = vld [vmem:[%s2544] sm:$0xff]
        %v2546 = vld [vmem:[%s2544 + $0x8] sm:$0xff]
        %v2547 = vld [vmem:[%s2544 + $0x10] sm:$0xff]
        %v2548 = vld [vmem:[%s2544 + $0x18] sm:$0xff]
        %v2550 = vsel %vm341, %v2528, 0
        %v2553 = vsel %vm341, %v2529, 0
        %v2556 = vsel %vm341, %v2530, 0
        %v2559 = vsel %vm341, %v2531, 0
        %v2562 = vsel %vm341, %v2532, 0
        %v2565 = vsel %vm341, %v2533, 0
        %v2568 = vsel %vm341, %v2534, 0
        %v2571 = vsel %vm341, %v2535, 0
        %v2574 = vsel %vm341, %v2536, 0
        %v2577 = vsel %vm341, %v2537, 0
        %v2580 = vsel %vm341, %v2538, 0
        %v2583 = vsel %vm341, %v2539, 0
        %v2586 = vsel %vm341, %v2540, 0
        %v2589 = vsel %vm341, %v2541, 0
        %v2592 = vsel %vm341, %v2542, 0
        %v2595 = vsel %vm341, %v2543, 0
        %2597 = vmatprep.subr.mxu0 0.0
        %2598 = vmatpush1.msra.mxu0 0.0
        %2599 = vmatprep.subr.mxu0 0.0
        %2600 = vmatpush1.msra.mxu0 0.0
        %2601 = vmatprep.subr.mxu0 0.0
        %2602 = vmatpush1.msra.mxu0 0.0
        %2603 = vmatprep.subr.mxu0 0.0
        %2604 = vmatpush1.msra.mxu0 0.0
        %2605 = vmatprep.subr.mxu0 0.0
        %2606 = vmatpush1.msra.mxu0 0.0
        %2607 = vmatprep.subr.mxu0 0.0
        %2608 = vmatpush1.msra.mxu0 0.0
        %2609 = vmatprep.subr.mxu0 0.0
        %2610 = vmatpush1.msra.mxu0 0.0
        %2611 = vmatprep.subr.mxu0 0.0
        %2612 = vmatpush1.msra.mxu0 0.0
        %2613 = vmatprep.subr.mxu0 0.0
        %2614 = vmatpush1.msra.mxu0 0.0
        %2615 = vmatprep.subr.mxu0 0.0
        %2616 = vmatpush1.msra.mxu0 0.0
        %2617 = vmatprep.subr.mxu0 0.0
        %2618 = vmatpush1.msra.mxu0 0.0
        %2619 = vmatprep.subr.mxu0 0.0
        %2620 = vmatpush1.msra.mxu0 0.0
        %2621 = vmatprep.subr.mxu0 0.0
        %2622 = vmatpush1.msra.mxu0 %v2548
        %2623 = vmatprep.subr.mxu0 0.0
        %2624 = vmatpush1.msra.mxu0 %v2547
        %2625 = vmatprep.subr.mxu0 0.0
        %2626 = vmatpush1.msra.mxu0 %v2546
        %2627 = vmatprep.subr.mxu0 0.0
        %2628 = vmatpush1.msra.mxu0 %v2545
        %2629 = vmatprep.subr.mxu0 0.0
        %2630 = vmatpush2.msra.mxu0 0.0
        %2631 = vmatprep.subr.mxu0 0.0
        %2632 = vmatpush2.msra.mxu0 0.0
        %2633 = vmatprep.subr.mxu0 0.0
        %2634 = vmatpush2.msra.mxu0 0.0
        %2635 = vmatprep.subr.mxu0 0.0
        %2636 = vmatpush2.msra.mxu0 0.0
        %2637 = vmatprep.subr.mxu0 0.0
        %2638 = vmatpush2.msra.mxu0 0.0
        %2639 = vmatprep.subr.mxu0 0.0
        %2640 = vmatpush2.msra.mxu0 0.0
        %2641 = vmatprep.subr.mxu0 0.0
        %2642 = vmatpush2.msra.mxu0 0.0
        %2643 = vmatprep.subr.mxu0 0.0
        %2644 = vmatpush2.msra.mxu0 0.0
        %2645 = vmatprep.subr.mxu0 0.0
        %2646 = vmatpush2.msra.mxu0 0.0
        %2647 = vmatprep.subr.mxu0 0.0
        %2648 = vmatpush2.msra.mxu0 0.0
        %2649 = vmatprep.subr.mxu0 0.0
        %2650 = vmatpush2.msra.mxu0 0.0
        %2651 = vmatprep.subr.mxu0 0.0
        %2652 = vmatpush2.msra.mxu0 0.0
        %2653 = vmatprep.subr.mxu0 0.0
        %2654 = vmatpush2.msra.mxu0 0.0
        %2655 = vmatprep.subr.mxu0 0.0
        %2656 = vmatpush2.msra.mxu0 0.0
        %2657 = vmatprep.subr.mxu0 0.0
        %2658 = vmatpush2.msra.mxu0 0.0
        %2659 = vmatprep.subr.mxu0 0.0
        %2660 = vmatpush2.msra.mxu0 0.0
        %2661 = vmatprep.mubr.f32.mxu0 0.0
        %2662 = vmatmul.mubr.f32.gmra.mxu0 %v2550
        %v2663 = vpop.f32.mrf.mxu0
        %v2664 = vadd.f32 0.0, %v2663
        %v2665 = vpop.f32.mrf.mxu0
        %2666 = vmatprep.mubr.f32.mxu0 0.0
        %2667 = vmatmul.mubr.f32.gmra.mxu0 %v2553
        %v2668 = vpop.f32.mrf.mxu0
        %v2669 = vadd.f32 0.0, %v2668
        %v2670 = vpop.f32.mrf.mxu0
        %2671 = vmatprep.mubr.f32.mxu0 0.0
        %2672 = vmatmul.mubr.f32.gmra.mxu0 %v2556
        %v2673 = vpop.f32.mrf.mxu0
        %v2674 = vadd.f32 0.0, %v2673
        %v2675 = vpop.f32.mrf.mxu0
        %2676 = vmatprep.mubr.f32.mxu0 0.0
        %2677 = vmatmul.mubr.f32.gmra.mxu0 %v2559
        %v2678 = vpop.f32.mrf.mxu0
        %v2679 = vadd.f32 0.0, %v2678
        %v2680 = vpop.f32.mrf.mxu0
        %2681 = vmatprep.mubr.f32.mxu0 0.0
        %2682 = vmatmul.mubr.f32.gmra.mxu0 %v2562
        %v2683 = vpop.f32.mrf.mxu0
        %v2684 = vadd.f32 0.0, %v2683
        %v2685 = vpop.f32.mrf.mxu0
        %2686 = vmatprep.mubr.f32.mxu0 0.0
        %2687 = vmatmul.mubr.f32.gmra.mxu0 %v2565
        %v2688 = vpop.f32.mrf.mxu0
        %v2689 = vadd.f32 0.0, %v2688
        %v2690 = vpop.f32.mrf.mxu0
        %2691 = vmatprep.mubr.f32.mxu0 0.0
        %2692 = vmatmul.mubr.f32.gmra.mxu0 %v2568
        %v2693 = vpop.f32.mrf.mxu0
        %v2694 = vadd.f32 0.0, %v2693
        %v2695 = vpop.f32.mrf.mxu0
        %2696 = vmatprep.mubr.f32.mxu0 0.0
        %2697 = vmatmul.mubr.f32.gmra.mxu0 %v2571
        %v2698 = vpop.f32.mrf.mxu0
        %v2699 = vadd.f32 0.0, %v2698
        %v2700 = vpop.f32.mrf.mxu0
        %2701 = vmatprep.mubr.f32.mxu0 0.0
        %2702 = vmatmul.mubr.f32.gmra.mxu0 %v2574
        %v2703 = vpop.f32.mrf.mxu0
        %v2704 = vadd.f32 0.0, %v2703
        %v2705 = vpop.f32.mrf.mxu0
        %2706 = vmatprep.mubr.f32.mxu0 0.0
        %2707 = vmatmul.mubr.f32.gmra.mxu0 %v2577
        %v2708 = vpop.f32.mrf.mxu0
        %v2709 = vadd.f32 0.0, %v2708
        %v2710 = vpop.f32.mrf.mxu0
        %2711 = vmatprep.mubr.f32.mxu0 0.0
        %2712 = vmatmul.mubr.f32.gmra.mxu0 %v2580
        %v2713 = vpop.f32.mrf.mxu0
        %v2714 = vadd.f32 0.0, %v2713
        %v2715 = vpop.f32.mrf.mxu0
        %2716 = vmatprep.mubr.f32.mxu0 0.0
        %2717 = vmatmul.mubr.f32.gmra.mxu0 %v2583
        %v2718 = vpop.f32.mrf.mxu0
        %v2719 = vadd.f32 0.0, %v2718
        %v2720 = vpop.f32.mrf.mxu0
        %2721 = vmatprep.mubr.f32.mxu0 0.0
        %2722 = vmatmul.mubr.f32.gmra.mxu0 %v2586
        %v2723 = vpop.f32.mrf.mxu0
        %v2724 = vadd.f32 0.0, %v2723
        %v2725 = vpop.f32.mrf.mxu0
        %2726 = vmatprep.mubr.f32.mxu0 0.0
        %2727 = vmatmul.mubr.f32.gmra.mxu0 %v2589
        %v2728 = vpop.f32.mrf.mxu0
        %v2729 = vadd.f32 0.0, %v2728
        %v2730 = vpop.f32.mrf.mxu0
        %2731 = vmatprep.mubr.f32.mxu0 0.0
        %2732 = vmatmul.mubr.f32.gmra.mxu0 %v2592
        %v2733 = vpop.f32.mrf.mxu0
        %v2734 = vadd.f32 0.0, %v2733
        %v2735 = vpop.f32.mrf.mxu0
        %2736 = vmatprep.mubr.f32.mxu0 0.0
        %2737 = vmatmul.mubr.f32.gmra.mxu0 %v2595
        %v2738 = vpop.f32.mrf.mxu0
        %v2739 = vadd.f32 0.0, %v2738
        %v2740 = vpop.f32.mrf.mxu0
        %2741 = vdwg.mxu0
        %v2742 = vadd.f32 %v2496, %v2664
        %v2743 = vadd.f32 %v2497, %v2669
        %v2744 = vadd.f32 %v2498, %v2674
        %v2745 = vadd.f32 %v2499, %v2679
        %v2746 = vadd.f32 %v2500, %v2684
        %v2747 = vadd.f32 %v2501, %v2689
        %v2748 = vadd.f32 %v2502, %v2694
        %v2749 = vadd.f32 %v2503, %v2699
        %v2750 = vadd.f32 %v2504, %v2704
        %v2751 = vadd.f32 %v2505, %v2709
        %v2752 = vadd.f32 %v2506, %v2714
        %v2753 = vadd.f32 %v2507, %v2719
        %v2754 = vadd.f32 %v2508, %v2724
        %v2755 = vadd.f32 %v2509, %v2729
        %v2756 = vadd.f32 %v2510, %v2734
        %v2757 = vadd.f32 %v2511, %v2739
        %v2758 = vld [vmem:[#allocation2 + $0x28] sm:$0xff]
        %v2759 = vld [vmem:[#allocation2 + $0x30] sm:$0xff]
        %v2760 = vld [vmem:[#allocation2 + $0x38] sm:$0xff]
        %v2761 = vld [vmem:[#allocation2 + $0x40] sm:$0xff]
        %v2762 = vld [vmem:[#allocation2 + $0x48] sm:$0xff]
        %v2763 = vld [vmem:[#allocation2 + $0x50] sm:$0xff]
        %v2764 = vld [vmem:[#allocation2 + $0x58] sm:$0xff]
        %v2765 = vld [vmem:[#allocation2 + $0x60] sm:$0xff]
        %v2766 = vld [vmem:[#allocation2 + $0x68] sm:$0xff]
        %v2767 = vld [vmem:[#allocation2 + $0x70] sm:$0xff]
        %v2768 = vld [vmem:[#allocation2 + $0x78] sm:$0xff]
        %v2769 = vld [vmem:[#allocation2 + $0x80] sm:$0xff]
        %v2770 = vld [vmem:[#allocation2 + $0x88] sm:$0xff]
        %v2771 = vld [vmem:[#allocation2 + $0x90] sm:$0xff]
        %v2772 = vld [vmem:[#allocation2 + $0x98] sm:$0xff]
        %v2773 = vld [vmem:[#allocation2 + $0xa0] sm:$0xff]
        %s2774 = scalar_lea.vmem [#allocation8], 224
        %v2775 = vld [vmem:[%s2774] sm:$0xff]
        %v2776 = vld [vmem:[%s2774 + $0x8] sm:$0xff]
        %v2777 = vld [vmem:[%s2774 + $0x10] sm:$0xff]
        %v2778 = vld [vmem:[%s2774 + $0x18] sm:$0xff]
        %v2780 = vsel %vm341, %v2758, 0
        %v2783 = vsel %vm341, %v2759, 0
        %v2786 = vsel %vm341, %v2760, 0
        %v2789 = vsel %vm341, %v2761, 0
        %v2792 = vsel %vm341, %v2762, 0
        %v2795 = vsel %vm341, %v2763, 0
        %v2798 = vsel %vm341, %v2764, 0
        %v2801 = vsel %vm341, %v2765, 0
        %v2804 = vsel %vm341, %v2766, 0
        %v2807 = vsel %vm341, %v2767, 0
        %v2810 = vsel %vm341, %v2768, 0
        %v2813 = vsel %vm341, %v2769, 0
        %v2816 = vsel %vm341, %v2770, 0
        %v2819 = vsel %vm341, %v2771, 0
        %v2822 = vsel %vm341, %v2772, 0
        %v2825 = vsel %vm341, %v2773, 0
        %2827 = vmatprep.subr.mxu0 0.0
        %2828 = vmatpush1.msra.mxu0 0.0
        %2829 = vmatprep.subr.mxu0 0.0
        %2830 = vmatpush1.msra.mxu0 0.0
        %2831 = vmatprep.subr.mxu0 0.0
        %2832 = vmatpush1.msra.mxu0 0.0
        %2833 = vmatprep.subr.mxu0 0.0
        %2834 = vmatpush1.msra.mxu0 0.0
        %2835 = vmatprep.subr.mxu0 0.0
        %2836 = vmatpush1.msra.mxu0 0.0
        %2837 = vmatprep.subr.mxu0 0.0
        %2838 = vmatpush1.msra.mxu0 0.0
        %2839 = vmatprep.subr.mxu0 0.0
        %2840 = vmatpush1.msra.mxu0 0.0
        %2841 = vmatprep.subr.mxu0 0.0
        %2842 = vmatpush1.msra.mxu0 0.0
        %2843 = vmatprep.subr.mxu0 0.0
        %2844 = vmatpush1.msra.mxu0 0.0
        %2845 = vmatprep.subr.mxu0 0.0
        %2846 = vmatpush1.msra.mxu0 0.0
        %2847 = vmatprep.subr.mxu0 0.0
        %2848 = vmatpush1.msra.mxu0 0.0
        %2849 = vmatprep.subr.mxu0 0.0
        %2850 = vmatpush1.msra.mxu0 0.0
        %2851 = vmatprep.subr.mxu0 0.0
        %2852 = vmatpush1.msra.mxu0 %v2778
        %2853 = vmatprep.subr.mxu0 0.0
        %2854 = vmatpush1.msra.mxu0 %v2777
        %2855 = vmatprep.subr.mxu0 0.0
        %2856 = vmatpush1.msra.mxu0 %v2776
        %2857 = vmatprep.subr.mxu0 0.0
        %2858 = vmatpush1.msra.mxu0 %v2775
        %2859 = vmatprep.subr.mxu0 0.0
        %2860 = vmatpush2.msra.mxu0 0.0
        %2861 = vmatprep.subr.mxu0 0.0
        %2862 = vmatpush2.msra.mxu0 0.0
        %2863 = vmatprep.subr.mxu0 0.0
        %2864 = vmatpush2.msra.mxu0 0.0
        %2865 = vmatprep.subr.mxu0 0.0
        %2866 = vmatpush2.msra.mxu0 0.0
        %2867 = vmatprep.subr.mxu0 0.0
        %2868 = vmatpush2.msra.mxu0 0.0
        %2869 = vmatprep.subr.mxu0 0.0
        %2870 = vmatpush2.msra.mxu0 0.0
        %2871 = vmatprep.subr.mxu0 0.0
        %2872 = vmatpush2.msra.mxu0 0.0
        %2873 = vmatprep.subr.mxu0 0.0
        %2874 = vmatpush2.msra.mxu0 0.0
        %2875 = vmatprep.subr.mxu0 0.0
        %2876 = vmatpush2.msra.mxu0 0.0
        %2877 = vmatprep.subr.mxu0 0.0
        %2878 = vmatpush2.msra.mxu0 0.0
        %2879 = vmatprep.subr.mxu0 0.0
        %2880 = vmatpush2.msra.mxu0 0.0
        %2881 = vmatprep.subr.mxu0 0.0
        %2882 = vmatpush2.msra.mxu0 0.0
        %2883 = vmatprep.subr.mxu0 0.0
        %2884 = vmatpush2.msra.mxu0 0.0
        %2885 = vmatprep.subr.mxu0 0.0
        %2886 = vmatpush2.msra.mxu0 0.0
        %2887 = vmatprep.subr.mxu0 0.0
        %2888 = vmatpush2.msra.mxu0 0.0
        %2889 = vmatprep.subr.mxu0 0.0
        %2890 = vmatpush2.msra.mxu0 0.0
        %2891 = vmatprep.mubr.f32.mxu0 0.0
        %2892 = vmatmul.mubr.f32.gmra.mxu0 %v2780
        %v2893 = vpop.f32.mrf.mxu0
        %v2894 = vadd.f32 0.0, %v2893
        %v2895 = vpop.f32.mrf.mxu0
        %2896 = vmatprep.mubr.f32.mxu0 0.0
        %2897 = vmatmul.mubr.f32.gmra.mxu0 %v2783
        %v2898 = vpop.f32.mrf.mxu0
        %v2899 = vadd.f32 0.0, %v2898
        %v2900 = vpop.f32.mrf.mxu0
        %2901 = vmatprep.mubr.f32.mxu0 0.0
        %2902 = vmatmul.mubr.f32.gmra.mxu0 %v2786
        %v2903 = vpop.f32.mrf.mxu0
        %v2904 = vadd.f32 0.0, %v2903
        %v2905 = vpop.f32.mrf.mxu0
        %2906 = vmatprep.mubr.f32.mxu0 0.0
        %2907 = vmatmul.mubr.f32.gmra.mxu0 %v2789
        %v2908 = vpop.f32.mrf.mxu0
        %v2909 = vadd.f32 0.0, %v2908
        %v2910 = vpop.f32.mrf.mxu0
        %2911 = vmatprep.mubr.f32.mxu0 0.0
        %2912 = vmatmul.mubr.f32.gmra.mxu0 %v2792
        %v2913 = vpop.f32.mrf.mxu0
        %v2914 = vadd.f32 0.0, %v2913
        %v2915 = vpop.f32.mrf.mxu0
        %2916 = vmatprep.mubr.f32.mxu0 0.0
        %2917 = vmatmul.mubr.f32.gmra.mxu0 %v2795
        %v2918 = vpop.f32.mrf.mxu0
        %v2919 = vadd.f32 0.0, %v2918
        %v2920 = vpop.f32.mrf.mxu0
        %2921 = vmatprep.mubr.f32.mxu0 0.0
        %2922 = vmatmul.mubr.f32.gmra.mxu0 %v2798
        %v2923 = vpop.f32.mrf.mxu0
        %v2924 = vadd.f32 0.0, %v2923
        %v2925 = vpop.f32.mrf.mxu0
        %2926 = vmatprep.mubr.f32.mxu0 0.0
        %2927 = vmatmul.mubr.f32.gmra.mxu0 %v2801
        %v2928 = vpop.f32.mrf.mxu0
        %v2929 = vadd.f32 0.0, %v2928
        %v2930 = vpop.f32.mrf.mxu0
        %2931 = vmatprep.mubr.f32.mxu0 0.0
        %2932 = vmatmul.mubr.f32.gmra.mxu0 %v2804
        %v2933 = vpop.f32.mrf.mxu0
        %v2934 = vadd.f32 0.0, %v2933
        %v2935 = vpop.f32.mrf.mxu0
        %2936 = vmatprep.mubr.f32.mxu0 0.0
        %2937 = vmatmul.mubr.f32.gmra.mxu0 %v2807
        %v2938 = vpop.f32.mrf.mxu0
        %v2939 = vadd.f32 0.0, %v2938
        %v2940 = vpop.f32.mrf.mxu0
        %2941 = vmatprep.mubr.f32.mxu0 0.0
        %2942 = vmatmul.mubr.f32.gmra.mxu0 %v2810
        %v2943 = vpop.f32.mrf.mxu0
        %v2944 = vadd.f32 0.0, %v2943
        %v2945 = vpop.f32.mrf.mxu0
        %2946 = vmatprep.mubr.f32.mxu0 0.0
        %2947 = vmatmul.mubr.f32.gmra.mxu0 %v2813
        %v2948 = vpop.f32.mrf.mxu0
        %v2949 = vadd.f32 0.0, %v2948
        %v2950 = vpop.f32.mrf.mxu0
        %2951 = vmatprep.mubr.f32.mxu0 0.0
        %2952 = vmatmul.mubr.f32.gmra.mxu0 %v2816
        %v2953 = vpop.f32.mrf.mxu0
        %v2954 = vadd.f32 0.0, %v2953
        %v2955 = vpop.f32.mrf.mxu0
        %2956 = vmatprep.mubr.f32.mxu0 0.0
        %2957 = vmatmul.mubr.f32.gmra.mxu0 %v2819
        %v2958 = vpop.f32.mrf.mxu0
        %v2959 = vadd.f32 0.0, %v2958
        %v2960 = vpop.f32.mrf.mxu0
        %2961 = vmatprep.mubr.f32.mxu0 0.0
        %2962 = vmatmul.mubr.f32.gmra.mxu0 %v2822
        %v2963 = vpop.f32.mrf.mxu0
        %v2964 = vadd.f32 0.0, %v2963
        %v2965 = vpop.f32.mrf.mxu0
        %2966 = vmatprep.mubr.f32.mxu0 0.0
        %2967 = vmatmul.mubr.f32.gmra.mxu0 %v2825
        %v2968 = vpop.f32.mrf.mxu0
        %v2969 = vadd.f32 0.0, %v2968
        %v2970 = vpop.f32.mrf.mxu0
        %2971 = vdwg.mxu0
        %v2972 = vadd.f32 %v2742, %v2894
        %v2973 = vadd.f32 %v2743, %v2899
        %v2974 = vadd.f32 %v2744, %v2904
        %v2975 = vadd.f32 %v2745, %v2909
        %v2976 = vadd.f32 %v2746, %v2914
        %v2977 = vadd.f32 %v2747, %v2919
        %v2978 = vadd.f32 %v2748, %v2924
        %v2979 = vadd.f32 %v2749, %v2929
        %v2980 = vadd.f32 %v2750, %v2934
        %v2981 = vadd.f32 %v2751, %v2939
        %v2982 = vadd.f32 %v2752, %v2944
        %v2983 = vadd.f32 %v2753, %v2949
        %v2984 = vadd.f32 %v2754, %v2954
        %v2985 = vadd.f32 %v2755, %v2959
        %v2986 = vadd.f32 %v2756, %v2964
        %v2987 = vadd.f32 %v2757, %v2969
        %v2988 = vld [vmem:[#allocation2 + $0x29] sm:$0xff]
        %v2989 = vld [vmem:[#allocation2 + $0x31] sm:$0xff]
        %v2990 = vld [vmem:[#allocation2 + $0x39] sm:$0xff]
        %v2991 = vld [vmem:[#allocation2 + $0x41] sm:$0xff]
        %v2992 = vld [vmem:[#allocation2 + $0x49] sm:$0xff]
        %v2993 = vld [vmem:[#allocation2 + $0x51] sm:$0xff]
        %v2994 = vld [vmem:[#allocation2 + $0x59] sm:$0xff]
        %v2995 = vld [vmem:[#allocation2 + $0x61] sm:$0xff]
        %v2996 = vld [vmem:[#allocation2 + $0x69] sm:$0xff]
        %v2997 = vld [vmem:[#allocation2 + $0x71] sm:$0xff]
        %v2998 = vld [vmem:[#allocation2 + $0x79] sm:$0xff]
        %v2999 = vld [vmem:[#allocation2 + $0x81] sm:$0xff]
        %v3000 = vld [vmem:[#allocation2 + $0x89] sm:$0xff]
        %v3001 = vld [vmem:[#allocation2 + $0x91] sm:$0xff]
        %v3002 = vld [vmem:[#allocation2 + $0x99] sm:$0xff]
        %v3003 = vld [vmem:[#allocation2 + $0xa1] sm:$0xff]
        %v3004 = vsel %vm1544, %v2988, 0.0
        %v3005 = vsel %vm1545, %v2989, 0.0
        %v3006 = vsel %vm1546, %v2990, 0.0
        %v3007 = vsel %vm1547, %v2991, 0.0
        %v3008 = vsel %vm1548, %v2992, 0.0
        %v3009 = vsel %vm1549, %v2993, 0.0
        %v3010 = vsel %vm1550, %v2994, 0.0
        %v3011 = vsel %vm1551, %v2995, 0.0
        %v3012 = vsel %vm1552, %v2996, 0.0
        %v3013 = vsel %vm1553, %v2997, 0.0
        %v3014 = vsel %vm1554, %v2998, 0.0
        %v3015 = vsel %vm1555, %v2999, 0.0
        %v3016 = vsel %vm1556, %v3000, 0.0
        %v3017 = vsel %vm1557, %v3001, 0.0
        %v3018 = vsel %vm1558, %v3002, 0.0
        %v3019 = vsel %vm1559, %v3003, 0.0
        %s3020 = scalar_lea.vmem [#allocation8], 256
        %v3021 = vld [vmem:[%s3020] sm:$0xff]
        %v3022 = vld [vmem:[%s3020 + $0x8] sm:$0xff]
        %v3023 = vld [vmem:[%s3020 + $0x10] sm:$0xff]
        %v3024 = vld [vmem:[%s3020 + $0x18] sm:$0xff]
        %v3026 = vsel %vm341, %v3004, 0
        %v3029 = vsel %vm341, %v3005, 0
        %v3032 = vsel %vm341, %v3006, 0
        %v3035 = vsel %vm341, %v3007, 0
        %v3038 = vsel %vm341, %v3008, 0
        %v3041 = vsel %vm341, %v3009, 0
        %v3044 = vsel %vm341, %v3010, 0
        %v3047 = vsel %vm341, %v3011, 0
        %v3050 = vsel %vm341, %v3012, 0
        %v3053 = vsel %vm341, %v3013, 0
        %v3056 = vsel %vm341, %v3014, 0
        %v3059 = vsel %vm341, %v3015, 0
        %v3062 = vsel %vm341, %v3016, 0
        %v3065 = vsel %vm341, %v3017, 0
        %v3068 = vsel %vm341, %v3018, 0
        %v3071 = vsel %vm341, %v3019, 0
        %3073 = vmatprep.subr.mxu0 0.0
        %3074 = vmatpush1.msra.mxu0 0.0
        %3075 = vmatprep.subr.mxu0 0.0
        %3076 = vmatpush1.msra.mxu0 0.0
        %3077 = vmatprep.subr.mxu0 0.0
        %3078 = vmatpush1.msra.mxu0 0.0
        %3079 = vmatprep.subr.mxu0 0.0
        %3080 = vmatpush1.msra.mxu0 0.0
        %3081 = vmatprep.subr.mxu0 0.0
        %3082 = vmatpush1.msra.mxu0 0.0
        %3083 = vmatprep.subr.mxu0 0.0
        %3084 = vmatpush1.msra.mxu0 0.0
        %3085 = vmatprep.subr.mxu0 0.0
        %3086 = vmatpush1.msra.mxu0 0.0
        %3087 = vmatprep.subr.mxu0 0.0
        %3088 = vmatpush1.msra.mxu0 0.0
        %3089 = vmatprep.subr.mxu0 0.0
        %3090 = vmatpush1.msra.mxu0 0.0
        %3091 = vmatprep.subr.mxu0 0.0
        %3092 = vmatpush1.msra.mxu0 0.0
        %3093 = vmatprep.subr.mxu0 0.0
        %3094 = vmatpush1.msra.mxu0 0.0
        %3095 = vmatprep.subr.mxu0 0.0
        %3096 = vmatpush1.msra.mxu0 0.0
        %3097 = vmatprep.subr.mxu0 0.0
        %3098 = vmatpush1.msra.mxu0 %v3024
        %3099 = vmatprep.subr.mxu0 0.0
        %3100 = vmatpush1.msra.mxu0 %v3023
        %3101 = vmatprep.subr.mxu0 0.0
        %3102 = vmatpush1.msra.mxu0 %v3022
        %3103 = vmatprep.subr.mxu0 0.0
        %3104 = vmatpush1.msra.mxu0 %v3021
        %3105 = vmatprep.subr.mxu0 0.0
        %3106 = vmatpush2.msra.mxu0 0.0
        %3107 = vmatprep.subr.mxu0 0.0
        %3108 = vmatpush2.msra.mxu0 0.0
        %3109 = vmatprep.subr.mxu0 0.0
        %3110 = vmatpush2.msra.mxu0 0.0
        %3111 = vmatprep.subr.mxu0 0.0
        %3112 = vmatpush2.msra.mxu0 0.0
        %3113 = vmatprep.subr.mxu0 0.0
        %3114 = vmatpush2.msra.mxu0 0.0
        %3115 = vmatprep.subr.mxu0 0.0
        %3116 = vmatpush2.msra.mxu0 0.0
        %3117 = vmatprep.subr.mxu0 0.0
        %3118 = vmatpush2.msra.mxu0 0.0
        %3119 = vmatprep.subr.mxu0 0.0
        %3120 = vmatpush2.msra.mxu0 0.0
        %3121 = vmatprep.subr.mxu0 0.0
        %3122 = vmatpush2.msra.mxu0 0.0
        %3123 = vmatprep.subr.mxu0 0.0
        %3124 = vmatpush2.msra.mxu0 0.0
        %3125 = vmatprep.subr.mxu0 0.0
        %3126 = vmatpush2.msra.mxu0 0.0
        %3127 = vmatprep.subr.mxu0 0.0
        %3128 = vmatpush2.msra.mxu0 0.0
        %3129 = vmatprep.subr.mxu0 0.0
        %3130 = vmatpush2.msra.mxu0 0.0
        %3131 = vmatprep.subr.mxu0 0.0
        %3132 = vmatpush2.msra.mxu0 0.0
        %3133 = vmatprep.subr.mxu0 0.0
        %3134 = vmatpush2.msra.mxu0 0.0
        %3135 = vmatprep.subr.mxu0 0.0
        %3136 = vmatpush2.msra.mxu0 0.0
        %3137 = vmatprep.mubr.f32.mxu0 0.0
        %3138 = vmatmul.mubr.f32.gmra.mxu0 %v3026
        %v3139 = vpop.f32.mrf.mxu0
        %v3140 = vadd.f32 0.0, %v3139
        %v3141 = vpop.f32.mrf.mxu0
        %3142 = vmatprep.mubr.f32.mxu0 0.0
        %3143 = vmatmul.mubr.f32.gmra.mxu0 %v3029
        %v3144 = vpop.f32.mrf.mxu0
        %v3145 = vadd.f32 0.0, %v3144
        %v3146 = vpop.f32.mrf.mxu0
        %3147 = vmatprep.mubr.f32.mxu0 0.0
        %3148 = vmatmul.mubr.f32.gmra.mxu0 %v3032
        %v3149 = vpop.f32.mrf.mxu0
        %v3150 = vadd.f32 0.0, %v3149
        %v3151 = vpop.f32.mrf.mxu0
        %3152 = vmatprep.mubr.f32.mxu0 0.0
        %3153 = vmatmul.mubr.f32.gmra.mxu0 %v3035
        %v3154 = vpop.f32.mrf.mxu0
        %v3155 = vadd.f32 0.0, %v3154
        %v3156 = vpop.f32.mrf.mxu0
        %3157 = vmatprep.mubr.f32.mxu0 0.0
        %3158 = vmatmul.mubr.f32.gmra.mxu0 %v3038
        %v3159 = vpop.f32.mrf.mxu0
        %v3160 = vadd.f32 0.0, %v3159
        %v3161 = vpop.f32.mrf.mxu0
        %3162 = vmatprep.mubr.f32.mxu0 0.0
        %3163 = vmatmul.mubr.f32.gmra.mxu0 %v3041
        %v3164 = vpop.f32.mrf.mxu0
        %v3165 = vadd.f32 0.0, %v3164
        %v3166 = vpop.f32.mrf.mxu0
        %3167 = vmatprep.mubr.f32.mxu0 0.0
        %3168 = vmatmul.mubr.f32.gmra.mxu0 %v3044
        %v3169 = vpop.f32.mrf.mxu0
        %v3170 = vadd.f32 0.0, %v3169
        %v3171 = vpop.f32.mrf.mxu0
        %3172 = vmatprep.mubr.f32.mxu0 0.0
        %3173 = vmatmul.mubr.f32.gmra.mxu0 %v3047
        %v3174 = vpop.f32.mrf.mxu0
        %v3175 = vadd.f32 0.0, %v3174
        %v3176 = vpop.f32.mrf.mxu0
        %3177 = vmatprep.mubr.f32.mxu0 0.0
        %3178 = vmatmul.mubr.f32.gmra.mxu0 %v3050
        %v3179 = vpop.f32.mrf.mxu0
        %v3180 = vadd.f32 0.0, %v3179
        %v3181 = vpop.f32.mrf.mxu0
        %3182 = vmatprep.mubr.f32.mxu0 0.0
        %3183 = vmatmul.mubr.f32.gmra.mxu0 %v3053
        %v3184 = vpop.f32.mrf.mxu0
        %v3185 = vadd.f32 0.0, %v3184
        %v3186 = vpop.f32.mrf.mxu0
        %3187 = vmatprep.mubr.f32.mxu0 0.0
        %3188 = vmatmul.mubr.f32.gmra.mxu0 %v3056
        %v3189 = vpop.f32.mrf.mxu0
        %v3190 = vadd.f32 0.0, %v3189
        %v3191 = vpop.f32.mrf.mxu0
        %3192 = vmatprep.mubr.f32.mxu0 0.0
        %3193 = vmatmul.mubr.f32.gmra.mxu0 %v3059
        %v3194 = vpop.f32.mrf.mxu0
        %v3195 = vadd.f32 0.0, %v3194
        %v3196 = vpop.f32.mrf.mxu0
        %3197 = vmatprep.mubr.f32.mxu0 0.0
        %3198 = vmatmul.mubr.f32.gmra.mxu0 %v3062
        %v3199 = vpop.f32.mrf.mxu0
        %v3200 = vadd.f32 0.0, %v3199
        %v3201 = vpop.f32.mrf.mxu0
        %3202 = vmatprep.mubr.f32.mxu0 0.0
        %3203 = vmatmul.mubr.f32.gmra.mxu0 %v3065
        %v3204 = vpop.f32.mrf.mxu0
        %v3205 = vadd.f32 0.0, %v3204
        %v3206 = vpop.f32.mrf.mxu0
        %3207 = vmatprep.mubr.f32.mxu0 0.0
        %3208 = vmatmul.mubr.f32.gmra.mxu0 %v3068
        %v3209 = vpop.f32.mrf.mxu0
        %v3210 = vadd.f32 0.0, %v3209
        %v3211 = vpop.f32.mrf.mxu0
        %3212 = vmatprep.mubr.f32.mxu0 0.0
        %3213 = vmatmul.mubr.f32.gmra.mxu0 %v3071
        %v3214 = vpop.f32.mrf.mxu0
        %v3215 = vadd.f32 0.0, %v3214
        %v3216 = vpop.f32.mrf.mxu0
        %3217 = vdwg.mxu0
        %v3218 = vadd.f32 %v2972, %v3140
        %v3219 = vadd.f32 %v2973, %v3145
        %v3220 = vadd.f32 %v2974, %v3150
        %v3221 = vadd.f32 %v2975, %v3155
        %v3222 = vadd.f32 %v2976, %v3160
        %v3223 = vadd.f32 %v2977, %v3165
        %v3224 = vadd.f32 %v2978, %v3170
        %v3225 = vadd.f32 %v2979, %v3175
        %v3226 = vadd.f32 %v2980, %v3180
        %v3227 = vadd.f32 %v2981, %v3185
        %v3228 = vadd.f32 %v2982, %v3190
        %v3229 = vadd.f32 %v2983, %v3195
        %v3230 = vadd.f32 %v2984, %v3200
        %v3231 = vadd.f32 %v2985, %v3205
        %v3232 = vadd.f32 %v2986, %v3210
        %v3233 = vadd.f32 %v2987, %v3215
        %v3235 = vlaneseq
        %v3236 = vshrl.u32 %v3235, 7
        %v3237 = vsub.s32 0, %v3236
        %v3238 = vrot.slane %v401, %v3237
        %v3240 = vadd.f32 %v3218, %v3238
        %v3241 = vadd.f32 %v3219, %v3238
        %v3242 = vadd.f32 %v3220, %v3238
        %v3243 = vadd.f32 %v3221, %v3238
        %v3244 = vadd.f32 %v3222, %v3238
        %v3245 = vadd.f32 %v3223, %v3238
        %v3246 = vadd.f32 %v3224, %v3238
        %v3247 = vadd.f32 %v3225, %v3238
        %v3248 = vadd.f32 %v3226, %v3238
        %v3249 = vadd.f32 %v3227, %v3238
        %v3250 = vadd.f32 %v3228, %v3238
        %v3251 = vadd.f32 %v3229, %v3238
        %v3252 = vadd.f32 %v3230, %v3238
        %v3253 = vadd.f32 %v3231, %v3238
        %v3254 = vadd.f32 %v3232, %v3238
        %v3255 = vadd.f32 %v3233, %v3238
        %v3256 = vmax.f32 %v3240, 0.0
        %v3257 = vmax.f32 %v3241, 0.0
        %v3258 = vmax.f32 %v3242, 0.0
        %v3259 = vmax.f32 %v3243, 0.0
        %v3260 = vmax.f32 %v3244, 0.0
        %v3261 = vmax.f32 %v3245, 0.0
        %v3262 = vmax.f32 %v3246, 0.0
        %v3263 = vmax.f32 %v3247, 0.0
        %v3264 = vmax.f32 %v3248, 0.0
        %v3265 = vmax.f32 %v3249, 0.0
        %v3266 = vmax.f32 %v3250, 0.0
        %v3267 = vmax.f32 %v3251, 0.0
        %v3268 = vmax.f32 %v3252, 0.0
        %v3269 = vmax.f32 %v3253, 0.0
        %v3270 = vmax.f32 %v3254, 0.0
        %v3271 = vmax.f32 %v3255, 0.0
        %v3273 = vlaneseq
        %v3274 = vshrl.u32 %v3273, 7
        %v3275 = vsub.s32 0, %v3274
        %v3276 = vrot.slane %v402, %v3275
        %v3279 = vsel %vm341, %v3256, 0
        %v3282 = vsel %vm341, %v3257, 0
        %v3285 = vsel %vm341, %v3258, 0
        %v3288 = vsel %vm341, %v3259, 0
        %v3291 = vsel %vm341, %v3260, 0
        %v3294 = vsel %vm341, %v3261, 0
        %v3297 = vsel %vm341, %v3262, 0
        %v3300 = vsel %vm341, %v3263, 0
        %v3303 = vsel %vm341, %v3264, 0
        %v3306 = vsel %vm341, %v3265, 0
        %v3309 = vsel %vm341, %v3266, 0
        %v3312 = vsel %vm341, %v3267, 0
        %v3315 = vsel %vm341, %v3268, 0
        %v3318 = vsel %vm341, %v3269, 0
        %v3321 = vsel %vm341, %v3270, 0
        %v3324 = vsel %vm341, %v3271, 0
        %3326 = vmatprep.subr.mxu0 0.0
        %3327 = vmatpush1.msra.mxu0 0.0
        %3328 = vmatprep.subr.mxu0 0.0
        %3329 = vmatpush1.msra.mxu0 0.0
        %3330 = vmatprep.subr.mxu0 0.0
        %3331 = vmatpush1.msra.mxu0 0.0
        %3332 = vmatprep.subr.mxu0 0.0
        %3333 = vmatpush1.msra.mxu0 0.0
        %3334 = vmatprep.subr.mxu0 0.0
        %3335 = vmatpush1.msra.mxu0 0.0
        %3336 = vmatprep.subr.mxu0 0.0
        %3337 = vmatpush1.msra.mxu0 0.0
        %3338 = vmatprep.subr.mxu0 0.0
        %3339 = vmatpush1.msra.mxu0 0.0
        %3340 = vmatprep.subr.mxu0 0.0
        %3341 = vmatpush1.msra.mxu0 0.0
        %3342 = vmatprep.subr.mxu0 0.0
        %3343 = vmatpush1.msra.mxu0 0.0
        %3344 = vmatprep.subr.mxu0 0.0
        %3345 = vmatpush1.msra.mxu0 0.0
        %3346 = vmatprep.subr.mxu0 0.0
        %3347 = vmatpush1.msra.mxu0 0.0
        %3348 = vmatprep.subr.mxu0 0.0
        %3349 = vmatpush1.msra.mxu0 0.0
        %3350 = vmatprep.subr.mxu0 0.0
        %3351 = vmatpush1.msra.mxu0 %v399
        %3352 = vmatprep.subr.mxu0 0.0
        %3353 = vmatpush1.msra.mxu0 %v398
        %3354 = vmatprep.subr.mxu0 0.0
        %3355 = vmatpush1.msra.mxu0 %v397
        %3356 = vmatprep.subr.mxu0 0.0
        %3357 = vmatpush1.msra.mxu0 %v396
        %3358 = vmatprep.subr.mxu0 0.0
        %3359 = vmatpush2.msra.mxu0 0.0
        %3360 = vmatprep.subr.mxu0 0.0
        %3361 = vmatpush2.msra.mxu0 0.0
        %3362 = vmatprep.subr.mxu0 0.0
        %3363 = vmatpush2.msra.mxu0 0.0
        %3364 = vmatprep.subr.mxu0 0.0
        %3365 = vmatpush2.msra.mxu0 0.0
        %3366 = vmatprep.subr.mxu0 0.0
        %3367 = vmatpush2.msra.mxu0 0.0
        %3368 = vmatprep.subr.mxu0 0.0
        %3369 = vmatpush2.msra.mxu0 0.0
        %3370 = vmatprep.subr.mxu0 0.0
        %3371 = vmatpush2.msra.mxu0 0.0
        %3372 = vmatprep.subr.mxu0 0.0
        %3373 = vmatpush2.msra.mxu0 0.0
        %3374 = vmatprep.subr.mxu0 0.0
        %3375 = vmatpush2.msra.mxu0 0.0
        %3376 = vmatprep.subr.mxu0 0.0
        %3377 = vmatpush2.msra.mxu0 0.0
        %3378 = vmatprep.subr.mxu0 0.0
        %3379 = vmatpush2.msra.mxu0 0.0
        %3380 = vmatprep.subr.mxu0 0.0
        %3381 = vmatpush2.msra.mxu0 0.0
        %3382 = vmatprep.subr.mxu0 0.0
        %3383 = vmatpush2.msra.mxu0 0.0
        %3384 = vmatprep.subr.mxu0 0.0
        %3385 = vmatpush2.msra.mxu0 0.0
        %3386 = vmatprep.subr.mxu0 0.0
        %3387 = vmatpush2.msra.mxu0 0.0
        %3388 = vmatprep.subr.mxu0 0.0
        %3389 = vmatpush2.msra.mxu0 0.0
        %3390 = vmatprep.mubr.f32.mxu0 0.0
        %3391 = vmatmul.mubr.f32.gmra.mxu0 %v3279
        %v3392 = vpop.f32.mrf.mxu0
        %v3393 = vadd.f32 %v3276, %v3392
        %v3394 = vpop.f32.mrf.mxu0
        %3395 = vmatprep.mubr.f32.mxu0 0.0
        %3396 = vmatmul.mubr.f32.gmra.mxu0 %v3282
        %v3397 = vpop.f32.mrf.mxu0
        %v3398 = vadd.f32 %v3276, %v3397
        %v3399 = vpop.f32.mrf.mxu0
        %3400 = vmatprep.mubr.f32.mxu0 0.0
        %3401 = vmatmul.mubr.f32.gmra.mxu0 %v3285
        %v3402 = vpop.f32.mrf.mxu0
        %v3403 = vadd.f32 %v3276, %v3402
        %v3404 = vpop.f32.mrf.mxu0
        %3405 = vmatprep.mubr.f32.mxu0 0.0
        %3406 = vmatmul.mubr.f32.gmra.mxu0 %v3288
        %v3407 = vpop.f32.mrf.mxu0
        %v3408 = vadd.f32 %v3276, %v3407
        %v3409 = vpop.f32.mrf.mxu0
        %3410 = vmatprep.mubr.f32.mxu0 0.0
        %3411 = vmatmul.mubr.f32.gmra.mxu0 %v3291
        %v3412 = vpop.f32.mrf.mxu0
        %v3413 = vadd.f32 %v3276, %v3412
        %v3414 = vpop.f32.mrf.mxu0
        %3415 = vmatprep.mubr.f32.mxu0 0.0
        %3416 = vmatmul.mubr.f32.gmra.mxu0 %v3294
        %v3417 = vpop.f32.mrf.mxu0
        %v3418 = vadd.f32 %v3276, %v3417
        %v3419 = vpop.f32.mrf.mxu0
        %3420 = vmatprep.mubr.f32.mxu0 0.0
        %3421 = vmatmul.mubr.f32.gmra.mxu0 %v3297
        %v3422 = vpop.f32.mrf.mxu0
        %v3423 = vadd.f32 %v3276, %v3422
        %v3424 = vpop.f32.mrf.mxu0
        %3425 = vmatprep.mubr.f32.mxu0 0.0
        %3426 = vmatmul.mubr.f32.gmra.mxu0 %v3300
        %v3427 = vpop.f32.mrf.mxu0
        %v3428 = vadd.f32 %v3276, %v3427
        %v3429 = vpop.f32.mrf.mxu0
        %3430 = vmatprep.mubr.f32.mxu0 0.0
        %3431 = vmatmul.mubr.f32.gmra.mxu0 %v3303
        %v3432 = vpop.f32.mrf.mxu0
        %v3433 = vadd.f32 %v3276, %v3432
        %v3434 = vpop.f32.mrf.mxu0
        %3435 = vmatprep.mubr.f32.mxu0 0.0
        %3436 = vmatmul.mubr.f32.gmra.mxu0 %v3306
        %v3437 = vpop.f32.mrf.mxu0
        %v3438 = vadd.f32 %v3276, %v3437
        %v3439 = vpop.f32.mrf.mxu0
        %3440 = vmatprep.mubr.f32.mxu0 0.0
        %3441 = vmatmul.mubr.f32.gmra.mxu0 %v3309
        %v3442 = vpop.f32.mrf.mxu0
        %v3443 = vadd.f32 %v3276, %v3442
        %v3444 = vpop.f32.mrf.mxu0
        %3445 = vmatprep.mubr.f32.mxu0 0.0
        %3446 = vmatmul.mubr.f32.gmra.mxu0 %v3312
        %v3447 = vpop.f32.mrf.mxu0
        %v3448 = vadd.f32 %v3276, %v3447
        %v3449 = vpop.f32.mrf.mxu0
        %3450 = vmatprep.mubr.f32.mxu0 0.0
        %3451 = vmatmul.mubr.f32.gmra.mxu0 %v3315
        %v3452 = vpop.f32.mrf.mxu0
        %v3453 = vadd.f32 %v3276, %v3452
        %v3454 = vpop.f32.mrf.mxu0
        %3455 = vmatprep.mubr.f32.mxu0 0.0
        %3456 = vmatmul.mubr.f32.gmra.mxu0 %v3318
        %v3457 = vpop.f32.mrf.mxu0
        %v3458 = vadd.f32 %v3276, %v3457
        %v3459 = vpop.f32.mrf.mxu0
        %3460 = vmatprep.mubr.f32.mxu0 0.0
        %3461 = vmatmul.mubr.f32.gmra.mxu0 %v3321
        %v3462 = vpop.f32.mrf.mxu0
        %v3463 = vadd.f32 %v3276, %v3462
        %v3464 = vpop.f32.mrf.mxu0
        %3465 = vmatprep.mubr.f32.mxu0 0.0
        %3466 = vmatmul.mubr.f32.gmra.mxu0 %v3324
        %v3467 = vpop.f32.mrf.mxu0
        %v3468 = vadd.f32 %v3276, %v3467
        %v3469 = vpop.f32.mrf.mxu0
        %3470 = vdwg.mxu0
        %v3471 = vld [vmem:[%s298] sm:$0xff]
        %v3472 = vld [vmem:[%s298 + $0x8] sm:$0xff]
        %v3473 = vld [vmem:[%s298 + $0x10] sm:$0xff]
        %v3474 = vld [vmem:[%s298 + $0x18] sm:$0xff]
        %v3475 = vld [vmem:[%s298 + $0x20] sm:$0xff]
        %v3476 = vld [vmem:[%s298 + $0x28] sm:$0xff]
        %v3477 = vld [vmem:[%s298 + $0x30] sm:$0xff]
        %v3478 = vld [vmem:[%s298 + $0x38] sm:$0xff]
        %v3479 = vld [vmem:[%s298 + $0x40] sm:$0xff]
        %v3480 = vld [vmem:[%s298 + $0x48] sm:$0xff]
        %v3481 = vld [vmem:[%s298 + $0x50] sm:$0xff]
        %v3482 = vld [vmem:[%s298 + $0x58] sm:$0xff]
        %v3483 = vld [vmem:[%s298 + $0x60] sm:$0xff]
        %v3484 = vld [vmem:[%s298 + $0x68] sm:$0xff]
        %v3485 = vld [vmem:[%s298 + $0x70] sm:$0xff]
        %v3486 = vld [vmem:[%s298 + $0x78] sm:$0xff]
        %v3487 = vadd.f32 %v3393, %v3471
        %v3488 = vadd.f32 %v3398, %v3472
        %v3489 = vadd.f32 %v3403, %v3473
        %v3490 = vadd.f32 %v3408, %v3474
        %v3491 = vadd.f32 %v3413, %v3475
        %v3492 = vadd.f32 %v3418, %v3476
        %v3493 = vadd.f32 %v3423, %v3477
        %v3494 = vadd.f32 %v3428, %v3478
        %v3495 = vadd.f32 %v3433, %v3479
        %v3496 = vadd.f32 %v3438, %v3480
        %v3497 = vadd.f32 %v3443, %v3481
        %v3498 = vadd.f32 %v3448, %v3482
        %v3499 = vadd.f32 %v3453, %v3483
        %v3500 = vadd.f32 %v3458, %v3484
        %v3501 = vadd.f32 %v3463, %v3485
        %v3502 = vadd.f32 %v3468, %v3486
        %v3503 = vmax.f32 %v3487, 0.0
        %v3504 = vmax.f32 %v3488, 0.0
        %v3505 = vmax.f32 %v3489, 0.0
        %v3506 = vmax.f32 %v3490, 0.0
        %v3507 = vmax.f32 %v3491, 0.0
        %v3508 = vmax.f32 %v3492, 0.0
        %v3509 = vmax.f32 %v3493, 0.0
        %v3510 = vmax.f32 %v3494, 0.0
        %v3511 = vmax.f32 %v3495, 0.0
        %v3512 = vmax.f32 %v3496, 0.0
        %v3513 = vmax.f32 %v3497, 0.0
        %v3514 = vmax.f32 %v3498, 0.0
        %v3515 = vmax.f32 %v3499, 0.0
        %v3516 = vmax.f32 %v3500, 0.0
        %v3517 = vmax.f32 %v3501, 0.0
        %v3518 = vmax.f32 %v3502, 0.0
        %3519 = vst [vmem:[%s340] sm:$0xff] %v3503
        %3520 = vst [vmem:[%s340 + $0x8] sm:$0xff] %v3504
        %3521 = vst [vmem:[%s340 + $0x10] sm:$0xff] %v3505
        %3522 = vst [vmem:[%s340 + $0x18] sm:$0xff] %v3506
        %3523 = vst [vmem:[%s340 + $0x20] sm:$0xff] %v3507
        %3524 = vst [vmem:[%s340 + $0x28] sm:$0xff] %v3508
        %3525 = vst [vmem:[%s340 + $0x30] sm:$0xff] %v3509
        %3526 = vst [vmem:[%s340 + $0x38] sm:$0xff] %v3510
        %3527 = vst [vmem:[%s340 + $0x40] sm:$0xff] %v3511
        %3528 = vst [vmem:[%s340 + $0x48] sm:$0xff] %v3512
        %3529 = vst [vmem:[%s340 + $0x50] sm:$0xff] %v3513
        %3530 = vst [vmem:[%s340 + $0x58] sm:$0xff] %v3514
        %3531 = vst [vmem:[%s340 + $0x60] sm:$0xff] %v3515
        %3532 = vst [vmem:[%s340 + $0x68] sm:$0xff] %v3516
        %3533 = vst [vmem:[%s340 + $0x70] sm:$0xff] %v3517
        %3534 = vst [vmem:[%s340 + $0x78] sm:$0xff] %v3518
        %v3535 = vld [vmem:[#allocation2 + $0x87] sm:$0xff]
        %v3536 = vld [vmem:[#allocation2 + $0x8f] sm:$0xff]
        %v3537 = vld [vmem:[#allocation2 + $0x97] sm:$0xff]
        %v3538 = vld [vmem:[#allocation2 + $0x9f] sm:$0xff]
        %v3539 = vld [vmem:[#allocation2 + $0xa7] sm:$0xff]
        %v3540 = vld [vmem:[#allocation2 + $0xaf] sm:$0xff]
        %v3541 = vld [vmem:[#allocation2 + $0xb7] sm:$0xff]
        %v3542 = vld [vmem:[#allocation2 + $0xbf] sm:$0xff]
        %v3543 = vld [vmem:[#allocation2 + $0xc7] sm:$0xff]
        %v3544 = vld [vmem:[#allocation2 + $0xcf] sm:$0xff]
        %v3545 = vld [vmem:[#allocation2 + $0xd7] sm:$0xff]
        %v3546 = vld [vmem:[#allocation2 + $0xdf] sm:$0xff]
        %v3547 = vld [vmem:[#allocation2 + $0xe7] sm:$0xff]
        %v3548 = vld [vmem:[#allocation2 + $0xef] sm:$0xff]
        %v3549 = vld [vmem:[#allocation2 + $0xf7] sm:$0xff]
        %v3550 = vld [vmem:[#allocation2 + $0xff] sm:$0xff]
        %v3551 = vsel %vm1053, %v3535, 0.0
        %v3552 = vsel %vm1054, %v3536, 0.0
        %v3553 = vsel %vm1055, %v3537, 0.0
        %v3554 = vsel %vm1056, %v3538, 0.0
        %v3555 = vsel %vm1057, %v3539, 0.0
        %v3556 = vsel %vm1058, %v3540, 0.0
        %v3557 = vsel %vm1059, %v3541, 0.0
        %v3558 = vsel %vm1060, %v3542, 0.0
        %v3559 = vsel %vm1061, %v3543, 0.0
        %v3560 = vsel %vm1062, %v3544, 0.0
        %v3561 = vsel %vm1063, %v3545, 0.0
        %v3562 = vsel %vm1064, %v3546, 0.0
        %v3563 = vsel %vm1065, %v3547, 0.0
        %v3564 = vsel %vm1066, %v3548, 0.0
        %v3565 = vsel %vm1067, %v3549, 0.0
        %v3566 = vsel %vm1068, %v3550, 0.0
        %v3567 = vld [vmem:[#allocation8] sm:$0xff]
        %v3568 = vld [vmem:[#allocation8 + $0x8] sm:$0xff]
        %v3569 = vld [vmem:[#allocation8 + $0x10] sm:$0xff]
        %v3570 = vld [vmem:[#allocation8 + $0x18] sm:$0xff]
        %v3571 = vld [vmem:[#allocation2 + $0x88] sm:$0xff]
        %v3572 = vld [vmem:[#allocation2 + $0x90] sm:$0xff]
        %v3573 = vld [vmem:[#allocation2 + $0x98] sm:$0xff]
        %v3574 = vld [vmem:[#allocation2 + $0xa0] sm:$0xff]
        %v3575 = vld [vmem:[#allocation2 + $0xa8] sm:$0xff]
        %v3576 = vld [vmem:[#allocation2 + $0xb0] sm:$0xff]
        %v3577 = vld [vmem:[#allocation2 + $0xb8] sm:$0xff]
        %v3578 = vld [vmem:[#allocation2 + $0xc0] sm:$0xff]
        %v3579 = vld [vmem:[#allocation2 + $0xc8] sm:$0xff]
        %v3580 = vld [vmem:[#allocation2 + $0xd0] sm:$0xff]
        %v3581 = vld [vmem:[#allocation2 + $0xd8] sm:$0xff]
        %v3582 = vld [vmem:[#allocation2 + $0xe0] sm:$0xff]
        %v3583 = vld [vmem:[#allocation2 + $0xe8] sm:$0xff]
        %v3584 = vld [vmem:[#allocation2 + $0xf0] sm:$0xff]
        %v3585 = vld [vmem:[#allocation2 + $0xf8] sm:$0xff]
        %v3586 = vld [vmem:[#allocation2 + $0x100] sm:$0xff]
        %v3587 = vld [vmem:[%s1105] sm:$0xff]
        %v3588 = vld [vmem:[%s1105 + $0x8] sm:$0xff]
        %v3589 = vld [vmem:[%s1105 + $0x10] sm:$0xff]
        %v3590 = vld [vmem:[%s1105 + $0x18] sm:$0xff]
        %v3592 = vsel %vm341, %v3571, 0
        %v3595 = vsel %vm341, %v3572, 0
        %v3598 = vsel %vm341, %v3573, 0
        %v3601 = vsel %vm341, %v3574, 0
        %v3604 = vsel %vm341, %v3575, 0
        %v3607 = vsel %vm341, %v3576, 0
        %v3610 = vsel %vm341, %v3577, 0
        %v3613 = vsel %vm341, %v3578, 0
        %v3616 = vsel %vm341, %v3579, 0
        %v3619 = vsel %vm341, %v3580, 0
        %v3622 = vsel %vm341, %v3581, 0
        %v3625 = vsel %vm341, %v3582, 0
        %v3628 = vsel %vm341, %v3583, 0
        %v3631 = vsel %vm341, %v3584, 0
        %v3634 = vsel %vm341, %v3585, 0
        %v3637 = vsel %vm341, %v3586, 0
        %3639 = vmatprep.subr.mxu0 0.0
        %3640 = vmatpush1.msra.mxu0 0.0
        %3641 = vmatprep.subr.mxu0 0.0
        %3642 = vmatpush1.msra.mxu0 0.0
        %3643 = vmatprep.subr.mxu0 0.0
        %3644 = vmatpush1.msra.mxu0 0.0
        %3645 = vmatprep.subr.mxu0 0.0
        %3646 = vmatpush1.msra.mxu0 0.0
        %3647 = vmatprep.subr.mxu0 0.0
        %3648 = vmatpush1.msra.mxu0 0.0
        %3649 = vmatprep.subr.mxu0 0.0
        %3650 = vmatpush1.msra.mxu0 0.0
        %3651 = vmatprep.subr.mxu0 0.0
        %3652 = vmatpush1.msra.mxu0 0.0
        %3653 = vmatprep.subr.mxu0 0.0
        %3654 = vmatpush1.msra.mxu0 0.0
        %3655 = vmatprep.subr.mxu0 0.0
        %3656 = vmatpush1.msra.mxu0 0.0
        %3657 = vmatprep.subr.mxu0 0.0
        %3658 = vmatpush1.msra.mxu0 0.0
        %3659 = vmatprep.subr.mxu0 0.0
        %3660 = vmatpush1.msra.mxu0 0.0
        %3661 = vmatprep.subr.mxu0 0.0
        %3662 = vmatpush1.msra.mxu0 0.0
        %3663 = vmatprep.subr.mxu0 0.0
        %3664 = vmatpush1.msra.mxu0 %v3590
        %3665 = vmatprep.subr.mxu0 0.0
        %3666 = vmatpush1.msra.mxu0 %v3589
        %3667 = vmatprep.subr.mxu0 0.0
        %3668 = vmatpush1.msra.mxu0 %v3588
        %3669 = vmatprep.subr.mxu0 0.0
        %3670 = vmatpush1.msra.mxu0 %v3587
        %3671 = vmatprep.subr.mxu0 0.0
        %3672 = vmatpush2.msra.mxu0 0.0
        %3673 = vmatprep.subr.mxu0 0.0
        %3674 = vmatpush2.msra.mxu0 0.0
        %3675 = vmatprep.subr.mxu0 0.0
        %3676 = vmatpush2.msra.mxu0 0.0
        %3677 = vmatprep.subr.mxu0 0.0
        %3678 = vmatpush2.msra.mxu0 0.0
        %3679 = vmatprep.subr.mxu0 0.0
        %3680 = vmatpush2.msra.mxu0 0.0
        %3681 = vmatprep.subr.mxu0 0.0
        %3682 = vmatpush2.msra.mxu0 0.0
        %3683 = vmatprep.subr.mxu0 0.0
        %3684 = vmatpush2.msra.mxu0 0.0
        %3685 = vmatprep.subr.mxu0 0.0
        %3686 = vmatpush2.msra.mxu0 0.0
        %3687 = vmatprep.subr.mxu0 0.0
        %3688 = vmatpush2.msra.mxu0 0.0
        %3689 = vmatprep.subr.mxu0 0.0
        %3690 = vmatpush2.msra.mxu0 0.0
        %3691 = vmatprep.subr.mxu0 0.0
        %3692 = vmatpush2.msra.mxu0 0.0
        %3693 = vmatprep.subr.mxu0 0.0
        %3694 = vmatpush2.msra.mxu0 0.0
        %3695 = vmatprep.subr.mxu0 0.0
        %3696 = vmatpush2.msra.mxu0 0.0
        %3697 = vmatprep.subr.mxu0 0.0
        %3698 = vmatpush2.msra.mxu0 0.0
        %3699 = vmatprep.subr.mxu0 0.0
        %3700 = vmatpush2.msra.mxu0 0.0
        %3701 = vmatprep.subr.mxu0 0.0
        %3702 = vmatpush2.msra.mxu0 0.0
        %3703 = vmatprep.mubr.f32.mxu0 0.0
        %3704 = vmatmul.mubr.f32.gmra.mxu0 %v3592
        %v3705 = vpop.f32.mrf.mxu0
        %v3706 = vadd.f32 0.0, %v3705
        %v3707 = vpop.f32.mrf.mxu0
        %3708 = vmatprep.mubr.f32.mxu0 0.0
        %3709 = vmatmul.mubr.f32.gmra.mxu0 %v3595
        %v3710 = vpop.f32.mrf.mxu0
        %v3711 = vadd.f32 0.0, %v3710
        %v3712 = vpop.f32.mrf.mxu0
        %3713 = vmatprep.mubr.f32.mxu0 0.0
        %3714 = vmatmul.mubr.f32.gmra.mxu0 %v3598
        %v3715 = vpop.f32.mrf.mxu0
        %v3716 = vadd.f32 0.0, %v3715
        %v3717 = vpop.f32.mrf.mxu0
        %3718 = vmatprep.mubr.f32.mxu0 0.0
        %3719 = vmatmul.mubr.f32.gmra.mxu0 %v3601
        %v3720 = vpop.f32.mrf.mxu0
        %v3721 = vadd.f32 0.0, %v3720
        %v3722 = vpop.f32.mrf.mxu0
        %3723 = vmatprep.mubr.f32.mxu0 0.0
        %3724 = vmatmul.mubr.f32.gmra.mxu0 %v3604
        %v3725 = vpop.f32.mrf.mxu0
        %v3726 = vadd.f32 0.0, %v3725
        %v3727 = vpop.f32.mrf.mxu0
        %3728 = vmatprep.mubr.f32.mxu0 0.0
        %3729 = vmatmul.mubr.f32.gmra.mxu0 %v3607
        %v3730 = vpop.f32.mrf.mxu0
        %v3731 = vadd.f32 0.0, %v3730
        %v3732 = vpop.f32.mrf.mxu0
        %3733 = vmatprep.mubr.f32.mxu0 0.0
        %3734 = vmatmul.mubr.f32.gmra.mxu0 %v3610
        %v3735 = vpop.f32.mrf.mxu0
        %v3736 = vadd.f32 0.0, %v3735
        %v3737 = vpop.f32.mrf.mxu0
        %3738 = vmatprep.mubr.f32.mxu0 0.0
        %3739 = vmatmul.mubr.f32.gmra.mxu0 %v3613
        %v3740 = vpop.f32.mrf.mxu0
        %v3741 = vadd.f32 0.0, %v3740
        %v3742 = vpop.f32.mrf.mxu0
        %3743 = vmatprep.mubr.f32.mxu0 0.0
        %3744 = vmatmul.mubr.f32.gmra.mxu0 %v3616
        %v3745 = vpop.f32.mrf.mxu0
        %v3746 = vadd.f32 0.0, %v3745
        %v3747 = vpop.f32.mrf.mxu0
        %3748 = vmatprep.mubr.f32.mxu0 0.0
        %3749 = vmatmul.mubr.f32.gmra.mxu0 %v3619
        %v3750 = vpop.f32.mrf.mxu0
        %v3751 = vadd.f32 0.0, %v3750
        %v3752 = vpop.f32.mrf.mxu0
        %3753 = vmatprep.mubr.f32.mxu0 0.0
        %3754 = vmatmul.mubr.f32.gmra.mxu0 %v3622
        %v3755 = vpop.f32.mrf.mxu0
        %v3756 = vadd.f32 0.0, %v3755
        %v3757 = vpop.f32.mrf.mxu0
        %3758 = vmatprep.mubr.f32.mxu0 0.0
        %3759 = vmatmul.mubr.f32.gmra.mxu0 %v3625
        %v3760 = vpop.f32.mrf.mxu0
        %v3761 = vadd.f32 0.0, %v3760
        %v3762 = vpop.f32.mrf.mxu0
        %3763 = vmatprep.mubr.f32.mxu0 0.0
        %3764 = vmatmul.mubr.f32.gmra.mxu0 %v3628
        %v3765 = vpop.f32.mrf.mxu0
        %v3766 = vadd.f32 0.0, %v3765
        %v3767 = vpop.f32.mrf.mxu0
        %3768 = vmatprep.mubr.f32.mxu0 0.0
        %3769 = vmatmul.mubr.f32.gmra.mxu0 %v3631
        %v3770 = vpop.f32.mrf.mxu0
        %v3771 = vadd.f32 0.0, %v3770
        %v3772 = vpop.f32.mrf.mxu0
        %3773 = vmatprep.mubr.f32.mxu0 0.0
        %3774 = vmatmul.mubr.f32.gmra.mxu0 %v3634
        %v3775 = vpop.f32.mrf.mxu0
        %v3776 = vadd.f32 0.0, %v3775
        %v3777 = vpop.f32.mrf.mxu0
        %3778 = vmatprep.mubr.f32.mxu0 0.0
        %3779 = vmatmul.mubr.f32.gmra.mxu0 %v3637
        %v3780 = vpop.f32.mrf.mxu0
        %v3781 = vadd.f32 0.0, %v3780
        %v3782 = vpop.f32.mrf.mxu0
        %3783 = vdwg.mxu0
        %v3785 = vsel %vm341, %v3551, 0
        %v3788 = vsel %vm341, %v3552, 0
        %v3791 = vsel %vm341, %v3553, 0
        %v3794 = vsel %vm341, %v3554, 0
        %v3797 = vsel %vm341, %v3555, 0
        %v3800 = vsel %vm341, %v3556, 0
        %v3803 = vsel %vm341, %v3557, 0
        %v3806 = vsel %vm341, %v3558, 0
        %v3809 = vsel %vm341, %v3559, 0
        %v3812 = vsel %vm341, %v3560, 0
        %v3815 = vsel %vm341, %v3561, 0
        %v3818 = vsel %vm341, %v3562, 0
        %v3821 = vsel %vm341, %v3563, 0
        %v3824 = vsel %vm341, %v3564, 0
        %v3827 = vsel %vm341, %v3565, 0
        %v3830 = vsel %vm341, %v3566, 0
        %3832 = vmatprep.subr.mxu0 0.0
        %3833 = vmatpush1.msra.mxu0 0.0
        %3834 = vmatprep.subr.mxu0 0.0
        %3835 = vmatpush1.msra.mxu0 0.0
        %3836 = vmatprep.subr.mxu0 0.0
        %3837 = vmatpush1.msra.mxu0 0.0
        %3838 = vmatprep.subr.mxu0 0.0
        %3839 = vmatpush1.msra.mxu0 0.0
        %3840 = vmatprep.subr.mxu0 0.0
        %3841 = vmatpush1.msra.mxu0 0.0
        %3842 = vmatprep.subr.mxu0 0.0
        %3843 = vmatpush1.msra.mxu0 0.0
        %3844 = vmatprep.subr.mxu0 0.0
        %3845 = vmatpush1.msra.mxu0 0.0
        %3846 = vmatprep.subr.mxu0 0.0
        %3847 = vmatpush1.msra.mxu0 0.0
        %3848 = vmatprep.subr.mxu0 0.0
        %3849 = vmatpush1.msra.mxu0 0.0
        %3850 = vmatprep.subr.mxu0 0.0
        %3851 = vmatpush1.msra.mxu0 0.0
        %3852 = vmatprep.subr.mxu0 0.0
        %3853 = vmatpush1.msra.mxu0 0.0
        %3854 = vmatprep.subr.mxu0 0.0
        %3855 = vmatpush1.msra.mxu0 0.0
        %3856 = vmatprep.subr.mxu0 0.0
        %3857 = vmatpush1.msra.mxu0 %v3570
        %3858 = vmatprep.subr.mxu0 0.0
        %3859 = vmatpush1.msra.mxu0 %v3569
        %3860 = vmatprep.subr.mxu0 0.0
        %3861 = vmatpush1.msra.mxu0 %v3568
        %3862 = vmatprep.subr.mxu0 0.0
        %3863 = vmatpush1.msra.mxu0 %v3567
        %3864 = vmatprep.subr.mxu0 0.0
        %3865 = vmatpush2.msra.mxu0 0.0
        %3866 = vmatprep.subr.mxu0 0.0
        %3867 = vmatpush2.msra.mxu0 0.0
        %3868 = vmatprep.subr.mxu0 0.0
        %3869 = vmatpush2.msra.mxu0 0.0
        %3870 = vmatprep.subr.mxu0 0.0
        %3871 = vmatpush2.msra.mxu0 0.0
        %3872 = vmatprep.subr.mxu0 0.0
        %3873 = vmatpush2.msra.mxu0 0.0
        %3874 = vmatprep.subr.mxu0 0.0
        %3875 = vmatpush2.msra.mxu0 0.0
        %3876 = vmatprep.subr.mxu0 0.0
        %3877 = vmatpush2.msra.mxu0 0.0
        %3878 = vmatprep.subr.mxu0 0.0
        %3879 = vmatpush2.msra.mxu0 0.0
        %3880 = vmatprep.subr.mxu0 0.0
        %3881 = vmatpush2.msra.mxu0 0.0
        %3882 = vmatprep.subr.mxu0 0.0
        %3883 = vmatpush2.msra.mxu0 0.0
        %3884 = vmatprep.subr.mxu0 0.0
        %3885 = vmatpush2.msra.mxu0 0.0
        %3886 = vmatprep.subr.mxu0 0.0
        %3887 = vmatpush2.msra.mxu0 0.0
        %3888 = vmatprep.subr.mxu0 0.0
        %3889 = vmatpush2.msra.mxu0 0.0
        %3890 = vmatprep.subr.mxu0 0.0
        %3891 = vmatpush2.msra.mxu0 0.0
        %3892 = vmatprep.subr.mxu0 0.0
        %3893 = vmatpush2.msra.mxu0 0.0
        %3894 = vmatprep.subr.mxu0 0.0
        %3895 = vmatpush2.msra.mxu0 0.0
        %3896 = vmatprep.mubr.f32.mxu0 0.0
        %3897 = vmatmul.mubr.f32.gmra.mxu0 %v3785
        %v3898 = vpop.f32.mrf.mxu0
        %v3899 = vadd.f32 %v3706, %v3898
        %v3900 = vpop.f32.mrf.mxu0
        %3901 = vmatprep.mubr.f32.mxu0 0.0
        %3902 = vmatmul.mubr.f32.gmra.mxu0 %v3788
        %v3903 = vpop.f32.mrf.mxu0
        %v3904 = vadd.f32 %v3711, %v3903
        %v3905 = vpop.f32.mrf.mxu0
        %3906 = vmatprep.mubr.f32.mxu0 0.0
        %3907 = vmatmul.mubr.f32.gmra.mxu0 %v3791
        %v3908 = vpop.f32.mrf.mxu0
        %v3909 = vadd.f32 %v3716, %v3908
        %v3910 = vpop.f32.mrf.mxu0
        %3911 = vmatprep.mubr.f32.mxu0 0.0
        %3912 = vmatmul.mubr.f32.gmra.mxu0 %v3794
        %v3913 = vpop.f32.mrf.mxu0
        %v3914 = vadd.f32 %v3721, %v3913
        %v3915 = vpop.f32.mrf.mxu0
        %3916 = vmatprep.mubr.f32.mxu0 0.0
        %3917 = vmatmul.mubr.f32.gmra.mxu0 %v3797
        %v3918 = vpop.f32.mrf.mxu0
        %v3919 = vadd.f32 %v3726, %v3918
        %v3920 = vpop.f32.mrf.mxu0
        %3921 = vmatprep.mubr.f32.mxu0 0.0
        %3922 = vmatmul.mubr.f32.gmra.mxu0 %v3800
        %v3923 = vpop.f32.mrf.mxu0
        %v3924 = vadd.f32 %v3731, %v3923
        %v3925 = vpop.f32.mrf.mxu0
        %3926 = vmatprep.mubr.f32.mxu0 0.0
        %3927 = vmatmul.mubr.f32.gmra.mxu0 %v3803
        %v3928 = vpop.f32.mrf.mxu0
        %v3929 = vadd.f32 %v3736, %v3928
        %v3930 = vpop.f32.mrf.mxu0
        %3931 = vmatprep.mubr.f32.mxu0 0.0
        %3932 = vmatmul.mubr.f32.gmra.mxu0 %v3806
        %v3933 = vpop.f32.mrf.mxu0
        %v3934 = vadd.f32 %v3741, %v3933
        %v3935 = vpop.f32.mrf.mxu0
        %3936 = vmatprep.mubr.f32.mxu0 0.0
        %3937 = vmatmul.mubr.f32.gmra.mxu0 %v3809
        %v3938 = vpop.f32.mrf.mxu0
        %v3939 = vadd.f32 %v3746, %v3938
        %v3940 = vpop.f32.mrf.mxu0
        %3941 = vmatprep.mubr.f32.mxu0 0.0
        %3942 = vmatmul.mubr.f32.gmra.mxu0 %v3812
        %v3943 = vpop.f32.mrf.mxu0
        %v3944 = vadd.f32 %v3751, %v3943
        %v3945 = vpop.f32.mrf.mxu0
        %3946 = vmatprep.mubr.f32.mxu0 0.0
        %3947 = vmatmul.mubr.f32.gmra.mxu0 %v3815
        %v3948 = vpop.f32.mrf.mxu0
        %v3949 = vadd.f32 %v3756, %v3948
        %v3950 = vpop.f32.mrf.mxu0
        %3951 = vmatprep.mubr.f32.mxu0 0.0
        %3952 = vmatmul.mubr.f32.gmra.mxu0 %v3818
        %v3953 = vpop.f32.mrf.mxu0
        %v3954 = vadd.f32 %v3761, %v3953
        %v3955 = vpop.f32.mrf.mxu0
        %3956 = vmatprep.mubr.f32.mxu0 0.0
        %3957 = vmatmul.mubr.f32.gmra.mxu0 %v3821
        %v3958 = vpop.f32.mrf.mxu0
        %v3959 = vadd.f32 %v3766, %v3958
        %v3960 = vpop.f32.mrf.mxu0
        %3961 = vmatprep.mubr.f32.mxu0 0.0
        %3962 = vmatmul.mubr.f32.gmra.mxu0 %v3824
        %v3963 = vpop.f32.mrf.mxu0
        %v3964 = vadd.f32 %v3771, %v3963
        %v3965 = vpop.f32.mrf.mxu0
        %3966 = vmatprep.mubr.f32.mxu0 0.0
        %3967 = vmatmul.mubr.f32.gmra.mxu0 %v3827
        %v3968 = vpop.f32.mrf.mxu0
        %v3969 = vadd.f32 %v3776, %v3968
        %v3970 = vpop.f32.mrf.mxu0
        %3971 = vmatprep.mubr.f32.mxu0 0.0
        %3972 = vmatmul.mubr.f32.gmra.mxu0 %v3830
        %v3973 = vpop.f32.mrf.mxu0
        %v3974 = vadd.f32 %v3781, %v3973
        %v3975 = vpop.f32.mrf.mxu0
        %3976 = vdwg.mxu0
        %v3977 = vld [vmem:[#allocation2 + $0x89] sm:$0xff]
        %v3978 = vld [vmem:[#allocation2 + $0x91] sm:$0xff]
        %v3979 = vld [vmem:[#allocation2 + $0x99] sm:$0xff]
        %v3980 = vld [vmem:[#allocation2 + $0xa1] sm:$0xff]
        %v3981 = vld [vmem:[#allocation2 + $0xa9] sm:$0xff]
        %v3982 = vld [vmem:[#allocation2 + $0xb1] sm:$0xff]
        %v3983 = vld [vmem:[#allocation2 + $0xb9] sm:$0xff]
        %v3984 = vld [vmem:[#allocation2 + $0xc1] sm:$0xff]
        %v3985 = vld [vmem:[#allocation2 + $0xc9] sm:$0xff]
        %v3986 = vld [vmem:[#allocation2 + $0xd1] sm:$0xff]
        %v3987 = vld [vmem:[#allocation2 + $0xd9] sm:$0xff]
        %v3988 = vld [vmem:[#allocation2 + $0xe1] sm:$0xff]
        %v3989 = vld [vmem:[#allocation2 + $0xe9] sm:$0xff]
        %v3990 = vld [vmem:[#allocation2 + $0xf1] sm:$0xff]
        %v3991 = vld [vmem:[#allocation2 + $0xf9] sm:$0xff]
        %v3992 = vld [vmem:[#allocation2 + $0x101] sm:$0xff]
        %v3993 = vsel %vm1544, %v3977, 0.0
        %v3994 = vsel %vm1545, %v3978, 0.0
        %v3995 = vsel %vm1546, %v3979, 0.0
        %v3996 = vsel %vm1547, %v3980, 0.0
        %v3997 = vsel %vm1548, %v3981, 0.0
        %v3998 = vsel %vm1549, %v3982, 0.0
        %v3999 = vsel %vm1550, %v3983, 0.0
        %v4000 = vsel %vm1551, %v3984, 0.0
        %v4001 = vsel %vm1552, %v3985, 0.0
        %v4002 = vsel %vm1553, %v3986, 0.0
        %v4003 = vsel %vm1554, %v3987, 0.0
        %v4004 = vsel %vm1555, %v3988, 0.0
        %v4005 = vsel %vm1556, %v3989, 0.0
        %v4006 = vsel %vm1557, %v3990, 0.0
        %v4007 = vsel %vm1558, %v3991, 0.0
        %v4008 = vsel %vm1559, %v3992, 0.0
        %v4009 = vld [vmem:[%s1576] sm:$0xff]
        %v4010 = vld [vmem:[%s1576 + $0x8] sm:$0xff]
        %v4011 = vld [vmem:[%s1576 + $0x10] sm:$0xff]
        %v4012 = vld [vmem:[%s1576 + $0x18] sm:$0xff]
        %v4014 = vsel %vm341, %v3993, 0
        %v4017 = vsel %vm341, %v3994, 0
        %v4020 = vsel %vm341, %v3995, 0
        %v4023 = vsel %vm341, %v3996, 0
        %v4026 = vsel %vm341, %v3997, 0
        %v4029 = vsel %vm341, %v3998, 0
        %v4032 = vsel %vm341, %v3999, 0
        %v4035 = vsel %vm341, %v4000, 0
        %v4038 = vsel %vm341, %v4001, 0
        %v4041 = vsel %vm341, %v4002, 0
        %v4044 = vsel %vm341, %v4003, 0
        %v4047 = vsel %vm341, %v4004, 0
        %v4050 = vsel %vm341, %v4005, 0
        %v4053 = vsel %vm341, %v4006, 0
        %v4056 = vsel %vm341, %v4007, 0
        %v4059 = vsel %vm341, %v4008, 0
        %4061 = vmatprep.subr.mxu0 0.0
        %4062 = vmatpush1.msra.mxu0 0.0
        %4063 = vmatprep.subr.mxu0 0.0
        %4064 = vmatpush1.msra.mxu0 0.0
        %4065 = vmatprep.subr.mxu0 0.0
        %4066 = vmatpush1.msra.mxu0 0.0
        %4067 = vmatprep.subr.mxu0 0.0
        %4068 = vmatpush1.msra.mxu0 0.0
        %4069 = vmatprep.subr.mxu0 0.0
        %4070 = vmatpush1.msra.mxu0 0.0
        %4071 = vmatprep.subr.mxu0 0.0
        %4072 = vmatpush1.msra.mxu0 0.0
        %4073 = vmatprep.subr.mxu0 0.0
        %4074 = vmatpush1.msra.mxu0 0.0
        %4075 = vmatprep.subr.mxu0 0.0
        %4076 = vmatpush1.msra.mxu0 0.0
        %4077 = vmatprep.subr.mxu0 0.0
        %4078 = vmatpush1.msra.mxu0 0.0
        %4079 = vmatprep.subr.mxu0 0.0
        %4080 = vmatpush1.msra.mxu0 0.0
        %4081 = vmatprep.subr.mxu0 0.0
        %4082 = vmatpush1.msra.mxu0 0.0
        %4083 = vmatprep.subr.mxu0 0.0
        %4084 = vmatpush1.msra.mxu0 0.0
        %4085 = vmatprep.subr.mxu0 0.0
        %4086 = vmatpush1.msra.mxu0 %v4012
        %4087 = vmatprep.subr.mxu0 0.0
        %4088 = vmatpush1.msra.mxu0 %v4011
        %4089 = vmatprep.subr.mxu0 0.0
        %4090 = vmatpush1.msra.mxu0 %v4010
        %4091 = vmatprep.subr.mxu0 0.0
        %4092 = vmatpush1.msra.mxu0 %v4009
        %4093 = vmatprep.subr.mxu0 0.0
        %4094 = vmatpush2.msra.mxu0 0.0
        %4095 = vmatprep.subr.mxu0 0.0
        %4096 = vmatpush2.msra.mxu0 0.0
        %4097 = vmatprep.subr.mxu0 0.0
        %4098 = vmatpush2.msra.mxu0 0.0
        %4099 = vmatprep.subr.mxu0 0.0
        %4100 = vmatpush2.msra.mxu0 0.0
        %4101 = vmatprep.subr.mxu0 0.0
        %4102 = vmatpush2.msra.mxu0 0.0
        %4103 = vmatprep.subr.mxu0 0.0
        %4104 = vmatpush2.msra.mxu0 0.0
        %4105 = vmatprep.subr.mxu0 0.0
        %4106 = vmatpush2.msra.mxu0 0.0
        %4107 = vmatprep.subr.mxu0 0.0
        %4108 = vmatpush2.msra.mxu0 0.0
        %4109 = vmatprep.subr.mxu0 0.0
        %4110 = vmatpush2.msra.mxu0 0.0
        %4111 = vmatprep.subr.mxu0 0.0
        %4112 = vmatpush2.msra.mxu0 0.0
        %4113 = vmatprep.subr.mxu0 0.0
        %4114 = vmatpush2.msra.mxu0 0.0
        %4115 = vmatprep.subr.mxu0 0.0
        %4116 = vmatpush2.msra.mxu0 0.0
        %4117 = vmatprep.subr.mxu0 0.0
        %4118 = vmatpush2.msra.mxu0 0.0
        %4119 = vmatprep.subr.mxu0 0.0
        %4120 = vmatpush2.msra.mxu0 0.0
        %4121 = vmatprep.subr.mxu0 0.0
        %4122 = vmatpush2.msra.mxu0 0.0
        %4123 = vmatprep.subr.mxu0 0.0
        %4124 = vmatpush2.msra.mxu0 0.0
        %4125 = vmatprep.mubr.f32.mxu0 0.0
        %4126 = vmatmul.mubr.f32.gmra.mxu0 %v4014
        %v4127 = vpop.f32.mrf.mxu0
        %v4128 = vadd.f32 0.0, %v4127
        %v4129 = vpop.f32.mrf.mxu0
        %4130 = vmatprep.mubr.f32.mxu0 0.0
        %4131 = vmatmul.mubr.f32.gmra.mxu0 %v4017
        %v4132 = vpop.f32.mrf.mxu0
        %v4133 = vadd.f32 0.0, %v4132
        %v4134 = vpop.f32.mrf.mxu0
        %4135 = vmatprep.mubr.f32.mxu0 0.0
        %4136 = vmatmul.mubr.f32.gmra.mxu0 %v4020
        %v4137 = vpop.f32.mrf.mxu0
        %v4138 = vadd.f32 0.0, %v4137
        %v4139 = vpop.f32.mrf.mxu0
        %4140 = vmatprep.mubr.f32.mxu0 0.0
        %4141 = vmatmul.mubr.f32.gmra.mxu0 %v4023
        %v4142 = vpop.f32.mrf.mxu0
        %v4143 = vadd.f32 0.0, %v4142
        %v4144 = vpop.f32.mrf.mxu0
        %4145 = vmatprep.mubr.f32.mxu0 0.0
        %4146 = vmatmul.mubr.f32.gmra.mxu0 %v4026
        %v4147 = vpop.f32.mrf.mxu0
        %v4148 = vadd.f32 0.0, %v4147
        %v4149 = vpop.f32.mrf.mxu0
        %4150 = vmatprep.mubr.f32.mxu0 0.0
        %4151 = vmatmul.mubr.f32.gmra.mxu0 %v4029
        %v4152 = vpop.f32.mrf.mxu0
        %v4153 = vadd.f32 0.0, %v4152
        %v4154 = vpop.f32.mrf.mxu0
        %4155 = vmatprep.mubr.f32.mxu0 0.0
        %4156 = vmatmul.mubr.f32.gmra.mxu0 %v4032
        %v4157 = vpop.f32.mrf.mxu0
        %v4158 = vadd.f32 0.0, %v4157
        %v4159 = vpop.f32.mrf.mxu0
        %4160 = vmatprep.mubr.f32.mxu0 0.0
        %4161 = vmatmul.mubr.f32.gmra.mxu0 %v4035
        %v4162 = vpop.f32.mrf.mxu0
        %v4163 = vadd.f32 0.0, %v4162
        %v4164 = vpop.f32.mrf.mxu0
        %4165 = vmatprep.mubr.f32.mxu0 0.0
        %4166 = vmatmul.mubr.f32.gmra.mxu0 %v4038
        %v4167 = vpop.f32.mrf.mxu0
        %v4168 = vadd.f32 0.0, %v4167
        %v4169 = vpop.f32.mrf.mxu0
        %4170 = vmatprep.mubr.f32.mxu0 0.0
        %4171 = vmatmul.mubr.f32.gmra.mxu0 %v4041
        %v4172 = vpop.f32.mrf.mxu0
        %v4173 = vadd.f32 0.0, %v4172
        %v4174 = vpop.f32.mrf.mxu0
        %4175 = vmatprep.mubr.f32.mxu0 0.0
        %4176 = vmatmul.mubr.f32.gmra.mxu0 %v4044
        %v4177 = vpop.f32.mrf.mxu0
        %v4178 = vadd.f32 0.0, %v4177
        %v4179 = vpop.f32.mrf.mxu0
        %4180 = vmatprep.mubr.f32.mxu0 0.0
        %4181 = vmatmul.mubr.f32.gmra.mxu0 %v4047
        %v4182 = vpop.f32.mrf.mxu0
        %v4183 = vadd.f32 0.0, %v4182
        %v4184 = vpop.f32.mrf.mxu0
        %4185 = vmatprep.mubr.f32.mxu0 0.0
        %4186 = vmatmul.mubr.f32.gmra.mxu0 %v4050
        %v4187 = vpop.f32.mrf.mxu0
        %v4188 = vadd.f32 0.0, %v4187
        %v4189 = vpop.f32.mrf.mxu0
        %4190 = vmatprep.mubr.f32.mxu0 0.0
        %4191 = vmatmul.mubr.f32.gmra.mxu0 %v4053
        %v4192 = vpop.f32.mrf.mxu0
        %v4193 = vadd.f32 0.0, %v4192
        %v4194 = vpop.f32.mrf.mxu0
        %4195 = vmatprep.mubr.f32.mxu0 0.0
        %4196 = vmatmul.mubr.f32.gmra.mxu0 %v4056
        %v4197 = vpop.f32.mrf.mxu0
        %v4198 = vadd.f32 0.0, %v4197
        %v4199 = vpop.f32.mrf.mxu0
        %4200 = vmatprep.mubr.f32.mxu0 0.0
        %4201 = vmatmul.mubr.f32.gmra.mxu0 %v4059
        %v4202 = vpop.f32.mrf.mxu0
        %v4203 = vadd.f32 0.0, %v4202
        %v4204 = vpop.f32.mrf.mxu0
        %4205 = vdwg.mxu0
        %v4206 = vadd.f32 %v3899, %v4128
        %v4207 = vadd.f32 %v3904, %v4133
        %v4208 = vadd.f32 %v3909, %v4138
        %v4209 = vadd.f32 %v3914, %v4143
        %v4210 = vadd.f32 %v3919, %v4148
        %v4211 = vadd.f32 %v3924, %v4153
        %v4212 = vadd.f32 %v3929, %v4158
        %v4213 = vadd.f32 %v3934, %v4163
        %v4214 = vadd.f32 %v3939, %v4168
        %v4215 = vadd.f32 %v3944, %v4173
        %v4216 = vadd.f32 %v3949, %v4178
        %v4217 = vadd.f32 %v3954, %v4183
        %v4218 = vadd.f32 %v3959, %v4188
        %v4219 = vadd.f32 %v3964, %v4193
        %v4220 = vadd.f32 %v3969, %v4198
        %v4221 = vadd.f32 %v3974, %v4203
        %v4222 = vld [vmem:[#allocation2 + $0x97] sm:$0xff]
        %v4223 = vld [vmem:[#allocation2 + $0x9f] sm:$0xff]
        %v4224 = vld [vmem:[#allocation2 + $0xa7] sm:$0xff]
        %v4225 = vld [vmem:[#allocation2 + $0xaf] sm:$0xff]
        %v4226 = vld [vmem:[#allocation2 + $0xb7] sm:$0xff]
        %v4227 = vld [vmem:[#allocation2 + $0xbf] sm:$0xff]
        %v4228 = vld [vmem:[#allocation2 + $0xc7] sm:$0xff]
        %v4229 = vld [vmem:[#allocation2 + $0xcf] sm:$0xff]
        %v4230 = vld [vmem:[#allocation2 + $0xd7] sm:$0xff]
        %v4231 = vld [vmem:[#allocation2 + $0xdf] sm:$0xff]
        %v4232 = vld [vmem:[#allocation2 + $0xe7] sm:$0xff]
        %v4233 = vld [vmem:[#allocation2 + $0xef] sm:$0xff]
        %v4234 = vld [vmem:[#allocation2 + $0xf7] sm:$0xff]
        %v4235 = vld [vmem:[#allocation2 + $0xff] sm:$0xff]
        %v4236 = vld [vmem:[#allocation2 + $0x107] sm:$0xff]
        %v4237 = vld [vmem:[#allocation2 + $0x10f] sm:$0xff]
        %v4238 = vsel %vm1053, %v4222, 0.0
        %v4239 = vsel %vm1054, %v4223, 0.0
        %v4240 = vsel %vm1055, %v4224, 0.0
        %v4241 = vsel %vm1056, %v4225, 0.0
        %v4242 = vsel %vm1057, %v4226, 0.0
        %v4243 = vsel %vm1058, %v4227, 0.0
        %v4244 = vsel %vm1059, %v4228, 0.0
        %v4245 = vsel %vm1060, %v4229, 0.0
        %v4246 = vsel %vm1061, %v4230, 0.0
        %v4247 = vsel %vm1062, %v4231, 0.0
        %v4248 = vsel %vm1063, %v4232, 0.0
        %v4249 = vsel %vm1064, %v4233, 0.0
        %v4250 = vsel %vm1065, %v4234, 0.0
        %v4251 = vsel %vm1066, %v4235, 0.0
        %v4252 = vsel %vm1067, %v4236, 0.0
        %v4253 = vsel %vm1068, %v4237, 0.0
        %v4254 = vld [vmem:[%s1822] sm:$0xff]
        %v4255 = vld [vmem:[%s1822 + $0x8] sm:$0xff]
        %v4256 = vld [vmem:[%s1822 + $0x10] sm:$0xff]
        %v4257 = vld [vmem:[%s1822 + $0x18] sm:$0xff]
        %v4259 = vsel %vm341, %v4238, 0
        %v4262 = vsel %vm341, %v4239, 0
        %v4265 = vsel %vm341, %v4240, 0
        %v4268 = vsel %vm341, %v4241, 0
        %v4271 = vsel %vm341, %v4242, 0
        %v4274 = vsel %vm341, %v4243, 0
        %v4277 = vsel %vm341, %v4244, 0
        %v4280 = vsel %vm341, %v4245, 0
        %v4283 = vsel %vm341, %v4246, 0
        %v4286 = vsel %vm341, %v4247, 0
        %v4289 = vsel %vm341, %v4248, 0
        %v4292 = vsel %vm341, %v4249, 0
        %v4295 = vsel %vm341, %v4250, 0
        %v4298 = vsel %vm341, %v4251, 0
        %v4301 = vsel %vm341, %v4252, 0
        %v4304 = vsel %vm341, %v4253, 0
        %4306 = vmatprep.subr.mxu0 0.0
        %4307 = vmatpush1.msra.mxu0 0.0
        %4308 = vmatprep.subr.mxu0 0.0
        %4309 = vmatpush1.msra.mxu0 0.0
        %4310 = vmatprep.subr.mxu0 0.0
        %4311 = vmatpush1.msra.mxu0 0.0
        %4312 = vmatprep.subr.mxu0 0.0
        %4313 = vmatpush1.msra.mxu0 0.0
        %4314 = vmatprep.subr.mxu0 0.0
        %4315 = vmatpush1.msra.mxu0 0.0
        %4316 = vmatprep.subr.mxu0 0.0
        %4317 = vmatpush1.msra.mxu0 0.0
        %4318 = vmatprep.subr.mxu0 0.0
        %4319 = vmatpush1.msra.mxu0 0.0
        %4320 = vmatprep.subr.mxu0 0.0
        %4321 = vmatpush1.msra.mxu0 0.0
        %4322 = vmatprep.subr.mxu0 0.0
        %4323 = vmatpush1.msra.mxu0 0.0
        %4324 = vmatprep.subr.mxu0 0.0
        %4325 = vmatpush1.msra.mxu0 0.0
        %4326 = vmatprep.subr.mxu0 0.0
        %4327 = vmatpush1.msra.mxu0 0.0
        %4328 = vmatprep.subr.mxu0 0.0
        %4329 = vmatpush1.msra.mxu0 0.0
        %4330 = vmatprep.subr.mxu0 0.0
        %4331 = vmatpush1.msra.mxu0 %v4257
        %4332 = vmatprep.subr.mxu0 0.0
        %4333 = vmatpush1.msra.mxu0 %v4256
        %4334 = vmatprep.subr.mxu0 0.0
        %4335 = vmatpush1.msra.mxu0 %v4255
        %4336 = vmatprep.subr.mxu0 0.0
        %4337 = vmatpush1.msra.mxu0 %v4254
        %4338 = vmatprep.subr.mxu0 0.0
        %4339 = vmatpush2.msra.mxu0 0.0
        %4340 = vmatprep.subr.mxu0 0.0
        %4341 = vmatpush2.msra.mxu0 0.0
        %4342 = vmatprep.subr.mxu0 0.0
        %4343 = vmatpush2.msra.mxu0 0.0
        %4344 = vmatprep.subr.mxu0 0.0
        %4345 = vmatpush2.msra.mxu0 0.0
        %4346 = vmatprep.subr.mxu0 0.0
        %4347 = vmatpush2.msra.mxu0 0.0
        %4348 = vmatprep.subr.mxu0 0.0
        %4349 = vmatpush2.msra.mxu0 0.0
        %4350 = vmatprep.subr.mxu0 0.0
        %4351 = vmatpush2.msra.mxu0 0.0
        %4352 = vmatprep.subr.mxu0 0.0
        %4353 = vmatpush2.msra.mxu0 0.0
        %4354 = vmatprep.subr.mxu0 0.0
        %4355 = vmatpush2.msra.mxu0 0.0
        %4356 = vmatprep.subr.mxu0 0.0
        %4357 = vmatpush2.msra.mxu0 0.0
        %4358 = vmatprep.subr.mxu0 0.0
        %4359 = vmatpush2.msra.mxu0 0.0
        %4360 = vmatprep.subr.mxu0 0.0
        %4361 = vmatpush2.msra.mxu0 0.0
        %4362 = vmatprep.subr.mxu0 0.0
        %4363 = vmatpush2.msra.mxu0 0.0
        %4364 = vmatprep.subr.mxu0 0.0
        %4365 = vmatpush2.msra.mxu0 0.0
        %4366 = vmatprep.subr.mxu0 0.0
        %4367 = vmatpush2.msra.mxu0 0.0
        %4368 = vmatprep.subr.mxu0 0.0
        %4369 = vmatpush2.msra.mxu0 0.0
        %4370 = vmatprep.mubr.f32.mxu0 0.0
        %4371 = vmatmul.mubr.f32.gmra.mxu0 %v4259
        %v4372 = vpop.f32.mrf.mxu0
        %v4373 = vadd.f32 0.0, %v4372
        %v4374 = vpop.f32.mrf.mxu0
        %4375 = vmatprep.mubr.f32.mxu0 0.0
        %4376 = vmatmul.mubr.f32.gmra.mxu0 %v4262
        %v4377 = vpop.f32.mrf.mxu0
        %v4378 = vadd.f32 0.0, %v4377
        %v4379 = vpop.f32.mrf.mxu0
        %4380 = vmatprep.mubr.f32.mxu0 0.0
        %4381 = vmatmul.mubr.f32.gmra.mxu0 %v4265
        %v4382 = vpop.f32.mrf.mxu0
        %v4383 = vadd.f32 0.0, %v4382
        %v4384 = vpop.f32.mrf.mxu0
        %4385 = vmatprep.mubr.f32.mxu0 0.0
        %4386 = vmatmul.mubr.f32.gmra.mxu0 %v4268
        %v4387 = vpop.f32.mrf.mxu0
        %v4388 = vadd.f32 0.0, %v4387
        %v4389 = vpop.f32.mrf.mxu0
        %4390 = vmatprep.mubr.f32.mxu0 0.0
        %4391 = vmatmul.mubr.f32.gmra.mxu0 %v4271
        %v4392 = vpop.f32.mrf.mxu0
        %v4393 = vadd.f32 0.0, %v4392
        %v4394 = vpop.f32.mrf.mxu0
        %4395 = vmatprep.mubr.f32.mxu0 0.0
        %4396 = vmatmul.mubr.f32.gmra.mxu0 %v4274
        %v4397 = vpop.f32.mrf.mxu0
        %v4398 = vadd.f32 0.0, %v4397
        %v4399 = vpop.f32.mrf.mxu0
        %4400 = vmatprep.mubr.f32.mxu0 0.0
        %4401 = vmatmul.mubr.f32.gmra.mxu0 %v4277
        %v4402 = vpop.f32.mrf.mxu0
        %v4403 = vadd.f32 0.0, %v4402
        %v4404 = vpop.f32.mrf.mxu0
        %4405 = vmatprep.mubr.f32.mxu0 0.0
        %4406 = vmatmul.mubr.f32.gmra.mxu0 %v4280
        %v4407 = vpop.f32.mrf.mxu0
        %v4408 = vadd.f32 0.0, %v4407
        %v4409 = vpop.f32.mrf.mxu0
        %4410 = vmatprep.mubr.f32.mxu0 0.0
        %4411 = vmatmul.mubr.f32.gmra.mxu0 %v4283
        %v4412 = vpop.f32.mrf.mxu0
        %v4413 = vadd.f32 0.0, %v4412
        %v4414 = vpop.f32.mrf.mxu0
        %4415 = vmatprep.mubr.f32.mxu0 0.0
        %4416 = vmatmul.mubr.f32.gmra.mxu0 %v4286
        %v4417 = vpop.f32.mrf.mxu0
        %v4418 = vadd.f32 0.0, %v4417
        %v4419 = vpop.f32.mrf.mxu0
        %4420 = vmatprep.mubr.f32.mxu0 0.0
        %4421 = vmatmul.mubr.f32.gmra.mxu0 %v4289
        %v4422 = vpop.f32.mrf.mxu0
        %v4423 = vadd.f32 0.0, %v4422
        %v4424 = vpop.f32.mrf.mxu0
        %4425 = vmatprep.mubr.f32.mxu0 0.0
        %4426 = vmatmul.mubr.f32.gmra.mxu0 %v4292
        %v4427 = vpop.f32.mrf.mxu0
        %v4428 = vadd.f32 0.0, %v4427
        %v4429 = vpop.f32.mrf.mxu0
        %4430 = vmatprep.mubr.f32.mxu0 0.0
        %4431 = vmatmul.mubr.f32.gmra.mxu0 %v4295
        %v4432 = vpop.f32.mrf.mxu0
        %v4433 = vadd.f32 0.0, %v4432
        %v4434 = vpop.f32.mrf.mxu0
        %4435 = vmatprep.mubr.f32.mxu0 0.0
        %4436 = vmatmul.mubr.f32.gmra.mxu0 %v4298
        %v4437 = vpop.f32.mrf.mxu0
        %v4438 = vadd.f32 0.0, %v4437
        %v4439 = vpop.f32.mrf.mxu0
        %4440 = vmatprep.mubr.f32.mxu0 0.0
        %4441 = vmatmul.mubr.f32.gmra.mxu0 %v4301
        %v4442 = vpop.f32.mrf.mxu0
        %v4443 = vadd.f32 0.0, %v4442
        %v4444 = vpop.f32.mrf.mxu0
        %4445 = vmatprep.mubr.f32.mxu0 0.0
        %4446 = vmatmul.mubr.f32.gmra.mxu0 %v4304
        %v4447 = vpop.f32.mrf.mxu0
        %v4448 = vadd.f32 0.0, %v4447
        %v4449 = vpop.f32.mrf.mxu0
        %4450 = vdwg.mxu0
        %v4451 = vadd.f32 %v4206, %v4373
        %v4452 = vadd.f32 %v4207, %v4378
        %v4453 = vadd.f32 %v4208, %v4383
        %v4454 = vadd.f32 %v4209, %v4388
        %v4455 = vadd.f32 %v4210, %v4393
        %v4456 = vadd.f32 %v4211, %v4398
        %v4457 = vadd.f32 %v4212, %v4403
        %v4458 = vadd.f32 %v4213, %v4408
        %v4459 = vadd.f32 %v4214, %v4413
        %v4460 = vadd.f32 %v4215, %v4418
        %v4461 = vadd.f32 %v4216, %v4423
        %v4462 = vadd.f32 %v4217, %v4428
        %v4463 = vadd.f32 %v4218, %v4433
        %v4464 = vadd.f32 %v4219, %v4438
        %v4465 = vadd.f32 %v4220, %v4443
        %v4466 = vadd.f32 %v4221, %v4448
        %v4467 = vld [vmem:[#allocation2 + $0x98] sm:$0xff]
        %v4468 = vld [vmem:[#allocation2 + $0xa0] sm:$0xff]
        %v4469 = vld [vmem:[#allocation2 + $0xa8] sm:$0xff]
        %v4470 = vld [vmem:[#allocation2 + $0xb0] sm:$0xff]
        %v4471 = vld [vmem:[#allocation2 + $0xb8] sm:$0xff]
        %v4472 = vld [vmem:[#allocation2 + $0xc0] sm:$0xff]
        %v4473 = vld [vmem:[#allocation2 + $0xc8] sm:$0xff]
        %v4474 = vld [vmem:[#allocation2 + $0xd0] sm:$0xff]
        %v4475 = vld [vmem:[#allocation2 + $0xd8] sm:$0xff]
        %v4476 = vld [vmem:[#allocation2 + $0xe0] sm:$0xff]
        %v4477 = vld [vmem:[#allocation2 + $0xe8] sm:$0xff]
        %v4478 = vld [vmem:[#allocation2 + $0xf0] sm:$0xff]
        %v4479 = vld [vmem:[#allocation2 + $0xf8] sm:$0xff]
        %v4480 = vld [vmem:[#allocation2 + $0x100] sm:$0xff]
        %v4481 = vld [vmem:[#allocation2 + $0x108] sm:$0xff]
        %v4482 = vld [vmem:[#allocation2 + $0x110] sm:$0xff]
        %v4483 = vld [vmem:[%s2052] sm:$0xff]
        %v4484 = vld [vmem:[%s2052 + $0x8] sm:$0xff]
        %v4485 = vld [vmem:[%s2052 + $0x10] sm:$0xff]
        %v4486 = vld [vmem:[%s2052 + $0x18] sm:$0xff]
        %v4488 = vsel %vm341, %v4467, 0
        %v4491 = vsel %vm341, %v4468, 0
        %v4494 = vsel %vm341, %v4469, 0
        %v4497 = vsel %vm341, %v4470, 0
        %v4500 = vsel %vm341, %v4471, 0
        %v4503 = vsel %vm341, %v4472, 0
        %v4506 = vsel %vm341, %v4473, 0
        %v4509 = vsel %vm341, %v4474, 0
        %v4512 = vsel %vm341, %v4475, 0
        %v4515 = vsel %vm341, %v4476, 0
        %v4518 = vsel %vm341, %v4477, 0
        %v4521 = vsel %vm341, %v4478, 0
        %v4524 = vsel %vm341, %v4479, 0
        %v4527 = vsel %vm341, %v4480, 0
        %v4530 = vsel %vm341, %v4481, 0
        %v4533 = vsel %vm341, %v4482, 0
        %4535 = vmatprep.subr.mxu0 0.0
        %4536 = vmatpush1.msra.mxu0 0.0
        %4537 = vmatprep.subr.mxu0 0.0
        %4538 = vmatpush1.msra.mxu0 0.0
        %4539 = vmatprep.subr.mxu0 0.0
        %4540 = vmatpush1.msra.mxu0 0.0
        %4541 = vmatprep.subr.mxu0 0.0
        %4542 = vmatpush1.msra.mxu0 0.0
        %4543 = vmatprep.subr.mxu0 0.0
        %4544 = vmatpush1.msra.mxu0 0.0
        %4545 = vmatprep.subr.mxu0 0.0
        %4546 = vmatpush1.msra.mxu0 0.0
        %4547 = vmatprep.subr.mxu0 0.0
        %4548 = vmatpush1.msra.mxu0 0.0
        %4549 = vmatprep.subr.mxu0 0.0
        %4550 = vmatpush1.msra.mxu0 0.0
        %4551 = vmatprep.subr.mxu0 0.0
        %4552 = vmatpush1.msra.mxu0 0.0
        %4553 = vmatprep.subr.mxu0 0.0
        %4554 = vmatpush1.msra.mxu0 0.0
        %4555 = vmatprep.subr.mxu0 0.0
        %4556 = vmatpush1.msra.mxu0 0.0
        %4557 = vmatprep.subr.mxu0 0.0
        %4558 = vmatpush1.msra.mxu0 0.0
        %4559 = vmatprep.subr.mxu0 0.0
        %4560 = vmatpush1.msra.mxu0 %v4486
        %4561 = vmatprep.subr.mxu0 0.0
        %4562 = vmatpush1.msra.mxu0 %v4485
        %4563 = vmatprep.subr.mxu0 0.0
        %4564 = vmatpush1.msra.mxu0 %v4484
        %4565 = vmatprep.subr.mxu0 0.0
        %4566 = vmatpush1.msra.mxu0 %v4483
        %4567 = vmatprep.subr.mxu0 0.0
        %4568 = vmatpush2.msra.mxu0 0.0
        %4569 = vmatprep.subr.mxu0 0.0
        %4570 = vmatpush2.msra.mxu0 0.0
        %4571 = vmatprep.subr.mxu0 0.0
        %4572 = vmatpush2.msra.mxu0 0.0
        %4573 = vmatprep.subr.mxu0 0.0
        %4574 = vmatpush2.msra.mxu0 0.0
        %4575 = vmatprep.subr.mxu0 0.0
        %4576 = vmatpush2.msra.mxu0 0.0
        %4577 = vmatprep.subr.mxu0 0.0
        %4578 = vmatpush2.msra.mxu0 0.0
        %4579 = vmatprep.subr.mxu0 0.0
        %4580 = vmatpush2.msra.mxu0 0.0
        %4581 = vmatprep.subr.mxu0 0.0
        %4582 = vmatpush2.msra.mxu0 0.0
        %4583 = vmatprep.subr.mxu0 0.0
        %4584 = vmatpush2.msra.mxu0 0.0
        %4585 = vmatprep.subr.mxu0 0.0
        %4586 = vmatpush2.msra.mxu0 0.0
        %4587 = vmatprep.subr.mxu0 0.0
        %4588 = vmatpush2.msra.mxu0 0.0
        %4589 = vmatprep.subr.mxu0 0.0
        %4590 = vmatpush2.msra.mxu0 0.0
        %4591 = vmatprep.subr.mxu0 0.0
        %4592 = vmatpush2.msra.mxu0 0.0
        %4593 = vmatprep.subr.mxu0 0.0
        %4594 = vmatpush2.msra.mxu0 0.0
        %4595 = vmatprep.subr.mxu0 0.0
        %4596 = vmatpush2.msra.mxu0 0.0
        %4597 = vmatprep.subr.mxu0 0.0
        %4598 = vmatpush2.msra.mxu0 0.0
        %4599 = vmatprep.mubr.f32.mxu0 0.0
        %4600 = vmatmul.mubr.f32.gmra.mxu0 %v4488
        %v4601 = vpop.f32.mrf.mxu0
        %v4602 = vadd.f32 0.0, %v4601
        %v4603 = vpop.f32.mrf.mxu0
        %4604 = vmatprep.mubr.f32.mxu0 0.0
        %4605 = vmatmul.mubr.f32.gmra.mxu0 %v4491
        %v4606 = vpop.f32.mrf.mxu0
        %v4607 = vadd.f32 0.0, %v4606
        %v4608 = vpop.f32.mrf.mxu0
        %4609 = vmatprep.mubr.f32.mxu0 0.0
        %4610 = vmatmul.mubr.f32.gmra.mxu0 %v4494
        %v4611 = vpop.f32.mrf.mxu0
        %v4612 = vadd.f32 0.0, %v4611
        %v4613 = vpop.f32.mrf.mxu0
        %4614 = vmatprep.mubr.f32.mxu0 0.0
        %4615 = vmatmul.mubr.f32.gmra.mxu0 %v4497
        %v4616 = vpop.f32.mrf.mxu0
        %v4617 = vadd.f32 0.0, %v4616
        %v4618 = vpop.f32.mrf.mxu0
        %4619 = vmatprep.mubr.f32.mxu0 0.0
        %4620 = vmatmul.mubr.f32.gmra.mxu0 %v4500
        %v4621 = vpop.f32.mrf.mxu0
        %v4622 = vadd.f32 0.0, %v4621
        %v4623 = vpop.f32.mrf.mxu0
        %4624 = vmatprep.mubr.f32.mxu0 0.0
        %4625 = vmatmul.mubr.f32.gmra.mxu0 %v4503
        %v4626 = vpop.f32.mrf.mxu0
        %v4627 = vadd.f32 0.0, %v4626
        %v4628 = vpop.f32.mrf.mxu0
        %4629 = vmatprep.mubr.f32.mxu0 0.0
        %4630 = vmatmul.mubr.f32.gmra.mxu0 %v4506
        %v4631 = vpop.f32.mrf.mxu0
        %v4632 = vadd.f32 0.0, %v4631
        %v4633 = vpop.f32.mrf.mxu0
        %4634 = vmatprep.mubr.f32.mxu0 0.0
        %4635 = vmatmul.mubr.f32.gmra.mxu0 %v4509
        %v4636 = vpop.f32.mrf.mxu0
        %v4637 = vadd.f32 0.0, %v4636
        %v4638 = vpop.f32.mrf.mxu0
        %4639 = vmatprep.mubr.f32.mxu0 0.0
        %4640 = vmatmul.mubr.f32.gmra.mxu0 %v4512
        %v4641 = vpop.f32.mrf.mxu0
        %v4642 = vadd.f32 0.0, %v4641
        %v4643 = vpop.f32.mrf.mxu0
        %4644 = vmatprep.mubr.f32.mxu0 0.0
        %4645 = vmatmul.mubr.f32.gmra.mxu0 %v4515
        %v4646 = vpop.f32.mrf.mxu0
        %v4647 = vadd.f32 0.0, %v4646
        %v4648 = vpop.f32.mrf.mxu0
        %4649 = vmatprep.mubr.f32.mxu0 0.0
        %4650 = vmatmul.mubr.f32.gmra.mxu0 %v4518
        %v4651 = vpop.f32.mrf.mxu0
        %v4652 = vadd.f32 0.0, %v4651
        %v4653 = vpop.f32.mrf.mxu0
        %4654 = vmatprep.mubr.f32.mxu0 0.0
        %4655 = vmatmul.mubr.f32.gmra.mxu0 %v4521
        %v4656 = vpop.f32.mrf.mxu0
        %v4657 = vadd.f32 0.0, %v4656
        %v4658 = vpop.f32.mrf.mxu0
        %4659 = vmatprep.mubr.f32.mxu0 0.0
        %4660 = vmatmul.mubr.f32.gmra.mxu0 %v4524
        %v4661 = vpop.f32.mrf.mxu0
        %v4662 = vadd.f32 0.0, %v4661
        %v4663 = vpop.f32.mrf.mxu0
        %4664 = vmatprep.mubr.f32.mxu0 0.0
        %4665 = vmatmul.mubr.f32.gmra.mxu0 %v4527
        %v4666 = vpop.f32.mrf.mxu0
        %v4667 = vadd.f32 0.0, %v4666
        %v4668 = vpop.f32.mrf.mxu0
        %4669 = vmatprep.mubr.f32.mxu0 0.0
        %4670 = vmatmul.mubr.f32.gmra.mxu0 %v4530
        %v4671 = vpop.f32.mrf.mxu0
        %v4672 = vadd.f32 0.0, %v4671
        %v4673 = vpop.f32.mrf.mxu0
        %4674 = vmatprep.mubr.f32.mxu0 0.0
        %4675 = vmatmul.mubr.f32.gmra.mxu0 %v4533
        %v4676 = vpop.f32.mrf.mxu0
        %v4677 = vadd.f32 0.0, %v4676
        %v4678 = vpop.f32.mrf.mxu0
        %4679 = vdwg.mxu0
        %v4680 = vadd.f32 %v4451, %v4602
        %v4681 = vadd.f32 %v4452, %v4607
        %v4682 = vadd.f32 %v4453, %v4612
        %v4683 = vadd.f32 %v4454, %v4617
        %v4684 = vadd.f32 %v4455, %v4622
        %v4685 = vadd.f32 %v4456, %v4627
        %v4686 = vadd.f32 %v4457, %v4632
        %v4687 = vadd.f32 %v4458, %v4637
        %v4688 = vadd.f32 %v4459, %v4642
        %v4689 = vadd.f32 %v4460, %v4647
        %v4690 = vadd.f32 %v4461, %v4652
        %v4691 = vadd.f32 %v4462, %v4657
        %v4692 = vadd.f32 %v4463, %v4662
        %v4693 = vadd.f32 %v4464, %v4667
        %v4694 = vadd.f32 %v4465, %v4672
        %v4695 = vadd.f32 %v4466, %v4677
        %v4696 = vld [vmem:[#allocation2 + $0x99] sm:$0xff]
        %v4697 = vld [vmem:[#allocation2 + $0xa1] sm:$0xff]
        %v4698 = vld [vmem:[#allocation2 + $0xa9] sm:$0xff]
        %v4699 = vld [vmem:[#allocation2 + $0xb1] sm:$0xff]
        %v4700 = vld [vmem:[#allocation2 + $0xb9] sm:$0xff]
        %v4701 = vld [vmem:[#allocation2 + $0xc1] sm:$0xff]
        %v4702 = vld [vmem:[#allocation2 + $0xc9] sm:$0xff]
        %v4703 = vld [vmem:[#allocation2 + $0xd1] sm:$0xff]
        %v4704 = vld [vmem:[#allocation2 + $0xd9] sm:$0xff]
        %v4705 = vld [vmem:[#allocation2 + $0xe1] sm:$0xff]
        %v4706 = vld [vmem:[#allocation2 + $0xe9] sm:$0xff]
        %v4707 = vld [vmem:[#allocation2 + $0xf1] sm:$0xff]
        %v4708 = vld [vmem:[#allocation2 + $0xf9] sm:$0xff]
        %v4709 = vld [vmem:[#allocation2 + $0x101] sm:$0xff]
        %v4710 = vld [vmem:[#allocation2 + $0x109] sm:$0xff]
        %v4711 = vld [vmem:[#allocation2 + $0x111] sm:$0xff]
        %v4712 = vsel %vm1544, %v4696, 0.0
        %v4713 = vsel %vm1545, %v4697, 0.0
        %v4714 = vsel %vm1546, %v4698, 0.0
        %v4715 = vsel %vm1547, %v4699, 0.0
        %v4716 = vsel %vm1548, %v4700, 0.0
        %v4717 = vsel %vm1549, %v4701, 0.0
        %v4718 = vsel %vm1550, %v4702, 0.0
        %v4719 = vsel %vm1551, %v4703, 0.0
        %v4720 = vsel %vm1552, %v4704, 0.0
        %v4721 = vsel %vm1553, %v4705, 0.0
        %v4722 = vsel %vm1554, %v4706, 0.0
        %v4723 = vsel %vm1555, %v4707, 0.0
        %v4724 = vsel %vm1556, %v4708, 0.0
        %v4725 = vsel %vm1557, %v4709, 0.0
        %v4726 = vsel %vm1558, %v4710, 0.0
        %v4727 = vsel %vm1559, %v4711, 0.0
        %v4728 = vld [vmem:[%s2298] sm:$0xff]
        %v4729 = vld [vmem:[%s2298 + $0x8] sm:$0xff]
        %v4730 = vld [vmem:[%s2298 + $0x10] sm:$0xff]
        %v4731 = vld [vmem:[%s2298 + $0x18] sm:$0xff]
        %v4733 = vsel %vm341, %v4712, 0
        %v4736 = vsel %vm341, %v4713, 0
        %v4739 = vsel %vm341, %v4714, 0
        %v4742 = vsel %vm341, %v4715, 0
        %v4745 = vsel %vm341, %v4716, 0
        %v4748 = vsel %vm341, %v4717, 0
        %v4751 = vsel %vm341, %v4718, 0
        %v4754 = vsel %vm341, %v4719, 0
        %v4757 = vsel %vm341, %v4720, 0
        %v4760 = vsel %vm341, %v4721, 0
        %v4763 = vsel %vm341, %v4722, 0
        %v4766 = vsel %vm341, %v4723, 0
        %v4769 = vsel %vm341, %v4724, 0
        %v4772 = vsel %vm341, %v4725, 0
        %v4775 = vsel %vm341, %v4726, 0
        %v4778 = vsel %vm341, %v4727, 0
        %4780 = vmatprep.subr.mxu0 0.0
        %4781 = vmatpush1.msra.mxu0 0.0
        %4782 = vmatprep.subr.mxu0 0.0
        %4783 = vmatpush1.msra.mxu0 0.0
        %4784 = vmatprep.subr.mxu0 0.0
        %4785 = vmatpush1.msra.mxu0 0.0
        %4786 = vmatprep.subr.mxu0 0.0
        %4787 = vmatpush1.msra.mxu0 0.0
        %4788 = vmatprep.subr.mxu0 0.0
        %4789 = vmatpush1.msra.mxu0 0.0
        %4790 = vmatprep.subr.mxu0 0.0
        %4791 = vmatpush1.msra.mxu0 0.0
        %4792 = vmatprep.subr.mxu0 0.0
        %4793 = vmatpush1.msra.mxu0 0.0
        %4794 = vmatprep.subr.mxu0 0.0
        %4795 = vmatpush1.msra.mxu0 0.0
        %4796 = vmatprep.subr.mxu0 0.0
        %4797 = vmatpush1.msra.mxu0 0.0
        %4798 = vmatprep.subr.mxu0 0.0
        %4799 = vmatpush1.msra.mxu0 0.0
        %4800 = vmatprep.subr.mxu0 0.0
        %4801 = vmatpush1.msra.mxu0 0.0
        %4802 = vmatprep.subr.mxu0 0.0
        %4803 = vmatpush1.msra.mxu0 0.0
        %4804 = vmatprep.subr.mxu0 0.0
        %4805 = vmatpush1.msra.mxu0 %v4731
        %4806 = vmatprep.subr.mxu0 0.0
        %4807 = vmatpush1.msra.mxu0 %v4730
        %4808 = vmatprep.subr.mxu0 0.0
        %4809 = vmatpush1.msra.mxu0 %v4729
        %4810 = vmatprep.subr.mxu0 0.0
        %4811 = vmatpush1.msra.mxu0 %v4728
        %4812 = vmatprep.subr.mxu0 0.0
        %4813 = vmatpush2.msra.mxu0 0.0
        %4814 = vmatprep.subr.mxu0 0.0
        %4815 = vmatpush2.msra.mxu0 0.0
        %4816 = vmatprep.subr.mxu0 0.0
        %4817 = vmatpush2.msra.mxu0 0.0
        %4818 = vmatprep.subr.mxu0 0.0
        %4819 = vmatpush2.msra.mxu0 0.0
        %4820 = vmatprep.subr.mxu0 0.0
        %4821 = vmatpush2.msra.mxu0 0.0
        %4822 = vmatprep.subr.mxu0 0.0
        %4823 = vmatpush2.msra.mxu0 0.0
        %4824 = vmatprep.subr.mxu0 0.0
        %4825 = vmatpush2.msra.mxu0 0.0
        %4826 = vmatprep.subr.mxu0 0.0
        %4827 = vmatpush2.msra.mxu0 0.0
        %4828 = vmatprep.subr.mxu0 0.0
        %4829 = vmatpush2.msra.mxu0 0.0
        %4830 = vmatprep.subr.mxu0 0.0
        %4831 = vmatpush2.msra.mxu0 0.0
        %4832 = vmatprep.subr.mxu0 0.0
        %4833 = vmatpush2.msra.mxu0 0.0
        %4834 = vmatprep.subr.mxu0 0.0
        %4835 = vmatpush2.msra.mxu0 0.0
        %4836 = vmatprep.subr.mxu0 0.0
        %4837 = vmatpush2.msra.mxu0 0.0
        %4838 = vmatprep.subr.mxu0 0.0
        %4839 = vmatpush2.msra.mxu0 0.0
        %4840 = vmatprep.subr.mxu0 0.0
        %4841 = vmatpush2.msra.mxu0 0.0
        %4842 = vmatprep.subr.mxu0 0.0
        %4843 = vmatpush2.msra.mxu0 0.0
        %4844 = vmatprep.mubr.f32.mxu0 0.0
        %4845 = vmatmul.mubr.f32.gmra.mxu0 %v4733
        %v4846 = vpop.f32.mrf.mxu0
        %v4847 = vadd.f32 0.0, %v4846
        %v4848 = vpop.f32.mrf.mxu0
        %4849 = vmatprep.mubr.f32.mxu0 0.0
        %4850 = vmatmul.mubr.f32.gmra.mxu0 %v4736
        %v4851 = vpop.f32.mrf.mxu0
        %v4852 = vadd.f32 0.0, %v4851
        %v4853 = vpop.f32.mrf.mxu0
        %4854 = vmatprep.mubr.f32.mxu0 0.0
        %4855 = vmatmul.mubr.f32.gmra.mxu0 %v4739
        %v4856 = vpop.f32.mrf.mxu0
        %v4857 = vadd.f32 0.0, %v4856
        %v4858 = vpop.f32.mrf.mxu0
        %4859 = vmatprep.mubr.f32.mxu0 0.0
        %4860 = vmatmul.mubr.f32.gmra.mxu0 %v4742
        %v4861 = vpop.f32.mrf.mxu0
        %v4862 = vadd.f32 0.0, %v4861
        %v4863 = vpop.f32.mrf.mxu0
        %4864 = vmatprep.mubr.f32.mxu0 0.0
        %4865 = vmatmul.mubr.f32.gmra.mxu0 %v4745
        %v4866 = vpop.f32.mrf.mxu0
        %v4867 = vadd.f32 0.0, %v4866
        %v4868 = vpop.f32.mrf.mxu0
        %4869 = vmatprep.mubr.f32.mxu0 0.0
        %4870 = vmatmul.mubr.f32.gmra.mxu0 %v4748
        %v4871 = vpop.f32.mrf.mxu0
        %v4872 = vadd.f32 0.0, %v4871
        %v4873 = vpop.f32.mrf.mxu0
        %4874 = vmatprep.mubr.f32.mxu0 0.0
        %4875 = vmatmul.mubr.f32.gmra.mxu0 %v4751
        %v4876 = vpop.f32.mrf.mxu0
        %v4877 = vadd.f32 0.0, %v4876
        %v4878 = vpop.f32.mrf.mxu0
        %4879 = vmatprep.mubr.f32.mxu0 0.0
        %4880 = vmatmul.mubr.f32.gmra.mxu0 %v4754
        %v4881 = vpop.f32.mrf.mxu0
        %v4882 = vadd.f32 0.0, %v4881
        %v4883 = vpop.f32.mrf.mxu0
        %4884 = vmatprep.mubr.f32.mxu0 0.0
        %4885 = vmatmul.mubr.f32.gmra.mxu0 %v4757
        %v4886 = vpop.f32.mrf.mxu0
        %v4887 = vadd.f32 0.0, %v4886
        %v4888 = vpop.f32.mrf.mxu0
        %4889 = vmatprep.mubr.f32.mxu0 0.0
        %4890 = vmatmul.mubr.f32.gmra.mxu0 %v4760
        %v4891 = vpop.f32.mrf.mxu0
        %v4892 = vadd.f32 0.0, %v4891
        %v4893 = vpop.f32.mrf.mxu0
        %4894 = vmatprep.mubr.f32.mxu0 0.0
        %4895 = vmatmul.mubr.f32.gmra.mxu0 %v4763
        %v4896 = vpop.f32.mrf.mxu0
        %v4897 = vadd.f32 0.0, %v4896
        %v4898 = vpop.f32.mrf.mxu0
        %4899 = vmatprep.mubr.f32.mxu0 0.0
        %4900 = vmatmul.mubr.f32.gmra.mxu0 %v4766
        %v4901 = vpop.f32.mrf.mxu0
        %v4902 = vadd.f32 0.0, %v4901
        %v4903 = vpop.f32.mrf.mxu0
        %4904 = vmatprep.mubr.f32.mxu0 0.0
        %4905 = vmatmul.mubr.f32.gmra.mxu0 %v4769
        %v4906 = vpop.f32.mrf.mxu0
        %v4907 = vadd.f32 0.0, %v4906
        %v4908 = vpop.f32.mrf.mxu0
        %4909 = vmatprep.mubr.f32.mxu0 0.0
        %4910 = vmatmul.mubr.f32.gmra.mxu0 %v4772
        %v4911 = vpop.f32.mrf.mxu0
        %v4912 = vadd.f32 0.0, %v4911
        %v4913 = vpop.f32.mrf.mxu0
        %4914 = vmatprep.mubr.f32.mxu0 0.0
        %4915 = vmatmul.mubr.f32.gmra.mxu0 %v4775
        %v4916 = vpop.f32.mrf.mxu0
        %v4917 = vadd.f32 0.0, %v4916
        %v4918 = vpop.f32.mrf.mxu0
        %4919 = vmatprep.mubr.f32.mxu0 0.0
        %4920 = vmatmul.mubr.f32.gmra.mxu0 %v4778
        %v4921 = vpop.f32.mrf.mxu0
        %v4922 = vadd.f32 0.0, %v4921
        %v4923 = vpop.f32.mrf.mxu0
        %4924 = vdwg.mxu0
        %v4925 = vadd.f32 %v4680, %v4847
        %v4926 = vadd.f32 %v4681, %v4852
        %v4927 = vadd.f32 %v4682, %v4857
        %v4928 = vadd.f32 %v4683, %v4862
        %v4929 = vadd.f32 %v4684, %v4867
        %v4930 = vadd.f32 %v4685, %v4872
        %v4931 = vadd.f32 %v4686, %v4877
        %v4932 = vadd.f32 %v4687, %v4882
        %v4933 = vadd.f32 %v4688, %v4887
        %v4934 = vadd.f32 %v4689, %v4892
        %v4935 = vadd.f32 %v4690, %v4897
        %v4936 = vadd.f32 %v4691, %v4902
        %v4937 = vadd.f32 %v4692, %v4907
        %v4938 = vadd.f32 %v4693, %v4912
        %v4939 = vadd.f32 %v4694, %v4917
        %v4940 = vadd.f32 %v4695, %v4922
        %v4941 = vld [vmem:[#allocation2 + $0xa7] sm:$0xff]
        %v4942 = vld [vmem:[#allocation2 + $0xaf] sm:$0xff]
        %v4943 = vld [vmem:[#allocation2 + $0xb7] sm:$0xff]
        %v4944 = vld [vmem:[#allocation2 + $0xbf] sm:$0xff]
        %v4945 = vld [vmem:[#allocation2 + $0xc7] sm:$0xff]
        %v4946 = vld [vmem:[#allocation2 + $0xcf] sm:$0xff]
        %v4947 = vld [vmem:[#allocation2 + $0xd7] sm:$0xff]
        %v4948 = vld [vmem:[#allocation2 + $0xdf] sm:$0xff]
        %v4949 = vld [vmem:[#allocation2 + $0xe7] sm:$0xff]
        %v4950 = vld [vmem:[#allocation2 + $0xef] sm:$0xff]
        %v4951 = vld [vmem:[#allocation2 + $0xf7] sm:$0xff]
        %v4952 = vld [vmem:[#allocation2 + $0xff] sm:$0xff]
        %v4953 = vld [vmem:[#allocation2 + $0x107] sm:$0xff]
        %v4954 = vld [vmem:[#allocation2 + $0x10f] sm:$0xff]
        %v4955 = vld [vmem:[#allocation2 + $0x117] sm:$0xff]
        %v4956 = vld [vmem:[#allocation2 + $0x11f] sm:$0xff]
        %v4957 = vsel %vm1053, %v4941, 0.0
        %v4958 = vsel %vm1054, %v4942, 0.0
        %v4959 = vsel %vm1055, %v4943, 0.0
        %v4960 = vsel %vm1056, %v4944, 0.0
        %v4961 = vsel %vm1057, %v4945, 0.0
        %v4962 = vsel %vm1058, %v4946, 0.0
        %v4963 = vsel %vm1059, %v4947, 0.0
        %v4964 = vsel %vm1060, %v4948, 0.0
        %v4965 = vsel %vm1061, %v4949, 0.0
        %v4966 = vsel %vm1062, %v4950, 0.0
        %v4967 = vsel %vm1063, %v4951, 0.0
        %v4968 = vsel %vm1064, %v4952, 0.0
        %v4969 = vsel %vm1065, %v4953, 0.0
        %v4970 = vsel %vm1066, %v4954, 0.0
        %v4971 = vsel %vm1067, %v4955, 0.0
        %v4972 = vsel %vm1068, %v4956, 0.0
        %v4973 = vld [vmem:[%s2544] sm:$0xff]
        %v4974 = vld [vmem:[%s2544 + $0x8] sm:$0xff]
        %v4975 = vld [vmem:[%s2544 + $0x10] sm:$0xff]
        %v4976 = vld [vmem:[%s2544 + $0x18] sm:$0xff]
        %v4978 = vsel %vm341, %v4957, 0
        %v4981 = vsel %vm341, %v4958, 0
        %v4984 = vsel %vm341, %v4959, 0
        %v4987 = vsel %vm341, %v4960, 0
        %v4990 = vsel %vm341, %v4961, 0
        %v4993 = vsel %vm341, %v4962, 0
        %v4996 = vsel %vm341, %v4963, 0
        %v4999 = vsel %vm341, %v4964, 0
        %v5002 = vsel %vm341, %v4965, 0
        %v5005 = vsel %vm341, %v4966, 0
        %v5008 = vsel %vm341, %v4967, 0
        %v5011 = vsel %vm341, %v4968, 0
        %v5014 = vsel %vm341, %v4969, 0
        %v5017 = vsel %vm341, %v4970, 0
        %v5020 = vsel %vm341, %v4971, 0
        %v5023 = vsel %vm341, %v4972, 0
        %5025 = vmatprep.subr.mxu0 0.0
        %5026 = vmatpush1.msra.mxu0 0.0
        %5027 = vmatprep.subr.mxu0 0.0
        %5028 = vmatpush1.msra.mxu0 0.0
        %5029 = vmatprep.subr.mxu0 0.0
        %5030 = vmatpush1.msra.mxu0 0.0
        %5031 = vmatprep.subr.mxu0 0.0
        %5032 = vmatpush1.msra.mxu0 0.0
        %5033 = vmatprep.subr.mxu0 0.0
        %5034 = vmatpush1.msra.mxu0 0.0
        %5035 = vmatprep.subr.mxu0 0.0
        %5036 = vmatpush1.msra.mxu0 0.0
        %5037 = vmatprep.subr.mxu0 0.0
        %5038 = vmatpush1.msra.mxu0 0.0
        %5039 = vmatprep.subr.mxu0 0.0
        %5040 = vmatpush1.msra.mxu0 0.0
        %5041 = vmatprep.subr.mxu0 0.0
        %5042 = vmatpush1.msra.mxu0 0.0
        %5043 = vmatprep.subr.mxu0 0.0
        %5044 = vmatpush1.msra.mxu0 0.0
        %5045 = vmatprep.subr.mxu0 0.0
        %5046 = vmatpush1.msra.mxu0 0.0
        %5047 = vmatprep.subr.mxu0 0.0
        %5048 = vmatpush1.msra.mxu0 0.0
        %5049 = vmatprep.subr.mxu0 0.0
        %5050 = vmatpush1.msra.mxu0 %v4976
        %5051 = vmatprep.subr.mxu0 0.0
        %5052 = vmatpush1.msra.mxu0 %v4975
        %5053 = vmatprep.subr.mxu0 0.0
        %5054 = vmatpush1.msra.mxu0 %v4974
        %5055 = vmatprep.subr.mxu0 0.0
        %5056 = vmatpush1.msra.mxu0 %v4973
        %5057 = vmatprep.subr.mxu0 0.0
        %5058 = vmatpush2.msra.mxu0 0.0
        %5059 = vmatprep.subr.mxu0 0.0
        %5060 = vmatpush2.msra.mxu0 0.0
        %5061 = vmatprep.subr.mxu0 0.0
        %5062 = vmatpush2.msra.mxu0 0.0
        %5063 = vmatprep.subr.mxu0 0.0
        %5064 = vmatpush2.msra.mxu0 0.0
        %5065 = vmatprep.subr.mxu0 0.0
        %5066 = vmatpush2.msra.mxu0 0.0
        %5067 = vmatprep.subr.mxu0 0.0
        %5068 = vmatpush2.msra.mxu0 0.0
        %5069 = vmatprep.subr.mxu0 0.0
        %5070 = vmatpush2.msra.mxu0 0.0
        %5071 = vmatprep.subr.mxu0 0.0
        %5072 = vmatpush2.msra.mxu0 0.0
        %5073 = vmatprep.subr.mxu0 0.0
        %5074 = vmatpush2.msra.mxu0 0.0
        %5075 = vmatprep.subr.mxu0 0.0
        %5076 = vmatpush2.msra.mxu0 0.0
        %5077 = vmatprep.subr.mxu0 0.0
        %5078 = vmatpush2.msra.mxu0 0.0
        %5079 = vmatprep.subr.mxu0 0.0
        %5080 = vmatpush2.msra.mxu0 0.0
        %5081 = vmatprep.subr.mxu0 0.0
        %5082 = vmatpush2.msra.mxu0 0.0
        %5083 = vmatprep.subr.mxu0 0.0
        %5084 = vmatpush2.msra.mxu0 0.0
        %5085 = vmatprep.subr.mxu0 0.0
        %5086 = vmatpush2.msra.mxu0 0.0
        %5087 = vmatprep.subr.mxu0 0.0
        %5088 = vmatpush2.msra.mxu0 0.0
        %5089 = vmatprep.mubr.f32.mxu0 0.0
        %5090 = vmatmul.mubr.f32.gmra.mxu0 %v4978
        %v5091 = vpop.f32.mrf.mxu0
        %v5092 = vadd.f32 0.0, %v5091
        %v5093 = vpop.f32.mrf.mxu0
        %5094 = vmatprep.mubr.f32.mxu0 0.0
        %5095 = vmatmul.mubr.f32.gmra.mxu0 %v4981
        %v5096 = vpop.f32.mrf.mxu0
        %v5097 = vadd.f32 0.0, %v5096
        %v5098 = vpop.f32.mrf.mxu0
        %5099 = vmatprep.mubr.f32.mxu0 0.0
        %5100 = vmatmul.mubr.f32.gmra.mxu0 %v4984
        %v5101 = vpop.f32.mrf.mxu0
        %v5102 = vadd.f32 0.0, %v5101
        %v5103 = vpop.f32.mrf.mxu0
        %5104 = vmatprep.mubr.f32.mxu0 0.0
        %5105 = vmatmul.mubr.f32.gmra.mxu0 %v4987
        %v5106 = vpop.f32.mrf.mxu0
        %v5107 = vadd.f32 0.0, %v5106
        %v5108 = vpop.f32.mrf.mxu0
        %5109 = vmatprep.mubr.f32.mxu0 0.0
        %5110 = vmatmul.mubr.f32.gmra.mxu0 %v4990
        %v5111 = vpop.f32.mrf.mxu0
        %v5112 = vadd.f32 0.0, %v5111
        %v5113 = vpop.f32.mrf.mxu0
        %5114 = vmatprep.mubr.f32.mxu0 0.0
        %5115 = vmatmul.mubr.f32.gmra.mxu0 %v4993
        %v5116 = vpop.f32.mrf.mxu0
        %v5117 = vadd.f32 0.0, %v5116
        %v5118 = vpop.f32.mrf.mxu0
        %5119 = vmatprep.mubr.f32.mxu0 0.0
        %5120 = vmatmul.mubr.f32.gmra.mxu0 %v4996
        %v5121 = vpop.f32.mrf.mxu0
        %v5122 = vadd.f32 0.0, %v5121
        %v5123 = vpop.f32.mrf.mxu0
        %5124 = vmatprep.mubr.f32.mxu0 0.0
        %5125 = vmatmul.mubr.f32.gmra.mxu0 %v4999
        %v5126 = vpop.f32.mrf.mxu0
        %v5127 = vadd.f32 0.0, %v5126
        %v5128 = vpop.f32.mrf.mxu0
        %5129 = vmatprep.mubr.f32.mxu0 0.0
        %5130 = vmatmul.mubr.f32.gmra.mxu0 %v5002
        %v5131 = vpop.f32.mrf.mxu0
        %v5132 = vadd.f32 0.0, %v5131
        %v5133 = vpop.f32.mrf.mxu0
        %5134 = vmatprep.mubr.f32.mxu0 0.0
        %5135 = vmatmul.mubr.f32.gmra.mxu0 %v5005
        %v5136 = vpop.f32.mrf.mxu0
        %v5137 = vadd.f32 0.0, %v5136
        %v5138 = vpop.f32.mrf.mxu0
        %5139 = vmatprep.mubr.f32.mxu0 0.0
        %5140 = vmatmul.mubr.f32.gmra.mxu0 %v5008
        %v5141 = vpop.f32.mrf.mxu0
        %v5142 = vadd.f32 0.0, %v5141
        %v5143 = vpop.f32.mrf.mxu0
        %5144 = vmatprep.mubr.f32.mxu0 0.0
        %5145 = vmatmul.mubr.f32.gmra.mxu0 %v5011
        %v5146 = vpop.f32.mrf.mxu0
        %v5147 = vadd.f32 0.0, %v5146
        %v5148 = vpop.f32.mrf.mxu0
        %5149 = vmatprep.mubr.f32.mxu0 0.0
        %5150 = vmatmul.mubr.f32.gmra.mxu0 %v5014
        %v5151 = vpop.f32.mrf.mxu0
        %v5152 = vadd.f32 0.0, %v5151
        %v5153 = vpop.f32.mrf.mxu0
        %5154 = vmatprep.mubr.f32.mxu0 0.0
        %5155 = vmatmul.mubr.f32.gmra.mxu0 %v5017
        %v5156 = vpop.f32.mrf.mxu0
        %v5157 = vadd.f32 0.0, %v5156
        %v5158 = vpop.f32.mrf.mxu0
        %5159 = vmatprep.mubr.f32.mxu0 0.0
        %5160 = vmatmul.mubr.f32.gmra.mxu0 %v5020
        %v5161 = vpop.f32.mrf.mxu0
        %v5162 = vadd.f32 0.0, %v5161
        %v5163 = vpop.f32.mrf.mxu0
        %5164 = vmatprep.mubr.f32.mxu0 0.0
        %5165 = vmatmul.mubr.f32.gmra.mxu0 %v5023
        %v5166 = vpop.f32.mrf.mxu0
        %v5167 = vadd.f32 0.0, %v5166
        %v5168 = vpop.f32.mrf.mxu0
        %5169 = vdwg.mxu0
        %v5170 = vadd.f32 %v4925, %v5092
        %v5171 = vadd.f32 %v4926, %v5097
        %v5172 = vadd.f32 %v4927, %v5102
        %v5173 = vadd.f32 %v4928, %v5107
        %v5174 = vadd.f32 %v4929, %v5112
        %v5175 = vadd.f32 %v4930, %v5117
        %v5176 = vadd.f32 %v4931, %v5122
        %v5177 = vadd.f32 %v4932, %v5127
        %v5178 = vadd.f32 %v4933, %v5132
        %v5179 = vadd.f32 %v4934, %v5137
        %v5180 = vadd.f32 %v4935, %v5142
        %v5181 = vadd.f32 %v4936, %v5147
        %v5182 = vadd.f32 %v4937, %v5152
        %v5183 = vadd.f32 %v4938, %v5157
        %v5184 = vadd.f32 %v4939, %v5162
        %v5185 = vadd.f32 %v4940, %v5167
        %v5186 = vld [vmem:[#allocation2 + $0xa8] sm:$0xff]
        %v5187 = vld [vmem:[#allocation2 + $0xb0] sm:$0xff]
        %v5188 = vld [vmem:[#allocation2 + $0xb8] sm:$0xff]
        %v5189 = vld [vmem:[#allocation2 + $0xc0] sm:$0xff]
        %v5190 = vld [vmem:[#allocation2 + $0xc8] sm:$0xff]
        %v5191 = vld [vmem:[#allocation2 + $0xd0] sm:$0xff]
        %v5192 = vld [vmem:[#allocation2 + $0xd8] sm:$0xff]
        %v5193 = vld [vmem:[#allocation2 + $0xe0] sm:$0xff]
        %v5194 = vld [vmem:[#allocation2 + $0xe8] sm:$0xff]
        %v5195 = vld [vmem:[#allocation2 + $0xf0] sm:$0xff]
        %v5196 = vld [vmem:[#allocation2 + $0xf8] sm:$0xff]
        %v5197 = vld [vmem:[#allocation2 + $0x100] sm:$0xff]
        %v5198 = vld [vmem:[#allocation2 + $0x108] sm:$0xff]
        %v5199 = vld [vmem:[#allocation2 + $0x110] sm:$0xff]
        %v5200 = vld [vmem:[#allocation2 + $0x118] sm:$0xff]
        %v5201 = vld [vmem:[#allocation2 + $0x120] sm:$0xff]
        %v5202 = vld [vmem:[%s2774] sm:$0xff]
        %v5203 = vld [vmem:[%s2774 + $0x8] sm:$0xff]
        %v5204 = vld [vmem:[%s2774 + $0x10] sm:$0xff]
        %v5205 = vld [vmem:[%s2774 + $0x18] sm:$0xff]
        %v5207 = vsel %vm341, %v5186, 0
        %v5210 = vsel %vm341, %v5187, 0
        %v5213 = vsel %vm341, %v5188, 0
        %v5216 = vsel %vm341, %v5189, 0
        %v5219 = vsel %vm341, %v5190, 0
        %v5222 = vsel %vm341, %v5191, 0
        %v5225 = vsel %vm341, %v5192, 0
        %v5228 = vsel %vm341, %v5193, 0
        %v5231 = vsel %vm341, %v5194, 0
        %v5234 = vsel %vm341, %v5195, 0
        %v5237 = vsel %vm341, %v5196, 0
        %v5240 = vsel %vm341, %v5197, 0
        %v5243 = vsel %vm341, %v5198, 0
        %v5246 = vsel %vm341, %v5199, 0
        %v5249 = vsel %vm341, %v5200, 0
        %v5252 = vsel %vm341, %v5201, 0
        %5254 = vmatprep.subr.mxu0 0.0
        %5255 = vmatpush1.msra.mxu0 0.0
        %5256 = vmatprep.subr.mxu0 0.0
        %5257 = vmatpush1.msra.mxu0 0.0
        %5258 = vmatprep.subr.mxu0 0.0
        %5259 = vmatpush1.msra.mxu0 0.0
        %5260 = vmatprep.subr.mxu0 0.0
        %5261 = vmatpush1.msra.mxu0 0.0
        %5262 = vmatprep.subr.mxu0 0.0
        %5263 = vmatpush1.msra.mxu0 0.0
        %5264 = vmatprep.subr.mxu0 0.0
        %5265 = vmatpush1.msra.mxu0 0.0
        %5266 = vmatprep.subr.mxu0 0.0
        %5267 = vmatpush1.msra.mxu0 0.0
        %5268 = vmatprep.subr.mxu0 0.0
        %5269 = vmatpush1.msra.mxu0 0.0
        %5270 = vmatprep.subr.mxu0 0.0
        %5271 = vmatpush1.msra.mxu0 0.0
        %5272 = vmatprep.subr.mxu0 0.0
        %5273 = vmatpush1.msra.mxu0 0.0
        %5274 = vmatprep.subr.mxu0 0.0
        %5275 = vmatpush1.msra.mxu0 0.0
        %5276 = vmatprep.subr.mxu0 0.0
        %5277 = vmatpush1.msra.mxu0 0.0
        %5278 = vmatprep.subr.mxu0 0.0
        %5279 = vmatpush1.msra.mxu0 %v5205
        %5280 = vmatprep.subr.mxu0 0.0
        %5281 = vmatpush1.msra.mxu0 %v5204
        %5282 = vmatprep.subr.mxu0 0.0
        %5283 = vmatpush1.msra.mxu0 %v5203
        %5284 = vmatprep.subr.mxu0 0.0
        %5285 = vmatpush1.msra.mxu0 %v5202
        %5286 = vmatprep.subr.mxu0 0.0
        %5287 = vmatpush2.msra.mxu0 0.0
        %5288 = vmatprep.subr.mxu0 0.0
        %5289 = vmatpush2.msra.mxu0 0.0
        %5290 = vmatprep.subr.mxu0 0.0
        %5291 = vmatpush2.msra.mxu0 0.0
        %5292 = vmatprep.subr.mxu0 0.0
        %5293 = vmatpush2.msra.mxu0 0.0
        %5294 = vmatprep.subr.mxu0 0.0
        %5295 = vmatpush2.msra.mxu0 0.0
        %5296 = vmatprep.subr.mxu0 0.0
        %5297 = vmatpush2.msra.mxu0 0.0
        %5298 = vmatprep.subr.mxu0 0.0
        %5299 = vmatpush2.msra.mxu0 0.0
        %5300 = vmatprep.subr.mxu0 0.0
        %5301 = vmatpush2.msra.mxu0 0.0
        %5302 = vmatprep.subr.mxu0 0.0
        %5303 = vmatpush2.msra.mxu0 0.0
        %5304 = vmatprep.subr.mxu0 0.0
        %5305 = vmatpush2.msra.mxu0 0.0
        %5306 = vmatprep.subr.mxu0 0.0
        %5307 = vmatpush2.msra.mxu0 0.0
        %5308 = vmatprep.subr.mxu0 0.0
        %5309 = vmatpush2.msra.mxu0 0.0
        %5310 = vmatprep.subr.mxu0 0.0
        %5311 = vmatpush2.msra.mxu0 0.0
        %5312 = vmatprep.subr.mxu0 0.0
        %5313 = vmatpush2.msra.mxu0 0.0
        %5314 = vmatprep.subr.mxu0 0.0
        %5315 = vmatpush2.msra.mxu0 0.0
        %5316 = vmatprep.subr.mxu0 0.0
        %5317 = vmatpush2.msra.mxu0 0.0
        %5318 = vmatprep.mubr.f32.mxu0 0.0
        %5319 = vmatmul.mubr.f32.gmra.mxu0 %v5207
        %v5320 = vpop.f32.mrf.mxu0
        %v5321 = vadd.f32 0.0, %v5320
        %v5322 = vpop.f32.mrf.mxu0
        %5323 = vmatprep.mubr.f32.mxu0 0.0
        %5324 = vmatmul.mubr.f32.gmra.mxu0 %v5210
        %v5325 = vpop.f32.mrf.mxu0
        %v5326 = vadd.f32 0.0, %v5325
        %v5327 = vpop.f32.mrf.mxu0
        %5328 = vmatprep.mubr.f32.mxu0 0.0
        %5329 = vmatmul.mubr.f32.gmra.mxu0 %v5213
        %v5330 = vpop.f32.mrf.mxu0
        %v5331 = vadd.f32 0.0, %v5330
        %v5332 = vpop.f32.mrf.mxu0
        %5333 = vmatprep.mubr.f32.mxu0 0.0
        %5334 = vmatmul.mubr.f32.gmra.mxu0 %v5216
        %v5335 = vpop.f32.mrf.mxu0
        %v5336 = vadd.f32 0.0, %v5335
        %v5337 = vpop.f32.mrf.mxu0
        %5338 = vmatprep.mubr.f32.mxu0 0.0
        %5339 = vmatmul.mubr.f32.gmra.mxu0 %v5219
        %v5340 = vpop.f32.mrf.mxu0
        %v5341 = vadd.f32 0.0, %v5340
        %v5342 = vpop.f32.mrf.mxu0
        %5343 = vmatprep.mubr.f32.mxu0 0.0
        %5344 = vmatmul.mubr.f32.gmra.mxu0 %v5222
        %v5345 = vpop.f32.mrf.mxu0
        %v5346 = vadd.f32 0.0, %v5345
        %v5347 = vpop.f32.mrf.mxu0
        %5348 = vmatprep.mubr.f32.mxu0 0.0
        %5349 = vmatmul.mubr.f32.gmra.mxu0 %v5225
        %v5350 = vpop.f32.mrf.mxu0
        %v5351 = vadd.f32 0.0, %v5350
        %v5352 = vpop.f32.mrf.mxu0
        %5353 = vmatprep.mubr.f32.mxu0 0.0
        %5354 = vmatmul.mubr.f32.gmra.mxu0 %v5228
        %v5355 = vpop.f32.mrf.mxu0
        %v5356 = vadd.f32 0.0, %v5355
        %v5357 = vpop.f32.mrf.mxu0
        %5358 = vmatprep.mubr.f32.mxu0 0.0
        %5359 = vmatmul.mubr.f32.gmra.mxu0 %v5231
        %v5360 = vpop.f32.mrf.mxu0
        %v5361 = vadd.f32 0.0, %v5360
        %v5362 = vpop.f32.mrf.mxu0
        %5363 = vmatprep.mubr.f32.mxu0 0.0
        %5364 = vmatmul.mubr.f32.gmra.mxu0 %v5234
        %v5365 = vpop.f32.mrf.mxu0
        %v5366 = vadd.f32 0.0, %v5365
        %v5367 = vpop.f32.mrf.mxu0
        %5368 = vmatprep.mubr.f32.mxu0 0.0
        %5369 = vmatmul.mubr.f32.gmra.mxu0 %v5237
        %v5370 = vpop.f32.mrf.mxu0
        %v5371 = vadd.f32 0.0, %v5370
        %v5372 = vpop.f32.mrf.mxu0
        %5373 = vmatprep.mubr.f32.mxu0 0.0
        %5374 = vmatmul.mubr.f32.gmra.mxu0 %v5240
        %v5375 = vpop.f32.mrf.mxu0
        %v5376 = vadd.f32 0.0, %v5375
        %v5377 = vpop.f32.mrf.mxu0
        %5378 = vmatprep.mubr.f32.mxu0 0.0
        %5379 = vmatmul.mubr.f32.gmra.mxu0 %v5243
        %v5380 = vpop.f32.mrf.mxu0
        %v5381 = vadd.f32 0.0, %v5380
        %v5382 = vpop.f32.mrf.mxu0
        %5383 = vmatprep.mubr.f32.mxu0 0.0
        %5384 = vmatmul.mubr.f32.gmra.mxu0 %v5246
        %v5385 = vpop.f32.mrf.mxu0
        %v5386 = vadd.f32 0.0, %v5385
        %v5387 = vpop.f32.mrf.mxu0
        %5388 = vmatprep.mubr.f32.mxu0 0.0
        %5389 = vmatmul.mubr.f32.gmra.mxu0 %v5249
        %v5390 = vpop.f32.mrf.mxu0
        %v5391 = vadd.f32 0.0, %v5390
        %v5392 = vpop.f32.mrf.mxu0
        %5393 = vmatprep.mubr.f32.mxu0 0.0
        %5394 = vmatmul.mubr.f32.gmra.mxu0 %v5252
        %v5395 = vpop.f32.mrf.mxu0
        %v5396 = vadd.f32 0.0, %v5395
        %v5397 = vpop.f32.mrf.mxu0
        %5398 = vdwg.mxu0
        %v5399 = vadd.f32 %v5170, %v5321
        %v5400 = vadd.f32 %v5171, %v5326
        %v5401 = vadd.f32 %v5172, %v5331
        %v5402 = vadd.f32 %v5173, %v5336
        %v5403 = vadd.f32 %v5174, %v5341
        %v5404 = vadd.f32 %v5175, %v5346
        %v5405 = vadd.f32 %v5176, %v5351
        %v5406 = vadd.f32 %v5177, %v5356
        %v5407 = vadd.f32 %v5178, %v5361
        %v5408 = vadd.f32 %v5179, %v5366
        %v5409 = vadd.f32 %v5180, %v5371
        %v5410 = vadd.f32 %v5181, %v5376
        %v5411 = vadd.f32 %v5182, %v5381
        %v5412 = vadd.f32 %v5183, %v5386
        %v5413 = vadd.f32 %v5184, %v5391
        %v5414 = vadd.f32 %v5185, %v5396
        %v5415 = vld [vmem:[#allocation2 + $0xa9] sm:$0xff]
        %v5416 = vld [vmem:[#allocation2 + $0xb1] sm:$0xff]
        %v5417 = vld [vmem:[#allocation2 + $0xb9] sm:$0xff]
        %v5418 = vld [vmem:[#allocation2 + $0xc1] sm:$0xff]
        %v5419 = vld [vmem:[#allocation2 + $0xc9] sm:$0xff]
        %v5420 = vld [vmem:[#allocation2 + $0xd1] sm:$0xff]
        %v5421 = vld [vmem:[#allocation2 + $0xd9] sm:$0xff]
        %v5422 = vld [vmem:[#allocation2 + $0xe1] sm:$0xff]
        %v5423 = vld [vmem:[#allocation2 + $0xe9] sm:$0xff]
        %v5424 = vld [vmem:[#allocation2 + $0xf1] sm:$0xff]
        %v5425 = vld [vmem:[#allocation2 + $0xf9] sm:$0xff]
        %v5426 = vld [vmem:[#allocation2 + $0x101] sm:$0xff]
        %v5427 = vld [vmem:[#allocation2 + $0x109] sm:$0xff]
        %v5428 = vld [vmem:[#allocation2 + $0x111] sm:$0xff]
        %v5429 = vld [vmem:[#allocation2 + $0x119] sm:$0xff]
        %v5430 = vld [vmem:[#allocation2 + $0x121] sm:$0xff]
        %v5431 = vsel %vm1544, %v5415, 0.0
        %v5432 = vsel %vm1545, %v5416, 0.0
        %v5433 = vsel %vm1546, %v5417, 0.0
        %v5434 = vsel %vm1547, %v5418, 0.0
        %v5435 = vsel %vm1548, %v5419, 0.0
        %v5436 = vsel %vm1549, %v5420, 0.0
        %v5437 = vsel %vm1550, %v5421, 0.0
        %v5438 = vsel %vm1551, %v5422, 0.0
        %v5439 = vsel %vm1552, %v5423, 0.0
        %v5440 = vsel %vm1553, %v5424, 0.0
        %v5441 = vsel %vm1554, %v5425, 0.0
        %v5442 = vsel %vm1555, %v5426, 0.0
        %v5443 = vsel %vm1556, %v5427, 0.0
        %v5444 = vsel %vm1557, %v5428, 0.0
        %v5445 = vsel %vm1558, %v5429, 0.0
        %v5446 = vsel %vm1559, %v5430, 0.0
        %v5447 = vld [vmem:[%s3020] sm:$0xff]
        %v5448 = vld [vmem:[%s3020 + $0x8] sm:$0xff]
        %v5449 = vld [vmem:[%s3020 + $0x10] sm:$0xff]
        %v5450 = vld [vmem:[%s3020 + $0x18] sm:$0xff]
        %v5452 = vsel %vm341, %v5431, 0
        %v5455 = vsel %vm341, %v5432, 0
        %v5458 = vsel %vm341, %v5433, 0
        %v5461 = vsel %vm341, %v5434, 0
        %v5464 = vsel %vm341, %v5435, 0
        %v5467 = vsel %vm341, %v5436, 0
        %v5470 = vsel %vm341, %v5437, 0
        %v5473 = vsel %vm341, %v5438, 0
        %v5476 = vsel %vm341, %v5439, 0
        %v5479 = vsel %vm341, %v5440, 0
        %v5482 = vsel %vm341, %v5441, 0
        %v5485 = vsel %vm341, %v5442, 0
        %v5488 = vsel %vm341, %v5443, 0
        %v5491 = vsel %vm341, %v5444, 0
        %v5494 = vsel %vm341, %v5445, 0
        %v5497 = vsel %vm341, %v5446, 0
        %5499 = vmatprep.subr.mxu0 0.0
        %5500 = vmatpush1.msra.mxu0 0.0
        %5501 = vmatprep.subr.mxu0 0.0
        %5502 = vmatpush1.msra.mxu0 0.0
        %5503 = vmatprep.subr.mxu0 0.0
        %5504 = vmatpush1.msra.mxu0 0.0
        %5505 = vmatprep.subr.mxu0 0.0
        %5506 = vmatpush1.msra.mxu0 0.0
        %5507 = vmatprep.subr.mxu0 0.0
        %5508 = vmatpush1.msra.mxu0 0.0
        %5509 = vmatprep.subr.mxu0 0.0
        %5510 = vmatpush1.msra.mxu0 0.0
        %5511 = vmatprep.subr.mxu0 0.0
        %5512 = vmatpush1.msra.mxu0 0.0
        %5513 = vmatprep.subr.mxu0 0.0
        %5514 = vmatpush1.msra.mxu0 0.0
        %5515 = vmatprep.subr.mxu0 0.0
        %5516 = vmatpush1.msra.mxu0 0.0
        %5517 = vmatprep.subr.mxu0 0.0
        %5518 = vmatpush1.msra.mxu0 0.0
        %5519 = vmatprep.subr.mxu0 0.0
        %5520 = vmatpush1.msra.mxu0 0.0
        %5521 = vmatprep.subr.mxu0 0.0
        %5522 = vmatpush1.msra.mxu0 0.0
        %5523 = vmatprep.subr.mxu0 0.0
        %5524 = vmatpush1.msra.mxu0 %v5450
        %5525 = vmatprep.subr.mxu0 0.0
        %5526 = vmatpush1.msra.mxu0 %v5449
        %5527 = vmatprep.subr.mxu0 0.0
        %5528 = vmatpush1.msra.mxu0 %v5448
        %5529 = vmatprep.subr.mxu0 0.0
        %5530 = vmatpush1.msra.mxu0 %v5447
        %5531 = vmatprep.subr.mxu0 0.0
        %5532 = vmatpush2.msra.mxu0 0.0
        %5533 = vmatprep.subr.mxu0 0.0
        %5534 = vmatpush2.msra.mxu0 0.0
        %5535 = vmatprep.subr.mxu0 0.0
        %5536 = vmatpush2.msra.mxu0 0.0
        %5537 = vmatprep.subr.mxu0 0.0
        %5538 = vmatpush2.msra.mxu0 0.0
        %5539 = vmatprep.subr.mxu0 0.0
        %5540 = vmatpush2.msra.mxu0 0.0
        %5541 = vmatprep.subr.mxu0 0.0
        %5542 = vmatpush2.msra.mxu0 0.0
        %5543 = vmatprep.subr.mxu0 0.0
        %5544 = vmatpush2.msra.mxu0 0.0
        %5545 = vmatprep.subr.mxu0 0.0
        %5546 = vmatpush2.msra.mxu0 0.0
        %5547 = vmatprep.subr.mxu0 0.0
        %5548 = vmatpush2.msra.mxu0 0.0
        %5549 = vmatprep.subr.mxu0 0.0
        %5550 = vmatpush2.msra.mxu0 0.0
        %5551 = vmatprep.subr.mxu0 0.0
        %5552 = vmatpush2.msra.mxu0 0.0
        %5553 = vmatprep.subr.mxu0 0.0
        %5554 = vmatpush2.msra.mxu0 0.0
        %5555 = vmatprep.subr.mxu0 0.0
        %5556 = vmatpush2.msra.mxu0 0.0
        %5557 = vmatprep.subr.mxu0 0.0
        %5558 = vmatpush2.msra.mxu0 0.0
        %5559 = vmatprep.subr.mxu0 0.0
        %5560 = vmatpush2.msra.mxu0 0.0
        %5561 = vmatprep.subr.mxu0 0.0
        %5562 = vmatpush2.msra.mxu0 0.0
        %5563 = vmatprep.mubr.f32.mxu0 0.0
        %5564 = vmatmul.mubr.f32.gmra.mxu0 %v5452
        %v5565 = vpop.f32.mrf.mxu0
        %v5566 = vadd.f32 0.0, %v5565
        %v5567 = vpop.f32.mrf.mxu0
        %5568 = vmatprep.mubr.f32.mxu0 0.0
        %5569 = vmatmul.mubr.f32.gmra.mxu0 %v5455
        %v5570 = vpop.f32.mrf.mxu0
        %v5571 = vadd.f32 0.0, %v5570
        %v5572 = vpop.f32.mrf.mxu0
        %5573 = vmatprep.mubr.f32.mxu0 0.0
        %5574 = vmatmul.mubr.f32.gmra.mxu0 %v5458
        %v5575 = vpop.f32.mrf.mxu0
        %v5576 = vadd.f32 0.0, %v5575
        %v5577 = vpop.f32.mrf.mxu0
        %5578 = vmatprep.mubr.f32.mxu0 0.0
        %5579 = vmatmul.mubr.f32.gmra.mxu0 %v5461
        %v5580 = vpop.f32.mrf.mxu0
        %v5581 = vadd.f32 0.0, %v5580
        %v5582 = vpop.f32.mrf.mxu0
        %5583 = vmatprep.mubr.f32.mxu0 0.0
        %5584 = vmatmul.mubr.f32.gmra.mxu0 %v5464
        %v5585 = vpop.f32.mrf.mxu0
        %v5586 = vadd.f32 0.0, %v5585
        %v5587 = vpop.f32.mrf.mxu0
        %5588 = vmatprep.mubr.f32.mxu0 0.0
        %5589 = vmatmul.mubr.f32.gmra.mxu0 %v5467
        %v5590 = vpop.f32.mrf.mxu0
        %v5591 = vadd.f32 0.0, %v5590
        %v5592 = vpop.f32.mrf.mxu0
        %5593 = vmatprep.mubr.f32.mxu0 0.0
        %5594 = vmatmul.mubr.f32.gmra.mxu0 %v5470
        %v5595 = vpop.f32.mrf.mxu0
        %v5596 = vadd.f32 0.0, %v5595
        %v5597 = vpop.f32.mrf.mxu0
        %5598 = vmatprep.mubr.f32.mxu0 0.0
        %5599 = vmatmul.mubr.f32.gmra.mxu0 %v5473
        %v5600 = vpop.f32.mrf.mxu0
        %v5601 = vadd.f32 0.0, %v5600
        %v5602 = vpop.f32.mrf.mxu0
        %5603 = vmatprep.mubr.f32.mxu0 0.0
        %5604 = vmatmul.mubr.f32.gmra.mxu0 %v5476
        %v5605 = vpop.f32.mrf.mxu0
        %v5606 = vadd.f32 0.0, %v5605
        %v5607 = vpop.f32.mrf.mxu0
        %5608 = vmatprep.mubr.f32.mxu0 0.0
        %5609 = vmatmul.mubr.f32.gmra.mxu0 %v5479
        %v5610 = vpop.f32.mrf.mxu0
        %v5611 = vadd.f32 0.0, %v5610
        %v5612 = vpop.f32.mrf.mxu0
        %5613 = vmatprep.mubr.f32.mxu0 0.0
        %5614 = vmatmul.mubr.f32.gmra.mxu0 %v5482
        %v5615 = vpop.f32.mrf.mxu0
        %v5616 = vadd.f32 0.0, %v5615
        %v5617 = vpop.f32.mrf.mxu0
        %5618 = vmatprep.mubr.f32.mxu0 0.0
        %5619 = vmatmul.mubr.f32.gmra.mxu0 %v5485
        %v5620 = vpop.f32.mrf.mxu0
        %v5621 = vadd.f32 0.0, %v5620
        %v5622 = vpop.f32.mrf.mxu0
        %5623 = vmatprep.mubr.f32.mxu0 0.0
        %5624 = vmatmul.mubr.f32.gmra.mxu0 %v5488
        %v5625 = vpop.f32.mrf.mxu0
        %v5626 = vadd.f32 0.0, %v5625
        %v5627 = vpop.f32.mrf.mxu0
        %5628 = vmatprep.mubr.f32.mxu0 0.0
        %5629 = vmatmul.mubr.f32.gmra.mxu0 %v5491
        %v5630 = vpop.f32.mrf.mxu0
        %v5631 = vadd.f32 0.0, %v5630
        %v5632 = vpop.f32.mrf.mxu0
        %5633 = vmatprep.mubr.f32.mxu0 0.0
        %5634 = vmatmul.mubr.f32.gmra.mxu0 %v5494
        %v5635 = vpop.f32.mrf.mxu0
        %v5636 = vadd.f32 0.0, %v5635
        %v5637 = vpop.f32.mrf.mxu0
        %5638 = vmatprep.mubr.f32.mxu0 0.0
        %5639 = vmatmul.mubr.f32.gmra.mxu0 %v5497
        %v5640 = vpop.f32.mrf.mxu0
        %v5641 = vadd.f32 0.0, %v5640
        %v5642 = vpop.f32.mrf.mxu0
        %5643 = vdwg.mxu0
        %v5644 = vadd.f32 %v5399, %v5566
        %v5645 = vadd.f32 %v5400, %v5571
        %v5646 = vadd.f32 %v5401, %v5576
        %v5647 = vadd.f32 %v5402, %v5581
        %v5648 = vadd.f32 %v5403, %v5586
        %v5649 = vadd.f32 %v5404, %v5591
        %v5650 = vadd.f32 %v5405, %v5596
        %v5651 = vadd.f32 %v5406, %v5601
        %v5652 = vadd.f32 %v5407, %v5606
        %v5653 = vadd.f32 %v5408, %v5611
        %v5654 = vadd.f32 %v5409, %v5616
        %v5655 = vadd.f32 %v5410, %v5621
        %v5656 = vadd.f32 %v5411, %v5626
        %v5657 = vadd.f32 %v5412, %v5631
        %v5658 = vadd.f32 %v5413, %v5636
        %v5659 = vadd.f32 %v5414, %v5641
        %v5660 = vadd.f32 %v5644, %v3238
        %v5661 = vadd.f32 %v5645, %v3238
        %v5662 = vadd.f32 %v5646, %v3238
        %v5663 = vadd.f32 %v5647, %v3238
        %v5664 = vadd.f32 %v5648, %v3238
        %v5665 = vadd.f32 %v5649, %v3238
        %v5666 = vadd.f32 %v5650, %v3238
        %v5667 = vadd.f32 %v5651, %v3238
        %v5668 = vadd.f32 %v5652, %v3238
        %v5669 = vadd.f32 %v5653, %v3238
        %v5670 = vadd.f32 %v5654, %v3238
        %v5671 = vadd.f32 %v5655, %v3238
        %v5672 = vadd.f32 %v5656, %v3238
        %v5673 = vadd.f32 %v5657, %v3238
        %v5674 = vadd.f32 %v5658, %v3238
        %v5675 = vadd.f32 %v5659, %v3238
        %v5676 = vmax.f32 %v5660, 0.0
        %v5677 = vmax.f32 %v5661, 0.0
        %v5678 = vmax.f32 %v5662, 0.0
        %v5679 = vmax.f32 %v5663, 0.0
        %v5680 = vmax.f32 %v5664, 0.0
        %v5681 = vmax.f32 %v5665, 0.0
        %v5682 = vmax.f32 %v5666, 0.0
        %v5683 = vmax.f32 %v5667, 0.0
        %v5684 = vmax.f32 %v5668, 0.0
        %v5685 = vmax.f32 %v5669, 0.0
        %v5686 = vmax.f32 %v5670, 0.0
        %v5687 = vmax.f32 %v5671, 0.0
        %v5688 = vmax.f32 %v5672, 0.0
        %v5689 = vmax.f32 %v5673, 0.0
        %v5690 = vmax.f32 %v5674, 0.0
        %v5691 = vmax.f32 %v5675, 0.0
        %v5693 = vsel %vm341, %v5676, 0
        %v5696 = vsel %vm341, %v5677, 0
        %v5699 = vsel %vm341, %v5678, 0
        %v5702 = vsel %vm341, %v5679, 0
        %v5705 = vsel %vm341, %v5680, 0
        %v5708 = vsel %vm341, %v5681, 0
        %v5711 = vsel %vm341, %v5682, 0
        %v5714 = vsel %vm341, %v5683, 0
        %v5717 = vsel %vm341, %v5684, 0
        %v5720 = vsel %vm341, %v5685, 0
        %v5723 = vsel %vm341, %v5686, 0
        %v5726 = vsel %vm341, %v5687, 0
        %v5729 = vsel %vm341, %v5688, 0
        %v5732 = vsel %vm341, %v5689, 0
        %v5735 = vsel %vm341, %v5690, 0
        %v5738 = vsel %vm341, %v5691, 0
        %5740 = vmatprep.subr.mxu0 0.0
        %5741 = vmatpush1.msra.mxu0 0.0
        %5742 = vmatprep.subr.mxu0 0.0
        %5743 = vmatpush1.msra.mxu0 0.0
        %5744 = vmatprep.subr.mxu0 0.0
        %5745 = vmatpush1.msra.mxu0 0.0
        %5746 = vmatprep.subr.mxu0 0.0
        %5747 = vmatpush1.msra.mxu0 0.0
        %5748 = vmatprep.subr.mxu0 0.0
        %5749 = vmatpush1.msra.mxu0 0.0
        %5750 = vmatprep.subr.mxu0 0.0
        %5751 = vmatpush1.msra.mxu0 0.0
        %5752 = vmatprep.subr.mxu0 0.0
        %5753 = vmatpush1.msra.mxu0 0.0
        %5754 = vmatprep.subr.mxu0 0.0
        %5755 = vmatpush1.msra.mxu0 0.0
        %5756 = vmatprep.subr.mxu0 0.0
        %5757 = vmatpush1.msra.mxu0 0.0
        %5758 = vmatprep.subr.mxu0 0.0
        %5759 = vmatpush1.msra.mxu0 0.0
        %5760 = vmatprep.subr.mxu0 0.0
        %5761 = vmatpush1.msra.mxu0 0.0
        %5762 = vmatprep.subr.mxu0 0.0
        %5763 = vmatpush1.msra.mxu0 0.0
        %5764 = vmatprep.subr.mxu0 0.0
        %5765 = vmatpush1.msra.mxu0 %v399
        %5766 = vmatprep.subr.mxu0 0.0
        %5767 = vmatpush1.msra.mxu0 %v398
        %5768 = vmatprep.subr.mxu0 0.0
        %5769 = vmatpush1.msra.mxu0 %v397
        %5770 = vmatprep.subr.mxu0 0.0
        %5771 = vmatpush1.msra.mxu0 %v396
        %5772 = vmatprep.subr.mxu0 0.0
        %5773 = vmatpush2.msra.mxu0 0.0
        %5774 = vmatprep.subr.mxu0 0.0
        %5775 = vmatpush2.msra.mxu0 0.0
        %5776 = vmatprep.subr.mxu0 0.0
        %5777 = vmatpush2.msra.mxu0 0.0
        %5778 = vmatprep.subr.mxu0 0.0
        %5779 = vmatpush2.msra.mxu0 0.0
        %5780 = vmatprep.subr.mxu0 0.0
        %5781 = vmatpush2.msra.mxu0 0.0
        %5782 = vmatprep.subr.mxu0 0.0
        %5783 = vmatpush2.msra.mxu0 0.0
        %5784 = vmatprep.subr.mxu0 0.0
        %5785 = vmatpush2.msra.mxu0 0.0
        %5786 = vmatprep.subr.mxu0 0.0
        %5787 = vmatpush2.msra.mxu0 0.0
        %5788 = vmatprep.subr.mxu0 0.0
        %5789 = vmatpush2.msra.mxu0 0.0
        %5790 = vmatprep.subr.mxu0 0.0
        %5791 = vmatpush2.msra.mxu0 0.0
        %5792 = vmatprep.subr.mxu0 0.0
        %5793 = vmatpush2.msra.mxu0 0.0
        %5794 = vmatprep.subr.mxu0 0.0
        %5795 = vmatpush2.msra.mxu0 0.0
        %5796 = vmatprep.subr.mxu0 0.0
        %5797 = vmatpush2.msra.mxu0 0.0
        %5798 = vmatprep.subr.mxu0 0.0
        %5799 = vmatpush2.msra.mxu0 0.0
        %5800 = vmatprep.subr.mxu0 0.0
        %5801 = vmatpush2.msra.mxu0 0.0
        %5802 = vmatprep.subr.mxu0 0.0
        %5803 = vmatpush2.msra.mxu0 0.0
        %5804 = vmatprep.mubr.f32.mxu0 0.0
        %5805 = vmatmul.mubr.f32.gmra.mxu0 %v5693
        %v5806 = vpop.f32.mrf.mxu0
        %v5807 = vadd.f32 %v3276, %v5806
        %v5808 = vpop.f32.mrf.mxu0
        %5809 = vmatprep.mubr.f32.mxu0 0.0
        %5810 = vmatmul.mubr.f32.gmra.mxu0 %v5696
        %v5811 = vpop.f32.mrf.mxu0
        %v5812 = vadd.f32 %v3276, %v5811
        %v5813 = vpop.f32.mrf.mxu0
        %5814 = vmatprep.mubr.f32.mxu0 0.0
        %5815 = vmatmul.mubr.f32.gmra.mxu0 %v5699
        %v5816 = vpop.f32.mrf.mxu0
        %v5817 = vadd.f32 %v3276, %v5816
        %v5818 = vpop.f32.mrf.mxu0
        %5819 = vmatprep.mubr.f32.mxu0 0.0
        %5820 = vmatmul.mubr.f32.gmra.mxu0 %v5702
        %v5821 = vpop.f32.mrf.mxu0
        %v5822 = vadd.f32 %v3276, %v5821
        %v5823 = vpop.f32.mrf.mxu0
        %5824 = vmatprep.mubr.f32.mxu0 0.0
        %5825 = vmatmul.mubr.f32.gmra.mxu0 %v5705
        %v5826 = vpop.f32.mrf.mxu0
        %v5827 = vadd.f32 %v3276, %v5826
        %v5828 = vpop.f32.mrf.mxu0
        %5829 = vmatprep.mubr.f32.mxu0 0.0
        %5830 = vmatmul.mubr.f32.gmra.mxu0 %v5708
        %v5831 = vpop.f32.mrf.mxu0
        %v5832 = vadd.f32 %v3276, %v5831
        %v5833 = vpop.f32.mrf.mxu0
        %5834 = vmatprep.mubr.f32.mxu0 0.0
        %5835 = vmatmul.mubr.f32.gmra.mxu0 %v5711
        %v5836 = vpop.f32.mrf.mxu0
        %v5837 = vadd.f32 %v3276, %v5836
        %v5838 = vpop.f32.mrf.mxu0
        %5839 = vmatprep.mubr.f32.mxu0 0.0
        %5840 = vmatmul.mubr.f32.gmra.mxu0 %v5714
        %v5841 = vpop.f32.mrf.mxu0
        %v5842 = vadd.f32 %v3276, %v5841
        %v5843 = vpop.f32.mrf.mxu0
        %5844 = vmatprep.mubr.f32.mxu0 0.0
        %5845 = vmatmul.mubr.f32.gmra.mxu0 %v5717
        %v5846 = vpop.f32.mrf.mxu0
        %v5847 = vadd.f32 %v3276, %v5846
        %v5848 = vpop.f32.mrf.mxu0
        %5849 = vmatprep.mubr.f32.mxu0 0.0
        %5850 = vmatmul.mubr.f32.gmra.mxu0 %v5720
        %v5851 = vpop.f32.mrf.mxu0
        %v5852 = vadd.f32 %v3276, %v5851
        %v5853 = vpop.f32.mrf.mxu0
        %5854 = vmatprep.mubr.f32.mxu0 0.0
        %5855 = vmatmul.mubr.f32.gmra.mxu0 %v5723
        %v5856 = vpop.f32.mrf.mxu0
        %v5857 = vadd.f32 %v3276, %v5856
        %v5858 = vpop.f32.mrf.mxu0
        %5859 = vmatprep.mubr.f32.mxu0 0.0
        %5860 = vmatmul.mubr.f32.gmra.mxu0 %v5726
        %v5861 = vpop.f32.mrf.mxu0
        %v5862 = vadd.f32 %v3276, %v5861
        %v5863 = vpop.f32.mrf.mxu0
        %5864 = vmatprep.mubr.f32.mxu0 0.0
        %5865 = vmatmul.mubr.f32.gmra.mxu0 %v5729
        %v5866 = vpop.f32.mrf.mxu0
        %v5867 = vadd.f32 %v3276, %v5866
        %v5868 = vpop.f32.mrf.mxu0
        %5869 = vmatprep.mubr.f32.mxu0 0.0
        %5870 = vmatmul.mubr.f32.gmra.mxu0 %v5732
        %v5871 = vpop.f32.mrf.mxu0
        %v5872 = vadd.f32 %v3276, %v5871
        %v5873 = vpop.f32.mrf.mxu0
        %5874 = vmatprep.mubr.f32.mxu0 0.0
        %5875 = vmatmul.mubr.f32.gmra.mxu0 %v5735
        %v5876 = vpop.f32.mrf.mxu0
        %v5877 = vadd.f32 %v3276, %v5876
        %v5878 = vpop.f32.mrf.mxu0
        %5879 = vmatprep.mubr.f32.mxu0 0.0
        %5880 = vmatmul.mubr.f32.gmra.mxu0 %v5738
        %v5881 = vpop.f32.mrf.mxu0
        %v5882 = vadd.f32 %v3276, %v5881
        %v5883 = vpop.f32.mrf.mxu0
        %5884 = vdwg.mxu0
        %v5885 = vld [vmem:[%s602] sm:$0xff]
        %v5886 = vld [vmem:[%s602 + $0x8] sm:$0xff]
        %v5887 = vld [vmem:[%s602 + $0x10] sm:$0xff]
        %v5888 = vld [vmem:[%s602 + $0x18] sm:$0xff]
        %v5889 = vld [vmem:[%s602 + $0x20] sm:$0xff]
        %v5890 = vld [vmem:[%s602 + $0x28] sm:$0xff]
        %v5891 = vld [vmem:[%s602 + $0x30] sm:$0xff]
        %v5892 = vld [vmem:[%s602 + $0x38] sm:$0xff]
        %v5893 = vld [vmem:[%s602 + $0x40] sm:$0xff]
        %v5894 = vld [vmem:[%s602 + $0x48] sm:$0xff]
        %v5895 = vld [vmem:[%s602 + $0x50] sm:$0xff]
        %v5896 = vld [vmem:[%s602 + $0x58] sm:$0xff]
        %v5897 = vld [vmem:[%s602 + $0x60] sm:$0xff]
        %v5898 = vld [vmem:[%s602 + $0x68] sm:$0xff]
        %v5899 = vld [vmem:[%s602 + $0x70] sm:$0xff]
        %v5900 = vld [vmem:[%s602 + $0x78] sm:$0xff]
        %v5901 = vadd.f32 %v5807, %v5885
        %v5902 = vadd.f32 %v5812, %v5886
        %v5903 = vadd.f32 %v5817, %v5887
        %v5904 = vadd.f32 %v5822, %v5888
        %v5905 = vadd.f32 %v5827, %v5889
        %v5906 = vadd.f32 %v5832, %v5890
        %v5907 = vadd.f32 %v5837, %v5891
        %v5908 = vadd.f32 %v5842, %v5892
        %v5909 = vadd.f32 %v5847, %v5893
        %v5910 = vadd.f32 %v5852, %v5894
        %v5911 = vadd.f32 %v5857, %v5895
        %v5912 = vadd.f32 %v5862, %v5896
        %v5913 = vadd.f32 %v5867, %v5897
        %v5914 = vadd.f32 %v5872, %v5898
        %v5915 = vadd.f32 %v5877, %v5899
        %v5916 = vadd.f32 %v5882, %v5900
        %v5917 = vmax.f32 %v5901, 0.0
        %v5918 = vmax.f32 %v5902, 0.0
        %v5919 = vmax.f32 %v5903, 0.0
        %v5920 = vmax.f32 %v5904, 0.0
        %v5921 = vmax.f32 %v5905, 0.0
        %v5922 = vmax.f32 %v5906, 0.0
        %v5923 = vmax.f32 %v5907, 0.0
        %v5924 = vmax.f32 %v5908, 0.0
        %v5925 = vmax.f32 %v5909, 0.0
        %v5926 = vmax.f32 %v5910, 0.0
        %v5927 = vmax.f32 %v5911, 0.0
        %v5928 = vmax.f32 %v5912, 0.0
        %v5929 = vmax.f32 %v5913, 0.0
        %v5930 = vmax.f32 %v5914, 0.0
        %v5931 = vmax.f32 %v5915, 0.0
        %v5932 = vmax.f32 %v5916, 0.0
        %s5933 = scalar_lea.vmem %s340, 128 [#allocation11]
        %5934 = vst [vmem:[%s5933] sm:$0xff] %v5917
        %5935 = vst [vmem:[%s5933 + $0x8] sm:$0xff] %v5918
        %5936 = vst [vmem:[%s5933 + $0x10] sm:$0xff] %v5919
        %5937 = vst [vmem:[%s5933 + $0x18] sm:$0xff] %v5920
        %5938 = vst [vmem:[%s5933 + $0x20] sm:$0xff] %v5921
        %5939 = vst [vmem:[%s5933 + $0x28] sm:$0xff] %v5922
        %5940 = vst [vmem:[%s5933 + $0x30] sm:$0xff] %v5923
        %5941 = vst [vmem:[%s5933 + $0x38] sm:$0xff] %v5924
        %5942 = vst [vmem:[%s5933 + $0x40] sm:$0xff] %v5925
        %5943 = vst [vmem:[%s5933 + $0x48] sm:$0xff] %v5926
        %5944 = vst [vmem:[%s5933 + $0x50] sm:$0xff] %v5927
        %5945 = vst [vmem:[%s5933 + $0x58] sm:$0xff] %v5928
        %5946 = vst [vmem:[%s5933 + $0x60] sm:$0xff] %v5929
        %5947 = vst [vmem:[%s5933 + $0x68] sm:$0xff] %v5930
        %5948 = vst [vmem:[%s5933 + $0x70] sm:$0xff] %v5931
        %5949 = vst [vmem:[%s5933 + $0x78] sm:$0xff] %v5932
        %s5950 = sand.u32 %s186, 1
        %s5951 = scalar_lea.sflag [#allocation5], %s5950
        %s5952 = sand.u32 %s186, 1
        %s5953 = smul.addr %s5952, 256
        %s5954 = scalar_lea.vmem [#allocation11], %s5953
        // Predicated region
        $region65: #{_lambda_.1} parent=47 // pred_check
          %p5955 = pneg %p196
        $region66: #{_lambda_.1} parent=47 // pred_check_branch
          %5957 = sbr.rel (%p5955) target = $region68
        $region67: #{_lambda_.1} parent=47 // pred_region
          %s5959 = ssub.s32 4096, 4096
          %5960 = vsyncadd %s5951, %s5959
          %s5961 = smul.addr %s26, 32
          %s5962 = smul.addr %s5961, 128
          %s5963 = scalar_lea.hbm %s7, %s5962
          %s5964 = sshll.u32 %s5954, 4
          %s5965 = int_to_ptr.vmem [resolvable:$true] %s5964
          %5970 = dma.vmem_to_hbm [thread:$0]  %s5965, 4096, %s5963, %s5951, 128, 128, 8
        $region68: #{_lambda_.1} parent=47 // pred_fallthru
          _
      $region48: #{_lambda_.1} parent=5 // pred_fallthru
        _
      %p5971 = scmp.le.s32.totalorder 2, %s21
      // Predicated region
      $region69: #{_lambda_.1} parent=5 // pred_check
        %p5972 = pneg %p5971
      $region70: #{_lambda_.1} parent=5 // pred_check_branch
        %5974 = sbr.rel (%p5972) target = $region72
      $region71: #{_lambda_.1} parent=5 // pred_region
        %s5975 = ssub.s32 %s21, 2
        // Predicated region
        $region73: #{_lambda_.1} parent=71 // pred_check
          %p5976 = pneg %p202
        $region74: #{_lambda_.1} parent=71 // pred_check_branch
          %5978 = sbr.rel (%p5976) target = $region76
        $region75: #{_lambda_.1} parent=71 // pred_region
          %s5979 = sand.u32 %s187, 1
          %s5980 = scalar_lea.sflag [#allocation5], %s5979
          %s5981 = sand.u32 %s187, 1
          %s5982 = smul.addr %s5981, 256
          %s5983 = scalar_lea.vmem [#allocation11], %s5982
          %5984 = dma.done %s5980, 4096
        $region76: #{_lambda_.1} parent=71 // pred_fallthru
          _
      $region72: #{_lambda_.1} parent=5 // pred_fallthru
        _
    $region6: #{_lambda_.1} parent=1 // loop_footer
      %s25 = sadd.s32 1, %s21
    $region7: #{_lambda_.1} parent=1 // loop_footer_branch
      %20 = sbr.rel target = $region3
    $region8: #{_lambda_.1} parent=1 // loop_exit
      _
    %5985 = vsyncpa [#allocation4], 1
    %s5986 = scalar_lea.sflag [#allocation4], 1
    %5987 = vsyncpa %s5986, 1
    %5988 = vsyncpa [#allocation7], 1
    %5989 = vsyncpa [#allocation10], 1
    %5990 = vsyncpa [#allocation5], 1
    %s5991 = scalar_lea.sflag [#allocation5], 1
    %5992 = vsyncpa %s5991, 1

</llo_original>
